<compile_context>
chip_gen: v6e
topology: v6e:2x2x1
jax: 0.10.0
libtpu: 0.0.40
codegen_flags: <defaults>
</compile_context>

<pallas_src>
import functools

import jax
import jax.numpy as jnp
from jax.experimental import pallas as pl
from jax.experimental.pallas import tpu as pltpu


def _round_up(a, b):
    return (a + b - 1) // b * b


def _padded_vmem_bytes(shape, dtype):
    """VMEM bytes of a tile after (sublane, lane) padding to (8, 128)."""
    shape = tuple(shape)
    if len(shape) == 1:
        shape = (1,) + shape
    lead, (s, l) = shape[:-2], shape[-2:]
    n = 1
    for d in lead:
        n *= int(d)
    return n * _round_up(max(int(s), 1), 8) * _round_up(max(int(l), 1), 128) * jnp.dtype(dtype).itemsize


def _vmem_capacity_bytes():
    try:
        return int(pltpu.get_tpu_info().vmem_capacity_bytes)
    except Exception:
        return 64 * 1024 * 1024  # conservative fallback: v7x per-TensorCore VMEM


def prepare_mlp_params(params, compute_dtype=jnp.bfloat16, lane_multiple=128):
    """One-time (hoisted out of the forward hot path) parameter preprocessing.

    Pads every layer's output width to a multiple of `lane_multiple` (128; 256 also fills
    the 2x256 MXU on v6e/v7x), casts weights to `compute_dtype`, biases to f32 (1, N).
    Zero padding is numerically safe because padded weight rows/cols and biases are zero
    and ReLU(0) == 0.  NOTE: only valid for zero-preserving activations (ReLU here).
    """
    in_dim = params[0][0].shape[0]
    out_dim = params[-1][0].shape[1]
    layers = []
    prev_out_p = in_dim  # layer-0 contraction dim left unpadded (block == full array dim)
    for w, b in params:
        n_in, n_out = w.shape
        n_out_p = _round_up(n_out, lane_multiple)
        w_p = jnp.pad(w.astype(compute_dtype),
                      ((0, prev_out_p - n_in), (0, n_out_p - n_out)))
        b_p = jnp.pad(b.astype(jnp.float32), (0, n_out_p - n_out)).reshape(1, n_out_p)
        layers.append((w_p, b_p))
        prev_out_p = n_out_p
    return dict(layers=layers, in_dim=in_dim, out_dim=out_dim,
                compute_dtype=compute_dtype)


def _mlp_fused_kernel(*refs, num_layers, compute_dtype, precision, row_chunks):
    """Fused MLP over one M-tile.

    refs layout: x_ref, w0, b0, ..., w_{L-1}, b_{L-1}, o_ref
      x_ref: (tm, d0)              input dtype (cast to compute_dtype in-kernel)
      w_i:   (d_i_pad, d_{i+1}_pad) compute_dtype (grid-constant, VMEM resident)
      b_i:   (1, d_{i+1}_pad)       float32
      o_ref: (tm, d_L_pad)          output dtype (lane-dense)
    """
    x_ref = refs[0]
    o_ref = refs[1 + 2 * num_layers]
    tm = x_ref.shape[0]
    rows = tm // row_chunks

    # Grid-constant weights/biases: load once, reuse for every row chunk.
    ws = [refs[1 + 2 * i][...] for i in range(num_layers)]
    bs = [refs[2 + 2 * i][...] for i in range(num_layers)]

    # Independent row chunks give the scheduler MXU/VPU overlap (layer-i matmul of one
    # chunk vs. bias+ReLU+cast epilogue of the other).
    for c in range(row_chunks):
        r0 = c * rows
        h = x_ref[pl.ds(r0, rows), :].astype(compute_dtype)
        for i in range(num_layers):
            acc = jnp.dot(h, ws[i], precision=precision,
                          preferred_element_type=jnp.float32)
            acc = acc + bs[i]  # (1, N) f32 bias broadcast over rows
            if i < num_layers - 1:
                h = jnp.maximum(acc, 0.0).astype(compute_dtype)  # ReLU, stays on-chip
            else:
                h = acc
        o_ref[pl.ds(r0, rows), :] = h.astype(o_ref.dtype)


def mlp_forward(x, prepared, max_rows_per_tile=512):
    """x: (batch, seq, input_dim); prepared: output of prepare_mlp_params().

    Matches torch MLP.forward: Linear -> ReLU for all but the last layer.
    """
    layers = prepared["layers"]
    in_dim = prepared["in_dim"]
    out_dim = prepared["out_dim"]
    compute_dtype = prepared["compute_dtype"]
    num_layers = len(layers)
    n_last = layers[-1][0].shape[1]
    max_width = max(w.shape[1] for w, _ in layers)

    batch, seq, xd = x.shape
    assert xd == in_dim, "input feature dim does not match prepared params"
    out_dtype = x.dtype
    M = batch * seq

    # Row tile: as large as allowed (amortizes ~600-cycle per-step overhead), multiple of 8.
    tm = min(max_rows_per_tile, _round_up(M, 8))
    # v7x megacore: guarantee >= 2 grid steps whenever possible so both TCs get work.
    if _round_up(M, tm) // tm < 2 and M > 8:
        tm = _round_up((M + 1) // 2, 8)

    # Fit the fused footprint into VMEM (conservatively assume double-buffered weights
    # so the no-Buffered(1) fallback path also fits).
    vmem_cap = _vmem_capacity_bytes()
    budget = int(0.85 * vmem_cap)

    def fused_vmem_bytes(rows):
        need = 0
        for w, b in layers:
            need += 2 * (_padded_vmem_bytes(w.shape, w.dtype)
                         + _padded_vmem_bytes(b.shape, b.dtype))
        need += 2 * _padded_vmem_bytes((rows, in_dim), x.dtype)         # x tile (double-buffered)
        need += 2 * _padded_vmem_bytes((rows, n_last), out_dtype)       # out tile (double-buffered)
        need += 2 * _padded_vmem_bytes((rows, max_width), jnp.float32)  # f32 acc + activation
        return int(need * 1.5) + (4 << 20)                              # headroom

    while tm > 8 and fused_vmem_bytes(tm) > budget:
        tm = max(8, _round_up(tm // 2, 8))
    # TODO(synk): if even tm=8 exceeds the budget (giant layers on v7x's 64 MiB), tile the
    # largest layer over N/K with pltpu.emit_pipeline instead of whole-weight residency.

    m_pad = _round_up(M, tm)
    row_chunks = 2 if (tm % 16 == 0) else 1

    x2d = x.reshape(M, in_dim)
    if m_pad != M:
        x2d = jnp.pad(x2d, ((0, m_pad - M), (0, 0)))

    flat_params = []
    flops = 0
    bytes_accessed = (x2d.size * x2d.dtype.itemsize
                      + m_pad * n_last * jnp.dtype(out_dtype).itemsize)
    for w, b in layers:
        flat_params += [w, b]
        flops += 2 * m_pad * w.shape[0] * w.shape[1]
        bytes_accessed += w.size * w.dtype.itemsize + b.size * b.dtype.itemsize

    precision = (jax.lax.Precision.HIGHEST
                 if jnp.dtype(compute_dtype) == jnp.dtype(jnp.float32)
                 else jax.lax.Precision.DEFAULT)

    kernel = functools.partial(
        _mlp_fused_kernel, num_layers=num_layers, compute_dtype=compute_dtype,
        precision=precision, row_chunks=row_chunks)

    vmem_limit = int(min(max(fused_vmem_bytes(tm), 32 << 20), int(0.9 * vmem_cap)))

    def run(single_buffer_weights):
        const_kwargs = {}
        if single_buffer_weights:
            # Grid-constant weights/biases: one VMEM buffer suffices (no pipelining needed),
            # halving their footprint vs. the default double-buffering.
            const_kwargs["pipeline_mode"] = pl.Buffered(1)
        in_specs = [pl.BlockSpec((tm, in_dim), lambda i: (i, 0))]
        for w, b in layers:
            in_specs.append(pl.BlockSpec(w.shape, lambda i: (0, 0), **const_kwargs))
            in_specs.append(pl.BlockSpec(b.shape, lambda i: (0, 0), **const_kwargs))
        return pl.pallas_call(
            kernel,
            out_shape=jax.ShapeDtypeStruct((m_pad, n_last), out_dtype),
            grid=(m_pad // tm,),
            in_specs=in_specs,
            out_specs=pl.BlockSpec((tm, n_last), lambda i: (i, 0)),
            compiler_params=pltpu.CompilerParams(
                dimension_semantics=("parallel",),  # shard row tiles across TCs (v7x)
                vmem_limit_bytes=vmem_limit),
            cost_estimate=pl.CostEstimate(
                flops=flops, transcendentals=0, bytes_accessed=bytes_accessed),
        )(x2d, *flat_params)

    try:
        out2d = run(single_buffer_weights=True)
    except Exception:
        # pl.Buffered(1) unsupported by this jax/Mosaic version -> default double-buffering
        # (still correct, just uses 2x weight VMEM).
        out2d = run(single_buffer_weights=False)

    return out2d[:M, :out_dim].reshape(batch, seq, out_dim)


def init_mlp_params(key, input_dim, hidden_dim, output_dim, num_layers, dtype=jnp.float32):
    """Deterministic synthetic params. nn.Linear(n, k): weight (k, n) stored transposed
    as (n, k); bias (k,). Same uniform(-1/sqrt(n), 1/sqrt(n)) init as PyTorch."""
    h = [hidden_dim] * (num_layers - 1)
    dims = list(zip([input_dim] + h, h + [output_dim]))
    params = []
    for (n_in, n_out) in dims:
        key, wk, bk = jax.random.split(key, 3)
        bound = 1.0 / (n_in ** 0.5)
        w = jax.random.uniform(wk, (n_in, n_out), dtype, -bound, bound)
        b = jax.random.uniform(bk, (n_out,), dtype, -bound, bound)
        params.append((w, b))
    return params


def mlp_reference(x, params):
    h = x
    for i, (w, b) in enumerate(params):
        h = jnp.dot(h, w, precision=jax.lax.Precision.HIGHEST) + b
        if i < len(params) - 1:
            h = jax.nn.relu(h)
    return h


if __name__ == "__main__":
    key = jax.random.PRNGKey(0)
    batch, seq = 2, 8
    input_dim, hidden_dim, output_dim, num_layers = 4, 32, 8, 3

    kx, kp, kx2, kx3 = jax.random.split(key, 4)
    x = jax.random.normal(kx, (batch, seq, input_dim), jnp.float32)
    params = init_mlp_params(kp, input_dim, hidden_dim, output_dim, num_layers)

    # f32 compute path (matches the PyTorch module numerics). Params prepared ONCE.
    prep_f32 = prepare_mlp_params(params, compute_dtype=jnp.float32)
    out = jax.block_until_ready(mlp_forward(x, prep_f32))
    ref = mlp_reference(x, params)
    assert out.shape == (batch, seq, output_dim)
    assert jnp.allclose(out, ref, atol=1e-4, rtol=1e-4), "f32 mismatch vs reference"

    # Default bf16 compute path (MXU-native on v5e/v6e/v7x); f32 accumulate + f32 bias.
    prep_bf16 = prepare_mlp_params(params)  # compute_dtype defaults to bfloat16
    out_bf16 = jax.block_until_ready(mlp_forward(x, prep_bf16))
    assert jnp.allclose(out_bf16, ref, atol=5e-2, rtol=5e-2), "bf16 mismatch vs reference"

    # Ragged M (batch*seq not a multiple of the row tile) exercises the padded-M path.
    x2 = jax.random.normal(kx2, (3, 5, input_dim), jnp.float32)
    out2 = jax.block_until_ready(mlp_forward(x2, prep_f32))
    ref2 = mlp_reference(x2, params)
    assert out2.shape == (3, 5, output_dim)
    assert jnp.allclose(out2, ref2, atol=1e-4, rtol=1e-4), "ragged-M mismatch vs reference"

    # Larger M exercises the in-kernel 2-way row-chunk (MXU/VPU overlap) path.
    x3 = jax.random.normal(kx3, (4, 16, input_dim), jnp.float32)
    out3 = jax.block_until_ready(mlp_forward(x3, prep_f32))
    ref3 = mlp_reference(x3, params)
    assert out3.shape == (4, 16, output_dim)
    assert jnp.allclose(out3, ref3, atol=1e-4, rtol=1e-4), "row-chunked mismatch vs reference"

    print("KERNEL_OK")
</pallas_src>

<mosaic_0001>
module attributes {stable_mosaic.version = 11 : i64} {
  func.func @_mlp_fused_kernel(%arg0: i32, %arg1: memref<8x4xf32, #tpu.memory_space<vmem>>, %arg2: memref<4x128xf32, #tpu.memory_space<vmem>>, %arg3: memref<1x128xf32, #tpu.memory_space<vmem>>, %arg4: memref<128x128xf32, #tpu.memory_space<vmem>>, %arg5: memref<1x128xf32, #tpu.memory_space<vmem>>, %arg6: memref<128x128xf32, #tpu.memory_space<vmem>>, %arg7: memref<1x128xf32, #tpu.memory_space<vmem>>, %arg8: memref<8x128xf32, #tpu.memory_space<vmem>>) attributes {dimension_semantics = [#tpu.dimension_semantics<parallel>], iteration_bounds = array<i64: 2>, scalar_prefetch = 0 : i64, scratch_operands = 0 : i64, tpu.core_type = #tpu.core_type<tc>, window_params = [{transform_indices = @transform_0, window_bounds = array<i64: 8, 4>}, {pipeline_mode = #tpu.pipeline_mode<synchronous>, transform_indices = @transform_1, window_bounds = array<i64: 4, 128>}, {pipeline_mode = #tpu.pipeline_mode<synchronous>, transform_indices = @transform_2, window_bounds = array<i64: 1, 128>}, {pipeline_mode = #tpu.pipeline_mode<synchronous>, transform_indices = @transform_3, window_bounds = array<i64: 128, 128>}, {pipeline_mode = #tpu.pipeline_mode<synchronous>, transform_indices = @transform_4, window_bounds = array<i64: 1, 128>}, {pipeline_mode = #tpu.pipeline_mode<synchronous>, transform_indices = @transform_5, window_bounds = array<i64: 128, 128>}, {pipeline_mode = #tpu.pipeline_mode<synchronous>, transform_indices = @transform_6, window_bounds = array<i64: 1, 128>}, {transform_indices = @transform_7, window_bounds = array<i64: 8, 128>}]} {
    %c0 = arith.constant 0 : index
    %c0_0 = arith.constant 0 : index
    %0 = vector.load %arg2[%c0, %c0_0] : memref<4x128xf32, #tpu.memory_space<vmem>>, vector<4x128xf32>
    %c0_1 = arith.constant 0 : index
    %c0_2 = arith.constant 0 : index
    %1 = vector.load %arg4[%c0_1, %c0_2] : memref<128x128xf32, #tpu.memory_space<vmem>>, vector<128x128xf32>
    %c0_3 = arith.constant 0 : index
    %c0_4 = arith.constant 0 : index
    %2 = vector.load %arg6[%c0_3, %c0_4] : memref<128x128xf32, #tpu.memory_space<vmem>>, vector<128x128xf32>
    %c0_5 = arith.constant 0 : index
    %c0_6 = arith.constant 0 : index
    %3 = vector.load %arg3[%c0_5, %c0_6] : memref<1x128xf32, #tpu.memory_space<vmem>>, vector<1x128xf32>
    %c0_7 = arith.constant 0 : index
    %c0_8 = arith.constant 0 : index
    %4 = vector.load %arg5[%c0_7, %c0_8] : memref<1x128xf32, #tpu.memory_space<vmem>>, vector<1x128xf32>
    %c0_9 = arith.constant 0 : index
    %c0_10 = arith.constant 0 : index
    %5 = vector.load %arg7[%c0_9, %c0_10] : memref<1x128xf32, #tpu.memory_space<vmem>>, vector<1x128xf32>
    %c0_11 = arith.constant 0 : index
    %c0_12 = arith.constant 0 : index
    %6 = vector.load %arg1[%c0_11, %c0_12] : memref<8x4xf32, #tpu.memory_space<vmem>>, vector<8x4xf32>
    %cst = arith.constant dense<0.000000e+00> : vector<8x128xf32>
    %7 = tpu.matmul %6, %0, %cst {dimension_numbers = #tpu.dot_dimension_numbers<[1], [0], [0], [1], [0, 0, 1, 1], [], []>, precision = #tpu.contract_precision<fp32>} : vector<8x4xf32>, vector<4x128xf32>, vector<8x128xf32> -> vector<8x128xf32>
    %8 = vector.broadcast %3 : vector<1x128xf32> to vector<8x128xf32>
    %9 = arith.addf %7, %8 : vector<8x128xf32>
    %cst_13 = arith.constant 0.000000e+00 : f32
    %10 = vector.broadcast %cst_13 : f32 to vector<8x128xf32>
    %11 = arith.maximumf %9, %10 : vector<8x128xf32>
    %cst_14 = arith.constant dense<0.000000e+00> : vector<8x128xf32>
    %12 = tpu.matmul %11, %1, %cst_14 {dimension_numbers = #tpu.dot_dimension_numbers<[1], [0], [0], [1], [0, 0, 1, 1], [], []>, precision = #tpu.contract_precision<fp32>} : vector<8x128xf32>, vector<128x128xf32>, vector<8x128xf32> -> vector<8x128xf32>
    %13 = vector.broadcast %4 : vector<1x128xf32> to vector<8x128xf32>
    %14 = arith.addf %12, %13 : vector<8x128xf32>
    %cst_15 = arith.constant 0.000000e+00 : f32
    %15 = vector.broadcast %cst_15 : f32 to vector<8x128xf32>
    %16 = arith.maximumf %14, %15 : vector<8x128xf32>
    %cst_16 = arith.constant dense<0.000000e+00> : vector<8x128xf32>
    %17 = tpu.matmul %16, %2, %cst_16 {dimension_numbers = #tpu.dot_dimension_numbers<[1], [0], [0], [1], [0, 0, 1, 1], [], []>, precision = #tpu.contract_precision<fp32>} : vector<8x128xf32>, vector<128x128xf32>, vector<8x128xf32> -> vector<8x128xf32>
    %18 = vector.broadcast %5 : vector<1x128xf32> to vector<8x128xf32>
    %19 = arith.addf %17, %18 : vector<8x128xf32>
    %c0_17 = arith.constant 0 : index
    %c0_18 = arith.constant 0 : index
    %20 = vector.load %arg8[%c0_17, %c0_18] : memref<8x128xf32, #tpu.memory_space<vmem>>, vector<8x128xf32>
    tpu.vector_store %arg8[%c0_17, %c0_18], %19 {strides = array<i32>} : memref<8x128xf32, #tpu.memory_space<vmem>>, vector<8x128xf32>,
    return
  }
  func.func @transform_0(%arg0: i32) -> (i32, i32) {
    %c0_i32 = arith.constant 0 : i32
    %c0_i32_0 = arith.constant 0 : i32
    return %arg0, %c0_i32 : i32, i32
  }
  func.func @transform_1(%arg0: i32) -> (i32, i32) {
    %c0_i32 = arith.constant 0 : i32
    %c0_i32_0 = arith.constant 0 : i32
    %c0_i32_1 = arith.constant 0 : i32
    return %c0_i32, %c0_i32_0 : i32, i32
  }
  func.func @transform_2(%arg0: i32) -> (i32, i32) {
    %c0_i32 = arith.constant 0 : i32
    %c0_i32_0 = arith.constant 0 : i32
    %c0_i32_1 = arith.constant 0 : i32
    return %c0_i32, %c0_i32_0 : i32, i32
  }
  func.func @transform_3(%arg0: i32) -> (i32, i32) {
    %c0_i32 = arith.constant 0 : i32
    %c0_i32_0 = arith.constant 0 : i32
    %c0_i32_1 = arith.constant 0 : i32
    return %c0_i32, %c0_i32_0 : i32, i32
  }
  func.func @transform_4(%arg0: i32) -> (i32, i32) {
    %c0_i32 = arith.constant 0 : i32
    %c0_i32_0 = arith.constant 0 : i32
    %c0_i32_1 = arith.constant 0 : i32
    return %c0_i32, %c0_i32_0 : i32, i32
  }
  func.func @transform_5(%arg0: i32) -> (i32, i32) {
    %c0_i32 = arith.constant 0 : i32
    %c0_i32_0 = arith.constant 0 : i32
    %c0_i32_1 = arith.constant 0 : i32
    return %c0_i32, %c0_i32_0 : i32, i32
  }
  func.func @transform_6(%arg0: i32) -> (i32, i32) {
    %c0_i32 = arith.constant 0 : i32
    %c0_i32_0 = arith.constant 0 : i32
    %c0_i32_1 = arith.constant 0 : i32
    return %c0_i32, %c0_i32_0 : i32, i32
  }
  func.func @transform_7(%arg0: i32) -> (i32, i32) {
    %c0_i32 = arith.constant 0 : i32
    %c0_i32_0 = arith.constant 0 : i32
    return %arg0, %c0_i32 : i32, i32
  }
}

module attributes {stable_mosaic.version = 11 : i64} {
  func.func @_mlp_fused_kernel(%arg0: i32, %arg1: memref<8x4xf32, #tpu.memory_space<vmem>>, %arg2: memref<4x128xf32, #tpu.memory_space<vmem>>, %arg3: memref<1x128xf32, #tpu.memory_space<vmem>>, %arg4: memref<128x128xf32, #tpu.memory_space<vmem>>, %arg5: memref<1x128xf32, #tpu.memory_space<vmem>>, %arg6: memref<128x128xf32, #tpu.memory_space<vmem>>, %arg7: memref<1x128xf32, #tpu.memory_space<vmem>>, %arg8: memref<8x128xf32, #tpu.memory_space<vmem>>) attributes {dimension_semantics = [#tpu.dimension_semantics<parallel>], iteration_bounds = array<i64: 2>, scalar_prefetch = 0 : i64, scratch_operands = 0 : i64, tpu.core_type = #tpu.core_type<tc>, window_params = [{transform_indices = @transform_0, window_bounds = array<i64: 8, 4>}, {pipeline_mode = #tpu.pipeline_mode<synchronous>, transform_indices = @transform_1, window_bounds = array<i64: 4, 128>}, {pipeline_mode = #tpu.pipeline_mode<synchronous>, transform_indices = @transform_2, window_bounds = array<i64: 1, 128>}, {pipeline_mode = #tpu.pipeline_mode<synchronous>, transform_indices = @transform_3, window_bounds = array<i64: 128, 128>}, {pipeline_mode = #tpu.pipeline_mode<synchronous>, transform_indices = @transform_4, window_bounds = array<i64: 1, 128>}, {pipeline_mode = #tpu.pipeline_mode<synchronous>, transform_indices = @transform_5, window_bounds = array<i64: 128, 128>}, {pipeline_mode = #tpu.pipeline_mode<synchronous>, transform_indices = @transform_6, window_bounds = array<i64: 1, 128>}, {transform_indices = @transform_7, window_bounds = array<i64: 8, 128>}]} {
    %c0 = arith.constant 0 : index
    %c0_0 = arith.constant 0 : index
    %0 = vector.load %arg2[%c0, %c0_0] : memref<4x128xf32, #tpu.memory_space<vmem>>, vector<4x128xf32>
    %c0_1 = arith.constant 0 : index
    %c0_2 = arith.constant 0 : index
    %1 = vector.load %arg4[%c0_1, %c0_2] : memref<128x128xf32, #tpu.memory_space<vmem>>, vector<128x128xf32>
    %c0_3 = arith.constant 0 : index
    %c0_4 = arith.constant 0 : index
    %2 = vector.load %arg6[%c0_3, %c0_4] : memref<128x128xf32, #tpu.memory_space<vmem>>, vector<128x128xf32>
    %c0_5 = arith.constant 0 : index
    %c0_6 = arith.constant 0 : index
    %3 = vector.load %arg3[%c0_5, %c0_6] : memref<1x128xf32, #tpu.memory_space<vmem>>, vector<1x128xf32>
    %c0_7 = arith.constant 0 : index
    %c0_8 = arith.constant 0 : index
    %4 = vector.load %arg5[%c0_7, %c0_8] : memref<1x128xf32, #tpu.memory_space<vmem>>, vector<1x128xf32>
    %c0_9 = arith.constant 0 : index
    %c0_10 = arith.constant 0 : index
    %5 = vector.load %arg7[%c0_9, %c0_10] : memref<1x128xf32, #tpu.memory_space<vmem>>, vector<1x128xf32>
    %c0_11 = arith.constant 0 : index
    %c0_12 = arith.constant 0 : index
    %6 = vector.load %arg1[%c0_11, %c0_12] : memref<8x4xf32, #tpu.memory_space<vmem>>, vector<8x4xf32>
    %cst = arith.constant dense<0.000000e+00> : vector<8x128xf32>
    %7 = tpu.matmul %6, %0, %cst {dimension_numbers = #tpu.dot_dimension_numbers<[1], [0], [0], [1], [0, 0, 1, 1], [], []>, precision = #tpu.contract_precision<fp32>} : vector<8x4xf32>, vector<4x128xf32>, vector<8x128xf32> -> vector<8x128xf32>
    %8 = vector.broadcast %3 : vector<1x128xf32> to vector<8x128xf32>
    %9 = arith.addf %7, %8 : vector<8x128xf32>
    %cst_13 = arith.constant 0.000000e+00 : f32
    %10 = vector.broadcast %cst_13 : f32 to vector<8x128xf32>
    %11 = arith.maximumf %9, %10 : vector<8x128xf32>
    %cst_14 = arith.constant dense<0.000000e+00> : vector<8x128xf32>
    %12 = tpu.matmul %11, %1, %cst_14 {dimension_numbers = #tpu.dot_dimension_numbers<[1], [0], [0], [1], [0, 0, 1, 1], [], []>, precision = #tpu.contract_precision<fp32>} : vector<8x128xf32>, vector<128x128xf32>, vector<8x128xf32> -> vector<8x128xf32>
    %13 = vector.broadcast %4 : vector<1x128xf32> to vector<8x128xf32>
    %14 = arith.addf %12, %13 : vector<8x128xf32>
    %cst_15 = arith.constant 0.000000e+00 : f32
    %15 = vector.broadcast %cst_15 : f32 to vector<8x128xf32>
    %16 = arith.maximumf %14, %15 : vector<8x128xf32>
    %cst_16 = arith.constant dense<0.000000e+00> : vector<8x128xf32>
    %17 = tpu.matmul %16, %2, %cst_16 {dimension_numbers = #tpu.dot_dimension_numbers<[1], [0], [0], [1], [0, 0, 1, 1], [], []>, precision = #tpu.contract_precision<fp32>} : vector<8x128xf32>, vector<128x128xf32>, vector<8x128xf32> -> vector<8x128xf32>
    %18 = vector.broadcast %5 : vector<1x128xf32> to vector<8x128xf32>
    %19 = arith.addf %17, %18 : vector<8x128xf32>
    %c0_17 = arith.constant 0 : index
    %c0_18 = arith.constant 0 : index
    %20 = vector.load %arg8[%c0_17, %c0_18] : memref<8x128xf32, #tpu.memory_space<vmem>>, vector<8x128xf32>
    tpu.vector_store %arg8[%c0_17, %c0_18], %19 {strides = array<i32>} : memref<8x128xf32, #tpu.memory_space<vmem>>, vector<8x128xf32>,
    return
  }
  func.func @transform_0(%arg0: i32) -> (i32, i32) {
    %c0_i32 = arith.constant 0 : i32
    %c0_i32_0 = arith.constant 0 : i32
    return %arg0, %c0_i32 : i32, i32
  }
  func.func @transform_1(%arg0: i32) -> (i32, i32) {
    %c0_i32 = arith.constant 0 : i32
    %c0_i32_0 = arith.constant 0 : i32
    %c0_i32_1 = arith.constant 0 : i32
    return %c0_i32, %c0_i32_0 : i32, i32
  }
  func.func @transform_2(%arg0: i32) -> (i32, i32) {
    %c0_i32 = arith.constant 0 : i32
    %c0_i32_0 = arith.constant 0 : i32
    %c0_i32_1 = arith.constant 0 : i32
    return %c0_i32, %c0_i32_0 : i32, i32
  }
  func.func @transform_3(%arg0: i32) -> (i32, i32) {
    %c0_i32 = arith.constant 0 : i32
    %c0_i32_0 = arith.constant 0 : i32
    %c0_i32_1 = arith.constant 0 : i32
    return %c0_i32, %c0_i32_0 : i32, i32
  }
  func.func @transform_4(%arg0: i32) -> (i32, i32) {
    %c0_i32 = arith.constant 0 : i32
    %c0_i32_0 = arith.constant 0 : i32
    %c0_i32_1 = arith.constant 0 : i32
    return %c0_i32, %c0_i32_0 : i32, i32
  }
  func.func @transform_5(%arg0: i32) -> (i32, i32) {
    %c0_i32 = arith.constant 0 : i32
    %c0_i32_0 = arith.constant 0 : i32
    %c0_i32_1 = arith.constant 0 : i32
    return %c0_i32, %c0_i32_0 : i32, i32
  }
  func.func @transform_6(%arg0: i32) -> (i32, i32) {
    %c0_i32 = arith.constant 0 : i32
    %c0_i32_0 = arith.constant 0 : i32
    %c0_i32_1 = arith.constant 0 : i32
    return %c0_i32, %c0_i32_0 : i32, i32
  }
  func.func @transform_7(%arg0: i32) -> (i32, i32) {
    %c0_i32 = arith.constant 0 : i32
    %c0_i32_0 = arith.constant 0 : i32
    return %arg0, %c0_i32 : i32, i32
  }
}

</mosaic_0001>

<llo_original>
// kernel: tpu_custom_call.1
$region0: #{tpu_custom_call.1}
  #allocation0 [shape = 'u32[]', space=smem, size = 0x4, offset = 0x4, fixed_abs, tag = 'smem constant byte address 0x4 - core index']
  #allocation1 [shape = 'u32[144,128]{1,0:T(1,128)}', space=vmem, size = 0x12000, scoped, tag = 'internal scratch']
  %s0 = inlined_call_operand.vmem [shape: f32[16,4], index: 0, kind: input, shape index: {}]
  %s1 = inlined_call_operand.vmem [shape: f32[4,128], index: 1, kind: input, shape index: {}]
  %s2 = inlined_call_operand.vmem [shape: f32[1,128], index: 2, kind: input, shape index: {}]
  %s3 = inlined_call_operand.hbm [shape: f32[128,128], index: 3, kind: input, shape index: {}]
  %s4 = inlined_call_operand.vmem [shape: f32[1,128], index: 4, kind: input, shape index: {}]
  %s5 = inlined_call_operand.hbm [shape: f32[128,128], index: 5, kind: input, shape index: {}]
  %s6 = inlined_call_operand.vmem [shape: f32[1,128], index: 6, kind: input, shape index: {}]
  %s7 = inlined_call_operand.hbm [shape: f32[16,128], index: 7, kind: output, shape index: {}]
  %s8 = sld [smem:[#allocation0]]
  $region69: #{tpu_custom_call.1} parent=0
    _
  %s10 = ssub.s32 1, %s8
  %s11 = scalar_select 0, %s10, %s8
  $region1: #{tpu_custom_call.1} parent=0
    #allocation2 [shape = 'u8[65536]{0}', space=vmem, size = 0x10000, scoped, tag = 'input window, operand 3, single buffered']
    #allocation3 [shape = 's32[2]{0}', space=sflag, size = 0x8, scoped, tag = 'scoped memory for tpu_custom_call.1']
    #allocation4 [shape = 's32[2]{0}', space=sflag, size = 0x8, scoped, tag = 'scoped memory for tpu_custom_call.1']
    #allocation5 [shape = 'u8[65536]{0}', space=vmem, size = 0x10000, scoped, tag = 'input window, operand 5, single buffered']
    #allocation6 [shape = 's32[1]{0}', space=sflag, size = 0x4, scoped, tag = 'scoped memory for tpu_custom_call.1']
    #allocation7 [shape = 'u8[8192]{0}', space=vmem, size = 0x2000, scoped, tag = 'output window, operand 0']
    %12 = vsyncpa [#allocation3], 0
    %13 = vsyncpa [#allocation6], 0
    %14 = vsyncpa [#allocation4], 0
    %s15 = scalar_lea.sflag [#allocation4], 1
    %16 = vsyncpa %s15, 0
    loop: start=0, step=1, limit=4
    $region2: #{tpu_custom_call.1} parent=1 // loop_pre_header
      _
    $region3: #{tpu_custom_call.1} parent=1 // loop_header
      %s18 = sphi 0, %s22
      %p19 = scmp.ge.s32.totalorder %s18, 4
      %s28 = sphi 0, %s30
      %s31 = sphi 0, %s28
      %s32 = sphi 0, %s31
      %s48 = sphi 0, %s32
      %s52 = sphi 0, %s52
      %s54 = sphi 0, %s52
      %s55 = sphi 0, %s54
      %s69 = sphi 0, %s55
      %s73 = sphi 0, %s73
      %s75 = sphi 0, %s73
      %s76 = sphi 0, %s75
      %s90 = sphi 0, %s76
      %s94 = sphi 0, %s94
      %s96 = sphi 0, %s94
      %s97 = sphi 0, %s96
      %s111 = sphi 0, %s97
      %s115 = sphi 0, %s115
      %s117 = sphi 0, %s115
      %s118 = sphi 0, %s117
      %s132 = sphi 0, %s118
      %s136 = sphi 0, %s136
      %s138 = sphi 0, %s136
      %s139 = sphi 0, %s138
      %s153 = sphi 0, %s139
      %s157 = sphi 0, %s157
      %s159 = sphi 0, %s157
      %s160 = sphi 0, %s159
      %s174 = sphi 0, %s160
      %s180 = sphi 0, %s182
      %s183 = sphi 0, %s180
      %s184 = sphi 0, %s183
      %s200 = sphi 0, %s184
    $region4: #{tpu_custom_call.1} parent=1 // loop_header_branch
      %21 = sbr.rel (%p19) target = $region8
    $region5: #{tpu_custom_call.1} parent=1 // loop_body
      %s23 = ssub.s32 %s18, 1
      %s24 = ssub.s32 %s18, 2
      %s25 = sadd.s32 %s18, 1
      %s26 = ssub.s32 %s18, %s25
      %p27 = scmp.eq.s32.totalorder %s26, 0
      %s29 = sadd.s32 %s28, 1
      %s30 = scalar_select %p27, %s28, %s29
      %p33 = pneg %p27
      %p34 = scmp.eq.s32.totalorder %s18, 1
      %p35 = por %p33, %p34
      %p36 = scmp.ne.s32.totalorder %s28, %s31
      %p37 = scmp.eq.s32.totalorder %s18, 0
      %p38 = por %p36, %p37
      %p39 = scmp.ne.s32.totalorder %s28, %s31
      %p40 = scmp.eq.s32.totalorder %s23, 1
      %p41 = por %p39, %p40
      %p42 = scmp.ne.s32.totalorder %s31, %s32
      %p43 = scmp.eq.s32.totalorder %s23, 0
      %p44 = por %p42, %p43
      %p45 = scmp.ne.s32.totalorder %s31, %s32
      %p46 = scmp.eq.s32.totalorder %s24, 1
      %p47 = por %p45, %p46
      %p49 = scmp.ne.s32.totalorder %s32, %s48
      %p50 = scmp.eq.s32.totalorder %s24, 0
      %p51 = por %p49, %p50
      %s53 = sadd.s32 %s52, 1
      %p56 = scmp.eq.s32.totalorder %s18, 1
      %p57 = scmp.ne.s32.totalorder %s52, %s54
      %p58 = scmp.eq.s32.totalorder %s18, 0
      %p59 = por %p57, %p58
      %p60 = scmp.ne.s32.totalorder %s52, %s54
      %p61 = scmp.eq.s32.totalorder %s23, 1
      %p62 = por %p60, %p61
      %p63 = scmp.ne.s32.totalorder %s54, %s55
      %p64 = scmp.eq.s32.totalorder %s23, 0
      %p65 = por %p63, %p64
      %p66 = scmp.ne.s32.totalorder %s54, %s55
      %p67 = scmp.eq.s32.totalorder %s24, 1
      %p68 = por %p66, %p67
      %p70 = scmp.ne.s32.totalorder %s55, %s69
      %p71 = scmp.eq.s32.totalorder %s24, 0
      %p72 = por %p70, %p71
      %s74 = sadd.s32 %s73, 1
      %p77 = scmp.eq.s32.totalorder %s18, 1
      %p78 = scmp.ne.s32.totalorder %s73, %s75
      %p79 = scmp.eq.s32.totalorder %s18, 0
      %p80 = por %p78, %p79
      %p81 = scmp.ne.s32.totalorder %s73, %s75
      %p82 = scmp.eq.s32.totalorder %s23, 1
      %p83 = por %p81, %p82
      %p84 = scmp.ne.s32.totalorder %s75, %s76
      %p85 = scmp.eq.s32.totalorder %s23, 0
      %p86 = por %p84, %p85
      %p87 = scmp.ne.s32.totalorder %s75, %s76
      %p88 = scmp.eq.s32.totalorder %s24, 1
      %p89 = por %p87, %p88
      %p91 = scmp.ne.s32.totalorder %s76, %s90
      %p92 = scmp.eq.s32.totalorder %s24, 0
      %p93 = por %p91, %p92
      %s95 = sadd.s32 %s94, 1
      %p98 = scmp.eq.s32.totalorder %s18, 1
      %p99 = scmp.ne.s32.totalorder %s94, %s96
      %p100 = scmp.eq.s32.totalorder %s18, 0
      %p101 = por %p99, %p100
      %p102 = scmp.ne.s32.totalorder %s94, %s96
      %p103 = scmp.eq.s32.totalorder %s23, 1
      %p104 = por %p102, %p103
      %p105 = scmp.ne.s32.totalorder %s96, %s97
      %p106 = scmp.eq.s32.totalorder %s23, 0
      %p107 = por %p105, %p106
      %p108 = scmp.ne.s32.totalorder %s96, %s97
      %p109 = scmp.eq.s32.totalorder %s24, 1
      %p110 = por %p108, %p109
      %p112 = scmp.ne.s32.totalorder %s97, %s111
      %p113 = scmp.eq.s32.totalorder %s24, 0
      %p114 = por %p112, %p113
      %s116 = sadd.s32 %s115, 1
      %p119 = scmp.eq.s32.totalorder %s18, 1
      %p120 = scmp.ne.s32.totalorder %s115, %s117
      %p121 = scmp.eq.s32.totalorder %s18, 0
      %p122 = por %p120, %p121
      %p123 = scmp.ne.s32.totalorder %s115, %s117
      %p124 = scmp.eq.s32.totalorder %s23, 1
      %p125 = por %p123, %p124
      %p126 = scmp.ne.s32.totalorder %s117, %s118
      %p127 = scmp.eq.s32.totalorder %s23, 0
      %p128 = por %p126, %p127
      %p129 = scmp.ne.s32.totalorder %s117, %s118
      %p130 = scmp.eq.s32.totalorder %s24, 1
      %p131 = por %p129, %p130
      %p133 = scmp.ne.s32.totalorder %s118, %s132
      %p134 = scmp.eq.s32.totalorder %s24, 0
      %p135 = por %p133, %p134
      %s137 = sadd.s32 %s136, 1
      %p140 = scmp.eq.s32.totalorder %s18, 1
      %p141 = scmp.ne.s32.totalorder %s136, %s138
      %p142 = scmp.eq.s32.totalorder %s18, 0
      %p143 = por %p141, %p142
      %p144 = scmp.ne.s32.totalorder %s136, %s138
      %p145 = scmp.eq.s32.totalorder %s23, 1
      %p146 = por %p144, %p145
      %p147 = scmp.ne.s32.totalorder %s138, %s139
      %p148 = scmp.eq.s32.totalorder %s23, 0
      %p149 = por %p147, %p148
      %p150 = scmp.ne.s32.totalorder %s138, %s139
      %p151 = scmp.eq.s32.totalorder %s24, 1
      %p152 = por %p150, %p151
      %p154 = scmp.ne.s32.totalorder %s139, %s153
      %p155 = scmp.eq.s32.totalorder %s24, 0
      %p156 = por %p154, %p155
      %s158 = sadd.s32 %s157, 1
      %p161 = scmp.eq.s32.totalorder %s18, 1
      %p162 = scmp.ne.s32.totalorder %s157, %s159
      %p163 = scmp.eq.s32.totalorder %s18, 0
      %p164 = por %p162, %p163
      %p165 = scmp.ne.s32.totalorder %s157, %s159
      %p166 = scmp.eq.s32.totalorder %s23, 1
      %p167 = por %p165, %p166
      %p168 = scmp.ne.s32.totalorder %s159, %s160
      %p169 = scmp.eq.s32.totalorder %s23, 0
      %p170 = por %p168, %p169
      %p171 = scmp.ne.s32.totalorder %s159, %s160
      %p172 = scmp.eq.s32.totalorder %s24, 1
      %p173 = por %p171, %p172
      %p175 = scmp.ne.s32.totalorder %s160, %s174
      %p176 = scmp.eq.s32.totalorder %s24, 0
      %p177 = por %p175, %p176
      %s178 = ssub.s32 %s18, %s25
      %p179 = scmp.eq.s32.totalorder %s178, 0
      %s181 = sadd.s32 %s180, 1
      %s182 = scalar_select %p179, %s180, %s181
      %p185 = pneg %p179
      %p186 = scmp.eq.s32.totalorder %s18, 1
      %p187 = por %p185, %p186
      %p188 = scmp.ne.s32.totalorder %s180, %s183
      %p189 = scmp.eq.s32.totalorder %s18, 0
      %p190 = por %p188, %p189
      %p191 = scmp.ne.s32.totalorder %s180, %s183
      %p192 = scmp.eq.s32.totalorder %s23, 1
      %p193 = por %p191, %p192
      %p194 = scmp.ne.s32.totalorder %s183, %s184
      %p195 = scmp.eq.s32.totalorder %s23, 0
      %p196 = por %p194, %p195
      %p197 = scmp.ne.s32.totalorder %s183, %s184
      %p198 = scmp.eq.s32.totalorder %s24, 1
      %p199 = por %p197, %p198
      %p201 = scmp.ne.s32.totalorder %s184, %s200
      %p202 = scmp.eq.s32.totalorder %s24, 0
      %p203 = por %p201, %p202
      %p204 = scmp.le.s32.totalorder 1, %s18
      %p205 = scmp.lt.s32.totalorder %s18, 3
      %p206 = pnand %p204, %p205
      %p207 = pneg %p206
      // Predicated region
      $region9: #{tpu_custom_call.1} parent=5 // pred_check
        _
      $region10: #{tpu_custom_call.1} parent=5 // pred_check_branch
        %209 = sbr.rel (%p206) target = $region12
      $region11: #{tpu_custom_call.1} parent=5 // pred_region
        %s210 = ssub.s32 %s18, 1
        // Predicated region
        $region13: #{tpu_custom_call.1} parent=11 // pred_check
          %p211 = pneg %p65
        $region14: #{tpu_custom_call.1} parent=11 // pred_check_branch
          %213 = sbr.rel (%p211) target = $region16
        $region15: #{tpu_custom_call.1} parent=11 // pred_region
          _
        $region16: #{tpu_custom_call.1} parent=11 // pred_fallthru
          _
        // Predicated region
        $region17: #{tpu_custom_call.1} parent=11 // pred_check
          %p214 = pneg %p86
        $region18: #{tpu_custom_call.1} parent=11 // pred_check_branch
          %216 = sbr.rel (%p214) target = $region20
        $region19: #{tpu_custom_call.1} parent=11 // pred_region
          _
        $region20: #{tpu_custom_call.1} parent=11 // pred_fallthru
          _
        // Predicated region
        $region21: #{tpu_custom_call.1} parent=11 // pred_check
          %p217 = pneg %p107
        $region22: #{tpu_custom_call.1} parent=11 // pred_check_branch
          %219 = sbr.rel (%p217) target = $region24
        $region23: #{tpu_custom_call.1} parent=11 // pred_region
          %s221 = ssub.s32 2048, 2048
          %222 = vsyncadd [#allocation3], %s221
          %s223 = sshll.u32 [#allocation2], 4
          %s224 = int_to_ptr.vmem [resolvable:$true] %s223
          %229 = dma.hbm_to_vmem [thread:$0]  %s3, 2048, %s224, [#allocation3], 128, 128, 8
        $region24: #{tpu_custom_call.1} parent=11 // pred_fallthru
          _
        // Predicated region
        $region25: #{tpu_custom_call.1} parent=11 // pred_check
          %p230 = pneg %p128
        $region26: #{tpu_custom_call.1} parent=11 // pred_check_branch
          %232 = sbr.rel (%p230) target = $region28
        $region27: #{tpu_custom_call.1} parent=11 // pred_region
          _
        $region28: #{tpu_custom_call.1} parent=11 // pred_fallthru
          _
        // Predicated region
        $region29: #{tpu_custom_call.1} parent=11 // pred_check
          %p233 = pneg %p149
        $region30: #{tpu_custom_call.1} parent=11 // pred_check_branch
          %235 = sbr.rel (%p233) target = $region32
        $region31: #{tpu_custom_call.1} parent=11 // pred_region
          %s237 = ssub.s32 2048, 2048
          %238 = vsyncadd [#allocation6], %s237
          %s239 = sshll.u32 [#allocation5], 4
          %s240 = int_to_ptr.vmem [resolvable:$true] %s239
          %245 = dma.hbm_to_vmem [thread:$0]  %s5, 2048, %s240, [#allocation6], 128, 128, 8
        $region32: #{tpu_custom_call.1} parent=11 // pred_fallthru
          _
        // Predicated region
        $region33: #{tpu_custom_call.1} parent=11 // pred_check
          %p246 = pneg %p170
        $region34: #{tpu_custom_call.1} parent=11 // pred_check_branch
          %248 = sbr.rel (%p246) target = $region36
        $region35: #{tpu_custom_call.1} parent=11 // pred_region
          _
        $region36: #{tpu_custom_call.1} parent=11 // pred_fallthru
          _
      $region12: #{tpu_custom_call.1} parent=5 // pred_fallthru
        _
      %p249 = scmp.lt.s32.totalorder %s18, 2
      // Predicated region
      $region37: #{tpu_custom_call.1} parent=5 // pred_check
        %p250 = pneg %p249
      $region38: #{tpu_custom_call.1} parent=5 // pred_check_branch
        %252 = sbr.rel (%p250) target = $region40
      $region39: #{tpu_custom_call.1} parent=5 // pred_region
        // Predicated region
        $region41: #{tpu_custom_call.1} parent=39 // pred_check
          %p253 = pneg %p38
        $region42: #{tpu_custom_call.1} parent=39 // pred_check_branch
          %255 = sbr.rel (%p253) target = $region44
        $region43: #{tpu_custom_call.1} parent=39 // pred_region
          %p256 = scmp.lt.s32.totalorder %s18, 1
          %s257 = scalar_select %p256, %s18, 1
          %s258 = smul.addr %s257, 8
          %s259 = scalar_lea.vmem %s0, %s258
        $region44: #{tpu_custom_call.1} parent=39 // pred_fallthru
          _
      $region40: #{tpu_custom_call.1} parent=5 // pred_fallthru
        _
      %p260 = scmp.le.s32.totalorder 1, %s18
      %p261 = scmp.lt.s32.totalorder %s18, 3
      %p262 = pnand %p260, %p261
      %p263 = pneg %p262
      // Predicated region
      $region45: #{tpu_custom_call.1} parent=5 // pred_check
        _
      $region46: #{tpu_custom_call.1} parent=5 // pred_check_branch
        %265 = sbr.rel (%p262) target = $region48
      $region47: #{tpu_custom_call.1} parent=5 // pred_region
        %s266 = ssub.s32 %s18, 1
        // Predicated region
        $region49: #{tpu_custom_call.1} parent=47 // pred_check
          %p267 = pneg %p107
        $region50: #{tpu_custom_call.1} parent=47 // pred_check_branch
          %269 = sbr.rel (%p267) target = $region52
        $region51: #{tpu_custom_call.1} parent=47 // pred_region
          %270 = dma.done [#allocation3], 2048
        $region52: #{tpu_custom_call.1} parent=47 // pred_fallthru
          _
        // Predicated region
        $region53: #{tpu_custom_call.1} parent=47 // pred_check
          %p271 = pneg %p149
        $region54: #{tpu_custom_call.1} parent=47 // pred_check_branch
          %273 = sbr.rel (%p271) target = $region56
        $region55: #{tpu_custom_call.1} parent=47 // pred_region
          %274 = dma.done [#allocation6], 2048
        $region56: #{tpu_custom_call.1} parent=47 // pred_fallthru
          _
        %p275 = scmp.lt.s32.totalorder %s23, 1
        %s276 = scalar_select %p275, %s23, 1
        %s277 = smul.addr %s276, 8
        %s278 = scalar_lea.vmem %s0, %s277
        %p279 = pneg %p44
        %p280 = pneg %p41
        %p281 = pneg %p65
        %p282 = pneg %p62
        %p283 = pneg %p86
        %p284 = pneg %p83
        %p285 = pneg %p107
        %p286 = pneg %p104
        %p287 = pneg %p128
        %p288 = pneg %p125
        %p289 = pneg %p149
        %p290 = pneg %p146
        %p291 = pneg %p170
        %p292 = pneg %p167
        %p293 = pneg %p196
        %p294 = pneg %p193
        %s295 = sand.u32 %s183, 1
        %s296 = scalar_lea.sflag [#allocation4], %s295
        %s297 = sand.u32 %s183, 1
        %s298 = smul.addr %s297, 8
        %s299 = scalar_lea.vmem [#allocation7], %s298
        %p300 = scmp.lt.s32.totalorder %s23, 1
        %s301 = scalar_select %p300, %s23, 1
        %s302 = smul.addr %s301, 8
        %s303 = scalar_lea.vmem %s0, %s302
        %v304 = vld [vmem:[%s1] sm:$0xf]
        %v305 = vld [vmem:[#allocation2] sm:$0xff]
        %v306 = vld [vmem:[#allocation2 + $0x8] sm:$0xff]
        %v307 = vld [vmem:[#allocation2 + $0x10] sm:$0xff]
        %v308 = vld [vmem:[#allocation2 + $0x18] sm:$0xff]
        %v309 = vld [vmem:[#allocation2 + $0x20] sm:$0xff]
        %v310 = vld [vmem:[#allocation2 + $0x28] sm:$0xff]
        %v311 = vld [vmem:[#allocation2 + $0x30] sm:$0xff]
        %v312 = vld [vmem:[#allocation2 + $0x38] sm:$0xff]
        %v313 = vld [vmem:[#allocation2 + $0x40] sm:$0xff]
        %v314 = vld [vmem:[#allocation2 + $0x48] sm:$0xff]
        %v315 = vld [vmem:[#allocation2 + $0x50] sm:$0xff]
        %v316 = vld [vmem:[#allocation2 + $0x58] sm:$0xff]
        %v317 = vld [vmem:[#allocation2 + $0x60] sm:$0xff]
        %v318 = vld [vmem:[#allocation2 + $0x68] sm:$0xff]
        %v319 = vld [vmem:[#allocation2 + $0x70] sm:$0xff]
        %v320 = vld [vmem:[#allocation2 + $0x78] sm:$0xff]
        %v321 = vld [vmem:[#allocation5] sm:$0xff]
        %v322 = vld [vmem:[#allocation5 + $0x8] sm:$0xff]
        %v323 = vld [vmem:[#allocation5 + $0x10] sm:$0xff]
        %v324 = vld [vmem:[#allocation5 + $0x18] sm:$0xff]
        %v325 = vld [vmem:[#allocation5 + $0x20] sm:$0xff]
        %v326 = vld [vmem:[#allocation5 + $0x28] sm:$0xff]
        %v327 = vld [vmem:[#allocation5 + $0x30] sm:$0xff]
        %v328 = vld [vmem:[#allocation5 + $0x38] sm:$0xff]
        %v329 = vld [vmem:[#allocation5 + $0x40] sm:$0xff]
        %v330 = vld [vmem:[#allocation5 + $0x48] sm:$0xff]
        %v331 = vld [vmem:[#allocation5 + $0x50] sm:$0xff]
        %v332 = vld [vmem:[#allocation5 + $0x58] sm:$0xff]
        %v333 = vld [vmem:[#allocation5 + $0x60] sm:$0xff]
        %v334 = vld [vmem:[#allocation5 + $0x68] sm:$0xff]
        %v335 = vld [vmem:[#allocation5 + $0x70] sm:$0xff]
        %v336 = vld [vmem:[#allocation5 + $0x78] sm:$0xff]
        %v337 = vld [vmem:[%s2] sm:$0x1]
        %v338 = vld [vmem:[%s4] sm:$0x1]
        %v339 = vld [vmem:[%s6] sm:$0x1]
        %v340 = vld [vmem:[%s303] sm:$0xff]
        %v342 = vlaneseq
        %v343 = vshrl.u32 %v342, 7
        %v344 = vsub.s32 0, %v343
        %v345 = vrot.slane %v337, %v344
        %vm347 = vcmask 31744
        %v349 = vsel %vm347, %v340, 0
        %vm351 = vcmask 1043456
        %v353 = vsel %vm351, %v304, 0
        %355 = vmatprep.subr.mxu0 0.0
        %356 = vmatpush1.msra.mxu0 0.0
        %357 = vmatprep.subr.mxu0 0.0
        %358 = vmatpush1.msra.mxu0 0.0
        %359 = vmatprep.subr.mxu0 0.0
        %360 = vmatpush1.msra.mxu0 0.0
        %361 = vmatprep.subr.mxu0 0.0
        %362 = vmatpush1.msra.mxu0 0.0
        %363 = vmatprep.subr.mxu0 0.0
        %364 = vmatpush1.msra.mxu0 0.0
        %365 = vmatprep.subr.mxu0 0.0
        %366 = vmatpush1.msra.mxu0 0.0
        %367 = vmatprep.subr.mxu0 0.0
        %368 = vmatpush1.msra.mxu0 0.0
        %369 = vmatprep.subr.mxu0 0.0
        %370 = vmatpush1.msra.mxu0 0.0
        %371 = vmatprep.subr.mxu0 0.0
        %372 = vmatpush1.msra.mxu0 0.0
        %373 = vmatprep.subr.mxu0 0.0
        %374 = vmatpush1.msra.mxu0 0.0
        %375 = vmatprep.subr.mxu0 0.0
        %376 = vmatpush1.msra.mxu0 0.0
        %377 = vmatprep.subr.mxu0 0.0
        %378 = vmatpush1.msra.mxu0 0.0
        %379 = vmatprep.subr.mxu0 0.0
        %380 = vmatpush1.msra.mxu0 0.0
        %381 = vmatprep.subr.mxu0 0.0
        %382 = vmatpush1.msra.mxu0 0.0
        %383 = vmatprep.subr.mxu0 0.0
        %384 = vmatpush1.msra.mxu0 0.0
        %385 = vmatprep.subr.mxu0 0.0
        %v386 = vand.u32 %v353, 4294901760
        %387 = vmatpush1.msra.mxu0 %v386
        %388 = vmatprep.subr.mxu0 0.0
        %389 = vmatpush2.msra.mxu0 0.0
        %390 = vmatprep.subr.mxu0 0.0
        %391 = vmatpush2.msra.mxu0 0.0
        %392 = vmatprep.subr.mxu0 0.0
        %393 = vmatpush2.msra.mxu0 0.0
        %394 = vmatprep.subr.mxu0 0.0
        %395 = vmatpush2.msra.mxu0 0.0
        %396 = vmatprep.subr.mxu0 0.0
        %397 = vmatpush2.msra.mxu0 0.0
        %398 = vmatprep.subr.mxu0 0.0
        %399 = vmatpush2.msra.mxu0 0.0
        %400 = vmatprep.subr.mxu0 0.0
        %401 = vmatpush2.msra.mxu0 0.0
        %402 = vmatprep.subr.mxu0 0.0
        %403 = vmatpush2.msra.mxu0 0.0
        %404 = vmatprep.subr.mxu0 0.0
        %405 = vmatpush2.msra.mxu0 0.0
        %406 = vmatprep.subr.mxu0 0.0
        %407 = vmatpush2.msra.mxu0 0.0
        %408 = vmatprep.subr.mxu0 0.0
        %409 = vmatpush2.msra.mxu0 0.0
        %410 = vmatprep.subr.mxu0 0.0
        %411 = vmatpush2.msra.mxu0 0.0
        %412 = vmatprep.subr.mxu0 0.0
        %413 = vmatpush2.msra.mxu0 0.0
        %414 = vmatprep.subr.mxu0 0.0
        %415 = vmatpush2.msra.mxu0 0.0
        %416 = vmatprep.subr.mxu0 0.0
        %417 = vmatpush2.msra.mxu0 0.0
        %418 = vmatprep.subr.mxu0 0.0
        %419 = vmatpush2.msra.mxu0 0.0
        %420 = vmatprep.mubr.f32.mxu0 0.0
        %v421 = vand.u32 %v349, 4294901760
        %v422 = vsub.f32 %v349, %v421
        %v423 = vand.u32 %v422, 4294901760
        %v424 = vsub.f32 %v422, %v423
        %v425 = vand.u32 %v424, 4294901760
        %426 = vmatmul.mubr.f32.gmra.mxu0 %v425
        %v427 = vpop.f32.mrf.mxu0
        %v428 = vadd.f32 %v345, %v427
        %v429 = vpop.f32.mrf.mxu0
        %430 = vdwg.mxu0
        %431 = vmatprep.subr.mxu0 0.0
        %432 = vmatpush1.msra.mxu0 0.0
        %433 = vmatprep.subr.mxu0 0.0
        %434 = vmatpush1.msra.mxu0 0.0
        %435 = vmatprep.subr.mxu0 0.0
        %436 = vmatpush1.msra.mxu0 0.0
        %437 = vmatprep.subr.mxu0 0.0
        %438 = vmatpush1.msra.mxu0 0.0
        %439 = vmatprep.subr.mxu0 0.0
        %440 = vmatpush1.msra.mxu0 0.0
        %441 = vmatprep.subr.mxu0 0.0
        %442 = vmatpush1.msra.mxu0 0.0
        %443 = vmatprep.subr.mxu0 0.0
        %444 = vmatpush1.msra.mxu0 0.0
        %445 = vmatprep.subr.mxu0 0.0
        %446 = vmatpush1.msra.mxu0 0.0
        %447 = vmatprep.subr.mxu0 0.0
        %448 = vmatpush1.msra.mxu0 0.0
        %449 = vmatprep.subr.mxu0 0.0
        %450 = vmatpush1.msra.mxu0 0.0
        %451 = vmatprep.subr.mxu0 0.0
        %452 = vmatpush1.msra.mxu0 0.0
        %453 = vmatprep.subr.mxu0 0.0
        %454 = vmatpush1.msra.mxu0 0.0
        %455 = vmatprep.subr.mxu0 0.0
        %456 = vmatpush1.msra.mxu0 0.0
        %457 = vmatprep.subr.mxu0 0.0
        %458 = vmatpush1.msra.mxu0 0.0
        %459 = vmatprep.subr.mxu0 0.0
        %460 = vmatpush1.msra.mxu0 0.0
        %461 = vmatprep.subr.mxu0 0.0
        %v462 = vand.u32 %v353, 4294901760
        %v463 = vsub.f32 %v353, %v462
        %v464 = vand.u32 %v463, 4294901760
        %v465 = vsub.f32 %v463, %v464
        %v466 = vand.u32 %v465, 4294901760
        %467 = vmatpush1.msra.mxu0 %v466
        %468 = vmatprep.subr.mxu0 0.0
        %469 = vmatpush2.msra.mxu0 0.0
        %470 = vmatprep.subr.mxu0 0.0
        %471 = vmatpush2.msra.mxu0 0.0
        %472 = vmatprep.subr.mxu0 0.0
        %473 = vmatpush2.msra.mxu0 0.0
        %474 = vmatprep.subr.mxu0 0.0
        %475 = vmatpush2.msra.mxu0 0.0
        %476 = vmatprep.subr.mxu0 0.0
        %477 = vmatpush2.msra.mxu0 0.0
        %478 = vmatprep.subr.mxu0 0.0
        %479 = vmatpush2.msra.mxu0 0.0
        %480 = vmatprep.subr.mxu0 0.0
        %481 = vmatpush2.msra.mxu0 0.0
        %482 = vmatprep.subr.mxu0 0.0
        %483 = vmatpush2.msra.mxu0 0.0
        %484 = vmatprep.subr.mxu0 0.0
        %485 = vmatpush2.msra.mxu0 0.0
        %486 = vmatprep.subr.mxu0 0.0
        %487 = vmatpush2.msra.mxu0 0.0
        %488 = vmatprep.subr.mxu0 0.0
        %489 = vmatpush2.msra.mxu0 0.0
        %490 = vmatprep.subr.mxu0 0.0
        %491 = vmatpush2.msra.mxu0 0.0
        %492 = vmatprep.subr.mxu0 0.0
        %493 = vmatpush2.msra.mxu0 0.0
        %494 = vmatprep.subr.mxu0 0.0
        %495 = vmatpush2.msra.mxu0 0.0
        %496 = vmatprep.subr.mxu0 0.0
        %497 = vmatpush2.msra.mxu0 0.0
        %498 = vmatprep.subr.mxu0 0.0
        %499 = vmatpush2.msra.mxu0 0.0
        %500 = vmatprep.mubr.f32.mxu0 0.0
        %v501 = vand.u32 %v349, 4294901760
        %502 = vmatmul.mubr.f32.gmra.mxu0 %v501
        %v503 = vpop.f32.mrf.mxu0
        %v504 = vadd.f32 %v428, %v503
        %v505 = vpop.f32.mrf.mxu0
        %506 = vdwg.mxu0
        %507 = vmatprep.subr.mxu0 0.0
        %508 = vmatpush1.msra.mxu0 0.0
        %509 = vmatprep.subr.mxu0 0.0
        %510 = vmatpush1.msra.mxu0 0.0
        %511 = vmatprep.subr.mxu0 0.0
        %512 = vmatpush1.msra.mxu0 0.0
        %513 = vmatprep.subr.mxu0 0.0
        %514 = vmatpush1.msra.mxu0 0.0
        %515 = vmatprep.subr.mxu0 0.0
        %516 = vmatpush1.msra.mxu0 0.0
        %517 = vmatprep.subr.mxu0 0.0
        %518 = vmatpush1.msra.mxu0 0.0
        %519 = vmatprep.subr.mxu0 0.0
        %520 = vmatpush1.msra.mxu0 0.0
        %521 = vmatprep.subr.mxu0 0.0
        %522 = vmatpush1.msra.mxu0 0.0
        %523 = vmatprep.subr.mxu0 0.0
        %524 = vmatpush1.msra.mxu0 0.0
        %525 = vmatprep.subr.mxu0 0.0
        %526 = vmatpush1.msra.mxu0 0.0
        %527 = vmatprep.subr.mxu0 0.0
        %528 = vmatpush1.msra.mxu0 0.0
        %529 = vmatprep.subr.mxu0 0.0
        %530 = vmatpush1.msra.mxu0 0.0
        %531 = vmatprep.subr.mxu0 0.0
        %532 = vmatpush1.msra.mxu0 0.0
        %533 = vmatprep.subr.mxu0 0.0
        %534 = vmatpush1.msra.mxu0 0.0
        %535 = vmatprep.subr.mxu0 0.0
        %536 = vmatpush1.msra.mxu0 0.0
        %537 = vmatprep.subr.mxu0 0.0
        %v538 = vand.u32 %v353, 4294901760
        %v539 = vsub.f32 %v353, %v538
        %540 = vmatpush1.msra.mxu0 %v539
        %541 = vmatprep.subr.mxu0 0.0
        %542 = vmatpush2.msra.mxu0 0.0
        %543 = vmatprep.subr.mxu0 0.0
        %544 = vmatpush2.msra.mxu0 0.0
        %545 = vmatprep.subr.mxu0 0.0
        %546 = vmatpush2.msra.mxu0 0.0
        %547 = vmatprep.subr.mxu0 0.0
        %548 = vmatpush2.msra.mxu0 0.0
        %549 = vmatprep.subr.mxu0 0.0
        %550 = vmatpush2.msra.mxu0 0.0
        %551 = vmatprep.subr.mxu0 0.0
        %552 = vmatpush2.msra.mxu0 0.0
        %553 = vmatprep.subr.mxu0 0.0
        %554 = vmatpush2.msra.mxu0 0.0
        %555 = vmatprep.subr.mxu0 0.0
        %556 = vmatpush2.msra.mxu0 0.0
        %557 = vmatprep.subr.mxu0 0.0
        %558 = vmatpush2.msra.mxu0 0.0
        %559 = vmatprep.subr.mxu0 0.0
        %560 = vmatpush2.msra.mxu0 0.0
        %561 = vmatprep.subr.mxu0 0.0
        %562 = vmatpush2.msra.mxu0 0.0
        %563 = vmatprep.subr.mxu0 0.0
        %564 = vmatpush2.msra.mxu0 0.0
        %565 = vmatprep.subr.mxu0 0.0
        %566 = vmatpush2.msra.mxu0 0.0
        %567 = vmatprep.subr.mxu0 0.0
        %568 = vmatpush2.msra.mxu0 0.0
        %569 = vmatprep.subr.mxu0 0.0
        %570 = vmatpush2.msra.mxu0 0.0
        %571 = vmatprep.subr.mxu0 0.0
        %572 = vmatpush2.msra.mxu0 0.0
        %573 = vmatprep.mubr.f32.mxu0 0.0
        %v574 = vand.u32 %v349, 4294901760
        %v575 = vsub.f32 %v349, %v574
        %576 = vmatmul.mubr.f32.gmra.mxu0 %v575
        %v577 = vpop.f32.mrf.mxu0
        %v578 = vadd.f32 %v504, %v577
        %v579 = vpop.f32.mrf.mxu0
        %580 = vdwg.mxu0
        %581 = vmatprep.subr.mxu0 0.0
        %582 = vmatpush1.msra.mxu0 0.0
        %583 = vmatprep.subr.mxu0 0.0
        %584 = vmatpush1.msra.mxu0 0.0
        %585 = vmatprep.subr.mxu0 0.0
        %586 = vmatpush1.msra.mxu0 0.0
        %587 = vmatprep.subr.mxu0 0.0
        %588 = vmatpush1.msra.mxu0 0.0
        %589 = vmatprep.subr.mxu0 0.0
        %590 = vmatpush1.msra.mxu0 0.0
        %591 = vmatprep.subr.mxu0 0.0
        %592 = vmatpush1.msra.mxu0 0.0
        %593 = vmatprep.subr.mxu0 0.0
        %594 = vmatpush1.msra.mxu0 0.0
        %595 = vmatprep.subr.mxu0 0.0
        %596 = vmatpush1.msra.mxu0 0.0
        %597 = vmatprep.subr.mxu0 0.0
        %598 = vmatpush1.msra.mxu0 0.0
        %599 = vmatprep.subr.mxu0 0.0
        %600 = vmatpush1.msra.mxu0 0.0
        %601 = vmatprep.subr.mxu0 0.0
        %602 = vmatpush1.msra.mxu0 0.0
        %603 = vmatprep.subr.mxu0 0.0
        %604 = vmatpush1.msra.mxu0 0.0
        %605 = vmatprep.subr.mxu0 0.0
        %606 = vmatpush1.msra.mxu0 0.0
        %607 = vmatprep.subr.mxu0 0.0
        %608 = vmatpush1.msra.mxu0 0.0
        %609 = vmatprep.subr.mxu0 0.0
        %610 = vmatpush1.msra.mxu0 0.0
        %611 = vmatprep.subr.mxu0 0.0
        %v612 = vand.u32 %v353, 4294901760
        %613 = vmatpush1.msra.mxu0 %v612
        %614 = vmatprep.subr.mxu0 0.0
        %615 = vmatpush2.msra.mxu0 0.0
        %616 = vmatprep.subr.mxu0 0.0
        %617 = vmatpush2.msra.mxu0 0.0
        %618 = vmatprep.subr.mxu0 0.0
        %619 = vmatpush2.msra.mxu0 0.0
        %620 = vmatprep.subr.mxu0 0.0
        %621 = vmatpush2.msra.mxu0 0.0
        %622 = vmatprep.subr.mxu0 0.0
        %623 = vmatpush2.msra.mxu0 0.0
        %624 = vmatprep.subr.mxu0 0.0
        %625 = vmatpush2.msra.mxu0 0.0
        %626 = vmatprep.subr.mxu0 0.0
        %627 = vmatpush2.msra.mxu0 0.0
        %628 = vmatprep.subr.mxu0 0.0
        %629 = vmatpush2.msra.mxu0 0.0
        %630 = vmatprep.subr.mxu0 0.0
        %631 = vmatpush2.msra.mxu0 0.0
        %632 = vmatprep.subr.mxu0 0.0
        %633 = vmatpush2.msra.mxu0 0.0
        %634 = vmatprep.subr.mxu0 0.0
        %635 = vmatpush2.msra.mxu0 0.0
        %636 = vmatprep.subr.mxu0 0.0
        %637 = vmatpush2.msra.mxu0 0.0
        %638 = vmatprep.subr.mxu0 0.0
        %639 = vmatpush2.msra.mxu0 0.0
        %640 = vmatprep.subr.mxu0 0.0
        %641 = vmatpush2.msra.mxu0 0.0
        %642 = vmatprep.subr.mxu0 0.0
        %643 = vmatpush2.msra.mxu0 0.0
        %644 = vmatprep.subr.mxu0 0.0
        %645 = vmatpush2.msra.mxu0 0.0
        %646 = vmatprep.mubr.f32.mxu0 0.0
        %v647 = vand.u32 %v349, 4294901760
        %v648 = vsub.f32 %v349, %v647
        %v649 = vand.u32 %v648, 4294901760
        %650 = vmatmul.mubr.f32.gmra.mxu0 %v649
        %v651 = vpop.f32.mrf.mxu0
        %v652 = vadd.f32 %v578, %v651
        %v653 = vpop.f32.mrf.mxu0
        %654 = vdwg.mxu0
        %655 = vmatprep.subr.mxu0 0.0
        %656 = vmatpush1.msra.mxu0 0.0
        %657 = vmatprep.subr.mxu0 0.0
        %658 = vmatpush1.msra.mxu0 0.0
        %659 = vmatprep.subr.mxu0 0.0
        %660 = vmatpush1.msra.mxu0 0.0
        %661 = vmatprep.subr.mxu0 0.0
        %662 = vmatpush1.msra.mxu0 0.0
        %663 = vmatprep.subr.mxu0 0.0
        %664 = vmatpush1.msra.mxu0 0.0
        %665 = vmatprep.subr.mxu0 0.0
        %666 = vmatpush1.msra.mxu0 0.0
        %667 = vmatprep.subr.mxu0 0.0
        %668 = vmatpush1.msra.mxu0 0.0
        %669 = vmatprep.subr.mxu0 0.0
        %670 = vmatpush1.msra.mxu0 0.0
        %671 = vmatprep.subr.mxu0 0.0
        %672 = vmatpush1.msra.mxu0 0.0
        %673 = vmatprep.subr.mxu0 0.0
        %674 = vmatpush1.msra.mxu0 0.0
        %675 = vmatprep.subr.mxu0 0.0
        %676 = vmatpush1.msra.mxu0 0.0
        %677 = vmatprep.subr.mxu0 0.0
        %678 = vmatpush1.msra.mxu0 0.0
        %679 = vmatprep.subr.mxu0 0.0
        %680 = vmatpush1.msra.mxu0 0.0
        %681 = vmatprep.subr.mxu0 0.0
        %682 = vmatpush1.msra.mxu0 0.0
        %683 = vmatprep.subr.mxu0 0.0
        %684 = vmatpush1.msra.mxu0 0.0
        %685 = vmatprep.subr.mxu0 0.0
        %v686 = vand.u32 %v353, 4294901760
        %v687 = vsub.f32 %v353, %v686
        %v688 = vand.u32 %v687, 4294901760
        %689 = vmatpush1.msra.mxu0 %v688
        %690 = vmatprep.subr.mxu0 0.0
        %691 = vmatpush2.msra.mxu0 0.0
        %692 = vmatprep.subr.mxu0 0.0
        %693 = vmatpush2.msra.mxu0 0.0
        %694 = vmatprep.subr.mxu0 0.0
        %695 = vmatpush2.msra.mxu0 0.0
        %696 = vmatprep.subr.mxu0 0.0
        %697 = vmatpush2.msra.mxu0 0.0
        %698 = vmatprep.subr.mxu0 0.0
        %699 = vmatpush2.msra.mxu0 0.0
        %700 = vmatprep.subr.mxu0 0.0
        %701 = vmatpush2.msra.mxu0 0.0
        %702 = vmatprep.subr.mxu0 0.0
        %703 = vmatpush2.msra.mxu0 0.0
        %704 = vmatprep.subr.mxu0 0.0
        %705 = vmatpush2.msra.mxu0 0.0
        %706 = vmatprep.subr.mxu0 0.0
        %707 = vmatpush2.msra.mxu0 0.0
        %708 = vmatprep.subr.mxu0 0.0
        %709 = vmatpush2.msra.mxu0 0.0
        %710 = vmatprep.subr.mxu0 0.0
        %711 = vmatpush2.msra.mxu0 0.0
        %712 = vmatprep.subr.mxu0 0.0
        %713 = vmatpush2.msra.mxu0 0.0
        %714 = vmatprep.subr.mxu0 0.0
        %715 = vmatpush2.msra.mxu0 0.0
        %716 = vmatprep.subr.mxu0 0.0
        %717 = vmatpush2.msra.mxu0 0.0
        %718 = vmatprep.subr.mxu0 0.0
        %719 = vmatpush2.msra.mxu0 0.0
        %720 = vmatprep.subr.mxu0 0.0
        %721 = vmatpush2.msra.mxu0 0.0
        %722 = vmatprep.mubr.f32.mxu0 0.0
        %v723 = vand.u32 %v349, 4294901760
        %724 = vmatmul.mubr.f32.gmra.mxu0 %v723
        %v725 = vpop.f32.mrf.mxu0
        %v726 = vadd.f32 %v652, %v725
        %v727 = vpop.f32.mrf.mxu0
        %728 = vdwg.mxu0
        %729 = vmatprep.subr.mxu0 0.0
        %730 = vmatpush1.msra.mxu0 0.0
        %731 = vmatprep.subr.mxu0 0.0
        %732 = vmatpush1.msra.mxu0 0.0
        %733 = vmatprep.subr.mxu0 0.0
        %734 = vmatpush1.msra.mxu0 0.0
        %735 = vmatprep.subr.mxu0 0.0
        %736 = vmatpush1.msra.mxu0 0.0
        %737 = vmatprep.subr.mxu0 0.0
        %738 = vmatpush1.msra.mxu0 0.0
        %739 = vmatprep.subr.mxu0 0.0
        %740 = vmatpush1.msra.mxu0 0.0
        %741 = vmatprep.subr.mxu0 0.0
        %742 = vmatpush1.msra.mxu0 0.0
        %743 = vmatprep.subr.mxu0 0.0
        %744 = vmatpush1.msra.mxu0 0.0
        %745 = vmatprep.subr.mxu0 0.0
        %746 = vmatpush1.msra.mxu0 0.0
        %747 = vmatprep.subr.mxu0 0.0
        %748 = vmatpush1.msra.mxu0 0.0
        %749 = vmatprep.subr.mxu0 0.0
        %750 = vmatpush1.msra.mxu0 0.0
        %751 = vmatprep.subr.mxu0 0.0
        %752 = vmatpush1.msra.mxu0 0.0
        %753 = vmatprep.subr.mxu0 0.0
        %754 = vmatpush1.msra.mxu0 0.0
        %755 = vmatprep.subr.mxu0 0.0
        %756 = vmatpush1.msra.mxu0 0.0
        %757 = vmatprep.subr.mxu0 0.0
        %758 = vmatpush1.msra.mxu0 0.0
        %759 = vmatprep.subr.mxu0 0.0
        %v760 = vand.u32 %v353, 4294901760
        %761 = vmatpush1.msra.mxu0 %v760
        %762 = vmatprep.subr.mxu0 0.0
        %763 = vmatpush2.msra.mxu0 0.0
        %764 = vmatprep.subr.mxu0 0.0
        %765 = vmatpush2.msra.mxu0 0.0
        %766 = vmatprep.subr.mxu0 0.0
        %767 = vmatpush2.msra.mxu0 0.0
        %768 = vmatprep.subr.mxu0 0.0
        %769 = vmatpush2.msra.mxu0 0.0
        %770 = vmatprep.subr.mxu0 0.0
        %771 = vmatpush2.msra.mxu0 0.0
        %772 = vmatprep.subr.mxu0 0.0
        %773 = vmatpush2.msra.mxu0 0.0
        %774 = vmatprep.subr.mxu0 0.0
        %775 = vmatpush2.msra.mxu0 0.0
        %776 = vmatprep.subr.mxu0 0.0
        %777 = vmatpush2.msra.mxu0 0.0
        %778 = vmatprep.subr.mxu0 0.0
        %779 = vmatpush2.msra.mxu0 0.0
        %780 = vmatprep.subr.mxu0 0.0
        %781 = vmatpush2.msra.mxu0 0.0
        %782 = vmatprep.subr.mxu0 0.0
        %783 = vmatpush2.msra.mxu0 0.0
        %784 = vmatprep.subr.mxu0 0.0
        %785 = vmatpush2.msra.mxu0 0.0
        %786 = vmatprep.subr.mxu0 0.0
        %787 = vmatpush2.msra.mxu0 0.0
        %788 = vmatprep.subr.mxu0 0.0
        %789 = vmatpush2.msra.mxu0 0.0
        %790 = vmatprep.subr.mxu0 0.0
        %791 = vmatpush2.msra.mxu0 0.0
        %792 = vmatprep.subr.mxu0 0.0
        %793 = vmatpush2.msra.mxu0 0.0
        %794 = vmatprep.mubr.f32.mxu0 0.0
        %v795 = vand.u32 %v349, 4294901760
        %796 = vmatmul.mubr.f32.gmra.mxu0 %v795
        %v797 = vpop.f32.mrf.mxu0
        %v798 = vadd.f32 %v726, %v797
        %v799 = vpop.f32.mrf.mxu0
        %800 = vdwg.mxu0
        %v801 = vmax.f32 %v798, 0.0
        %v803 = vlaneseq
        %v804 = vshrl.u32 %v803, 7
        %v805 = vsub.s32 0, %v804
        %v806 = vrot.slane %v338, %v805
        %808 = vmatprep.subr.mxu0 0.0
        %v809 = vand.u32 %v320, 4294901760
        %810 = vmatpush1.msra.mxu0 %v809
        %811 = vmatprep.subr.mxu0 0.0
        %v812 = vand.u32 %v319, 4294901760
        %813 = vmatpush1.msra.mxu0 %v812
        %814 = vmatprep.subr.mxu0 0.0
        %v815 = vand.u32 %v318, 4294901760
        %816 = vmatpush1.msra.mxu0 %v815
        %817 = vmatprep.subr.mxu0 0.0
        %v818 = vand.u32 %v317, 4294901760
        %819 = vmatpush1.msra.mxu0 %v818
        %820 = vmatprep.subr.mxu0 0.0
        %v821 = vand.u32 %v316, 4294901760
        %822 = vmatpush1.msra.mxu0 %v821
        %823 = vmatprep.subr.mxu0 0.0
        %v824 = vand.u32 %v315, 4294901760
        %825 = vmatpush1.msra.mxu0 %v824
        %826 = vmatprep.subr.mxu0 0.0
        %v827 = vand.u32 %v314, 4294901760
        %828 = vmatpush1.msra.mxu0 %v827
        %829 = vmatprep.subr.mxu0 0.0
        %v830 = vand.u32 %v313, 4294901760
        %831 = vmatpush1.msra.mxu0 %v830
        %832 = vmatprep.subr.mxu0 0.0
        %v833 = vand.u32 %v312, 4294901760
        %834 = vmatpush1.msra.mxu0 %v833
        %835 = vmatprep.subr.mxu0 0.0
        %v836 = vand.u32 %v311, 4294901760
        %837 = vmatpush1.msra.mxu0 %v836
        %838 = vmatprep.subr.mxu0 0.0
        %v839 = vand.u32 %v310, 4294901760
        %840 = vmatpush1.msra.mxu0 %v839
        %841 = vmatprep.subr.mxu0 0.0
        %v842 = vand.u32 %v309, 4294901760
        %843 = vmatpush1.msra.mxu0 %v842
        %844 = vmatprep.subr.mxu0 0.0
        %v845 = vand.u32 %v308, 4294901760
        %846 = vmatpush1.msra.mxu0 %v845
        %847 = vmatprep.subr.mxu0 0.0
        %v848 = vand.u32 %v307, 4294901760
        %849 = vmatpush1.msra.mxu0 %v848
        %850 = vmatprep.subr.mxu0 0.0
        %v851 = vand.u32 %v306, 4294901760
        %852 = vmatpush1.msra.mxu0 %v851
        %853 = vmatprep.subr.mxu0 0.0
        %v854 = vand.u32 %v305, 4294901760
        %855 = vmatpush1.msra.mxu0 %v854
        %856 = vmatprep.subr.mxu0 0.0
        %857 = vmatpush2.msra.mxu0 0.0
        %858 = vmatprep.subr.mxu0 0.0
        %859 = vmatpush2.msra.mxu0 0.0
        %860 = vmatprep.subr.mxu0 0.0
        %861 = vmatpush2.msra.mxu0 0.0
        %862 = vmatprep.subr.mxu0 0.0
        %863 = vmatpush2.msra.mxu0 0.0
        %864 = vmatprep.subr.mxu0 0.0
        %865 = vmatpush2.msra.mxu0 0.0
        %866 = vmatprep.subr.mxu0 0.0
        %867 = vmatpush2.msra.mxu0 0.0
        %868 = vmatprep.subr.mxu0 0.0
        %869 = vmatpush2.msra.mxu0 0.0
        %870 = vmatprep.subr.mxu0 0.0
        %871 = vmatpush2.msra.mxu0 0.0
        %872 = vmatprep.subr.mxu0 0.0
        %873 = vmatpush2.msra.mxu0 0.0
        %874 = vmatprep.subr.mxu0 0.0
        %875 = vmatpush2.msra.mxu0 0.0
        %876 = vmatprep.subr.mxu0 0.0
        %877 = vmatpush2.msra.mxu0 0.0
        %878 = vmatprep.subr.mxu0 0.0
        %879 = vmatpush2.msra.mxu0 0.0
        %880 = vmatprep.subr.mxu0 0.0
        %881 = vmatpush2.msra.mxu0 0.0
        %882 = vmatprep.subr.mxu0 0.0
        %883 = vmatpush2.msra.mxu0 0.0
        %884 = vmatprep.subr.mxu0 0.0
        %885 = vmatpush2.msra.mxu0 0.0
        %886 = vmatprep.subr.mxu0 0.0
        %887 = vmatpush2.msra.mxu0 0.0
        %888 = vmatprep.mubr.f32.mxu0 0.0
        %v889 = vand.u32 %v801, 4294901760
        %v890 = vsub.f32 %v801, %v889
        %v891 = vand.u32 %v890, 4294901760
        %v892 = vsub.f32 %v890, %v891
        %v893 = vand.u32 %v892, 4294901760
        %894 = vmatmul.mubr.f32.gmra.mxu0 %v893
        %v895 = vpop.f32.mrf.mxu0
        %v896 = vadd.f32 %v806, %v895
        %v897 = vpop.f32.mrf.mxu0
        %898 = vdwg.mxu0
        %899 = vmatprep.subr.mxu0 0.0
        %v900 = vand.u32 %v320, 4294901760
        %v901 = vsub.f32 %v320, %v900
        %v902 = vand.u32 %v901, 4294901760
        %v903 = vsub.f32 %v901, %v902
        %v904 = vand.u32 %v903, 4294901760
        %905 = vmatpush1.msra.mxu0 %v904
        %906 = vmatprep.subr.mxu0 0.0
        %v907 = vand.u32 %v319, 4294901760
        %v908 = vsub.f32 %v319, %v907
        %v909 = vand.u32 %v908, 4294901760
        %v910 = vsub.f32 %v908, %v909
        %v911 = vand.u32 %v910, 4294901760
        %912 = vmatpush1.msra.mxu0 %v911
        %913 = vmatprep.subr.mxu0 0.0
        %v914 = vand.u32 %v318, 4294901760
        %v915 = vsub.f32 %v318, %v914
        %v916 = vand.u32 %v915, 4294901760
        %v917 = vsub.f32 %v915, %v916
        %v918 = vand.u32 %v917, 4294901760
        %919 = vmatpush1.msra.mxu0 %v918
        %920 = vmatprep.subr.mxu0 0.0
        %v921 = vand.u32 %v317, 4294901760
        %v922 = vsub.f32 %v317, %v921
        %v923 = vand.u32 %v922, 4294901760
        %v924 = vsub.f32 %v922, %v923
        %v925 = vand.u32 %v924, 4294901760
        %926 = vmatpush1.msra.mxu0 %v925
        %927 = vmatprep.subr.mxu0 0.0
        %v928 = vand.u32 %v316, 4294901760
        %v929 = vsub.f32 %v316, %v928
        %v930 = vand.u32 %v929, 4294901760
        %v931 = vsub.f32 %v929, %v930
        %v932 = vand.u32 %v931, 4294901760
        %933 = vmatpush1.msra.mxu0 %v932
        %934 = vmatprep.subr.mxu0 0.0
        %v935 = vand.u32 %v315, 4294901760
        %v936 = vsub.f32 %v315, %v935
        %v937 = vand.u32 %v936, 4294901760
        %v938 = vsub.f32 %v936, %v937
        %v939 = vand.u32 %v938, 4294901760
        %940 = vmatpush1.msra.mxu0 %v939
        %941 = vmatprep.subr.mxu0 0.0
        %v942 = vand.u32 %v314, 4294901760
        %v943 = vsub.f32 %v314, %v942
        %v944 = vand.u32 %v943, 4294901760
        %v945 = vsub.f32 %v943, %v944
        %v946 = vand.u32 %v945, 4294901760
        %947 = vmatpush1.msra.mxu0 %v946
        %948 = vmatprep.subr.mxu0 0.0
        %v949 = vand.u32 %v313, 4294901760
        %v950 = vsub.f32 %v313, %v949
        %v951 = vand.u32 %v950, 4294901760
        %v952 = vsub.f32 %v950, %v951
        %v953 = vand.u32 %v952, 4294901760
        %954 = vmatpush1.msra.mxu0 %v953
        %955 = vmatprep.subr.mxu0 0.0
        %v956 = vand.u32 %v312, 4294901760
        %v957 = vsub.f32 %v312, %v956
        %v958 = vand.u32 %v957, 4294901760
        %v959 = vsub.f32 %v957, %v958
        %v960 = vand.u32 %v959, 4294901760
        %961 = vmatpush1.msra.mxu0 %v960
        %962 = vmatprep.subr.mxu0 0.0
        %v963 = vand.u32 %v311, 4294901760
        %v964 = vsub.f32 %v311, %v963
        %v965 = vand.u32 %v964, 4294901760
        %v966 = vsub.f32 %v964, %v965
        %v967 = vand.u32 %v966, 4294901760
        %968 = vmatpush1.msra.mxu0 %v967
        %969 = vmatprep.subr.mxu0 0.0
        %v970 = vand.u32 %v310, 4294901760
        %v971 = vsub.f32 %v310, %v970
        %v972 = vand.u32 %v971, 4294901760
        %v973 = vsub.f32 %v971, %v972
        %v974 = vand.u32 %v973, 4294901760
        %975 = vmatpush1.msra.mxu0 %v974
        %976 = vmatprep.subr.mxu0 0.0
        %v977 = vand.u32 %v309, 4294901760
        %v978 = vsub.f32 %v309, %v977
        %v979 = vand.u32 %v978, 4294901760
        %v980 = vsub.f32 %v978, %v979
        %v981 = vand.u32 %v980, 4294901760
        %982 = vmatpush1.msra.mxu0 %v981
        %983 = vmatprep.subr.mxu0 0.0
        %v984 = vand.u32 %v308, 4294901760
        %v985 = vsub.f32 %v308, %v984
        %v986 = vand.u32 %v985, 4294901760
        %v987 = vsub.f32 %v985, %v986
        %v988 = vand.u32 %v987, 4294901760
        %989 = vmatpush1.msra.mxu0 %v988
        %990 = vmatprep.subr.mxu0 0.0
        %v991 = vand.u32 %v307, 4294901760
        %v992 = vsub.f32 %v307, %v991
        %v993 = vand.u32 %v992, 4294901760
        %v994 = vsub.f32 %v992, %v993
        %v995 = vand.u32 %v994, 4294901760
        %996 = vmatpush1.msra.mxu0 %v995
        %997 = vmatprep.subr.mxu0 0.0
        %v998 = vand.u32 %v306, 4294901760
        %v999 = vsub.f32 %v306, %v998
        %v1000 = vand.u32 %v999, 4294901760
        %v1001 = vsub.f32 %v999, %v1000
        %v1002 = vand.u32 %v1001, 4294901760
        %1003 = vmatpush1.msra.mxu0 %v1002
        %1004 = vmatprep.subr.mxu0 0.0
        %v1005 = vand.u32 %v305, 4294901760
        %v1006 = vsub.f32 %v305, %v1005
        %v1007 = vand.u32 %v1006, 4294901760
        %v1008 = vsub.f32 %v1006, %v1007
        %v1009 = vand.u32 %v1008, 4294901760
        %1010 = vmatpush1.msra.mxu0 %v1009
        %1011 = vmatprep.subr.mxu0 0.0
        %1012 = vmatpush2.msra.mxu0 0.0
        %1013 = vmatprep.subr.mxu0 0.0
        %1014 = vmatpush2.msra.mxu0 0.0
        %1015 = vmatprep.subr.mxu0 0.0
        %1016 = vmatpush2.msra.mxu0 0.0
        %1017 = vmatprep.subr.mxu0 0.0
        %1018 = vmatpush2.msra.mxu0 0.0
        %1019 = vmatprep.subr.mxu0 0.0
        %1020 = vmatpush2.msra.mxu0 0.0
        %1021 = vmatprep.subr.mxu0 0.0
        %1022 = vmatpush2.msra.mxu0 0.0
        %1023 = vmatprep.subr.mxu0 0.0
        %1024 = vmatpush2.msra.mxu0 0.0
        %1025 = vmatprep.subr.mxu0 0.0
        %1026 = vmatpush2.msra.mxu0 0.0
        %1027 = vmatprep.subr.mxu0 0.0
        %1028 = vmatpush2.msra.mxu0 0.0
        %1029 = vmatprep.subr.mxu0 0.0
        %1030 = vmatpush2.msra.mxu0 0.0
        %1031 = vmatprep.subr.mxu0 0.0
        %1032 = vmatpush2.msra.mxu0 0.0
        %1033 = vmatprep.subr.mxu0 0.0
        %1034 = vmatpush2.msra.mxu0 0.0
        %1035 = vmatprep.subr.mxu0 0.0
        %1036 = vmatpush2.msra.mxu0 0.0
        %1037 = vmatprep.subr.mxu0 0.0
        %1038 = vmatpush2.msra.mxu0 0.0
        %1039 = vmatprep.subr.mxu0 0.0
        %1040 = vmatpush2.msra.mxu0 0.0
        %1041 = vmatprep.subr.mxu0 0.0
        %1042 = vmatpush2.msra.mxu0 0.0
        %1043 = vmatprep.mubr.f32.mxu0 0.0
        %v1044 = vand.u32 %v801, 4294901760
        %1045 = vmatmul.mubr.f32.gmra.mxu0 %v1044
        %v1046 = vpop.f32.mrf.mxu0
        %v1047 = vadd.f32 %v896, %v1046
        %v1048 = vpop.f32.mrf.mxu0
        %1049 = vdwg.mxu0
        %1050 = vmatprep.subr.mxu0 0.0
        %v1051 = vand.u32 %v320, 4294901760
        %v1052 = vsub.f32 %v320, %v1051
        %1053 = vmatpush1.msra.mxu0 %v1052
        %1054 = vmatprep.subr.mxu0 0.0
        %v1055 = vand.u32 %v319, 4294901760
        %v1056 = vsub.f32 %v319, %v1055
        %1057 = vmatpush1.msra.mxu0 %v1056
        %1058 = vmatprep.subr.mxu0 0.0
        %v1059 = vand.u32 %v318, 4294901760
        %v1060 = vsub.f32 %v318, %v1059
        %1061 = vmatpush1.msra.mxu0 %v1060
        %1062 = vmatprep.subr.mxu0 0.0
        %v1063 = vand.u32 %v317, 4294901760
        %v1064 = vsub.f32 %v317, %v1063
        %1065 = vmatpush1.msra.mxu0 %v1064
        %1066 = vmatprep.subr.mxu0 0.0
        %v1067 = vand.u32 %v316, 4294901760
        %v1068 = vsub.f32 %v316, %v1067
        %1069 = vmatpush1.msra.mxu0 %v1068
        %1070 = vmatprep.subr.mxu0 0.0
        %v1071 = vand.u32 %v315, 4294901760
        %v1072 = vsub.f32 %v315, %v1071
        %1073 = vmatpush1.msra.mxu0 %v1072
        %1074 = vmatprep.subr.mxu0 0.0
        %v1075 = vand.u32 %v314, 4294901760
        %v1076 = vsub.f32 %v314, %v1075
        %1077 = vmatpush1.msra.mxu0 %v1076
        %1078 = vmatprep.subr.mxu0 0.0
        %v1079 = vand.u32 %v313, 4294901760
        %v1080 = vsub.f32 %v313, %v1079
        %1081 = vmatpush1.msra.mxu0 %v1080
        %1082 = vmatprep.subr.mxu0 0.0
        %v1083 = vand.u32 %v312, 4294901760
        %v1084 = vsub.f32 %v312, %v1083
        %1085 = vmatpush1.msra.mxu0 %v1084
        %1086 = vmatprep.subr.mxu0 0.0
        %v1087 = vand.u32 %v311, 4294901760
        %v1088 = vsub.f32 %v311, %v1087
        %1089 = vmatpush1.msra.mxu0 %v1088
        %1090 = vmatprep.subr.mxu0 0.0
        %v1091 = vand.u32 %v310, 4294901760
        %v1092 = vsub.f32 %v310, %v1091
        %1093 = vmatpush1.msra.mxu0 %v1092
        %1094 = vmatprep.subr.mxu0 0.0
        %v1095 = vand.u32 %v309, 4294901760
        %v1096 = vsub.f32 %v309, %v1095
        %1097 = vmatpush1.msra.mxu0 %v1096
        %1098 = vmatprep.subr.mxu0 0.0
        %v1099 = vand.u32 %v308, 4294901760
        %v1100 = vsub.f32 %v308, %v1099
        %1101 = vmatpush1.msra.mxu0 %v1100
        %1102 = vmatprep.subr.mxu0 0.0
        %v1103 = vand.u32 %v307, 4294901760
        %v1104 = vsub.f32 %v307, %v1103
        %1105 = vmatpush1.msra.mxu0 %v1104
        %1106 = vmatprep.subr.mxu0 0.0
        %v1107 = vand.u32 %v306, 4294901760
        %v1108 = vsub.f32 %v306, %v1107
        %1109 = vmatpush1.msra.mxu0 %v1108
        %1110 = vmatprep.subr.mxu0 0.0
        %v1111 = vand.u32 %v305, 4294901760
        %v1112 = vsub.f32 %v305, %v1111
        %1113 = vmatpush1.msra.mxu0 %v1112
        %1114 = vmatprep.subr.mxu0 0.0
        %1115 = vmatpush2.msra.mxu0 0.0
        %1116 = vmatprep.subr.mxu0 0.0
        %1117 = vmatpush2.msra.mxu0 0.0
        %1118 = vmatprep.subr.mxu0 0.0
        %1119 = vmatpush2.msra.mxu0 0.0
        %1120 = vmatprep.subr.mxu0 0.0
        %1121 = vmatpush2.msra.mxu0 0.0
        %1122 = vmatprep.subr.mxu0 0.0
        %1123 = vmatpush2.msra.mxu0 0.0
        %1124 = vmatprep.subr.mxu0 0.0
        %1125 = vmatpush2.msra.mxu0 0.0
        %1126 = vmatprep.subr.mxu0 0.0
        %1127 = vmatpush2.msra.mxu0 0.0
        %1128 = vmatprep.subr.mxu0 0.0
        %1129 = vmatpush2.msra.mxu0 0.0
        %1130 = vmatprep.subr.mxu0 0.0
        %1131 = vmatpush2.msra.mxu0 0.0
        %1132 = vmatprep.subr.mxu0 0.0
        %1133 = vmatpush2.msra.mxu0 0.0
        %1134 = vmatprep.subr.mxu0 0.0
        %1135 = vmatpush2.msra.mxu0 0.0
        %1136 = vmatprep.subr.mxu0 0.0
        %1137 = vmatpush2.msra.mxu0 0.0
        %1138 = vmatprep.subr.mxu0 0.0
        %1139 = vmatpush2.msra.mxu0 0.0
        %1140 = vmatprep.subr.mxu0 0.0
        %1141 = vmatpush2.msra.mxu0 0.0
        %1142 = vmatprep.subr.mxu0 0.0
        %1143 = vmatpush2.msra.mxu0 0.0
        %1144 = vmatprep.subr.mxu0 0.0
        %1145 = vmatpush2.msra.mxu0 0.0
        %1146 = vmatprep.mubr.f32.mxu0 0.0
        %v1147 = vand.u32 %v801, 4294901760
        %v1148 = vsub.f32 %v801, %v1147
        %1149 = vmatmul.mubr.f32.gmra.mxu0 %v1148
        %v1150 = vpop.f32.mrf.mxu0
        %v1151 = vadd.f32 %v1047, %v1150
        %v1152 = vpop.f32.mrf.mxu0
        %1153 = vdwg.mxu0
        %1154 = vmatprep.subr.mxu0 0.0
        %v1155 = vand.u32 %v320, 4294901760
        %1156 = vmatpush1.msra.mxu0 %v1155
        %1157 = vmatprep.subr.mxu0 0.0
        %v1158 = vand.u32 %v319, 4294901760
        %1159 = vmatpush1.msra.mxu0 %v1158
        %1160 = vmatprep.subr.mxu0 0.0
        %v1161 = vand.u32 %v318, 4294901760
        %1162 = vmatpush1.msra.mxu0 %v1161
        %1163 = vmatprep.subr.mxu0 0.0
        %v1164 = vand.u32 %v317, 4294901760
        %1165 = vmatpush1.msra.mxu0 %v1164
        %1166 = vmatprep.subr.mxu0 0.0
        %v1167 = vand.u32 %v316, 4294901760
        %1168 = vmatpush1.msra.mxu0 %v1167
        %1169 = vmatprep.subr.mxu0 0.0
        %v1170 = vand.u32 %v315, 4294901760
        %1171 = vmatpush1.msra.mxu0 %v1170
        %1172 = vmatprep.subr.mxu0 0.0
        %v1173 = vand.u32 %v314, 4294901760
        %1174 = vmatpush1.msra.mxu0 %v1173
        %1175 = vmatprep.subr.mxu0 0.0
        %v1176 = vand.u32 %v313, 4294901760
        %1177 = vmatpush1.msra.mxu0 %v1176
        %1178 = vmatprep.subr.mxu0 0.0
        %v1179 = vand.u32 %v312, 4294901760
        %1180 = vmatpush1.msra.mxu0 %v1179
        %1181 = vmatprep.subr.mxu0 0.0
        %v1182 = vand.u32 %v311, 4294901760
        %1183 = vmatpush1.msra.mxu0 %v1182
        %1184 = vmatprep.subr.mxu0 0.0
        %v1185 = vand.u32 %v310, 4294901760
        %1186 = vmatpush1.msra.mxu0 %v1185
        %1187 = vmatprep.subr.mxu0 0.0
        %v1188 = vand.u32 %v309, 4294901760
        %1189 = vmatpush1.msra.mxu0 %v1188
        %1190 = vmatprep.subr.mxu0 0.0
        %v1191 = vand.u32 %v308, 4294901760
        %1192 = vmatpush1.msra.mxu0 %v1191
        %1193 = vmatprep.subr.mxu0 0.0
        %v1194 = vand.u32 %v307, 4294901760
        %1195 = vmatpush1.msra.mxu0 %v1194
        %1196 = vmatprep.subr.mxu0 0.0
        %v1197 = vand.u32 %v306, 4294901760
        %1198 = vmatpush1.msra.mxu0 %v1197
        %1199 = vmatprep.subr.mxu0 0.0
        %v1200 = vand.u32 %v305, 4294901760
        %1201 = vmatpush1.msra.mxu0 %v1200
        %1202 = vmatprep.subr.mxu0 0.0
        %1203 = vmatpush2.msra.mxu0 0.0
        %1204 = vmatprep.subr.mxu0 0.0
        %1205 = vmatpush2.msra.mxu0 0.0
        %1206 = vmatprep.subr.mxu0 0.0
        %1207 = vmatpush2.msra.mxu0 0.0
        %1208 = vmatprep.subr.mxu0 0.0
        %1209 = vmatpush2.msra.mxu0 0.0
        %1210 = vmatprep.subr.mxu0 0.0
        %1211 = vmatpush2.msra.mxu0 0.0
        %1212 = vmatprep.subr.mxu0 0.0
        %1213 = vmatpush2.msra.mxu0 0.0
        %1214 = vmatprep.subr.mxu0 0.0
        %1215 = vmatpush2.msra.mxu0 0.0
        %1216 = vmatprep.subr.mxu0 0.0
        %1217 = vmatpush2.msra.mxu0 0.0
        %1218 = vmatprep.subr.mxu0 0.0
        %1219 = vmatpush2.msra.mxu0 0.0
        %1220 = vmatprep.subr.mxu0 0.0
        %1221 = vmatpush2.msra.mxu0 0.0
        %1222 = vmatprep.subr.mxu0 0.0
        %1223 = vmatpush2.msra.mxu0 0.0
        %1224 = vmatprep.subr.mxu0 0.0
        %1225 = vmatpush2.msra.mxu0 0.0
        %1226 = vmatprep.subr.mxu0 0.0
        %1227 = vmatpush2.msra.mxu0 0.0
        %1228 = vmatprep.subr.mxu0 0.0
        %1229 = vmatpush2.msra.mxu0 0.0
        %1230 = vmatprep.subr.mxu0 0.0
        %1231 = vmatpush2.msra.mxu0 0.0
        %1232 = vmatprep.subr.mxu0 0.0
        %1233 = vmatpush2.msra.mxu0 0.0
        %1234 = vmatprep.mubr.f32.mxu0 0.0
        %v1235 = vand.u32 %v801, 4294901760
        %v1236 = vsub.f32 %v801, %v1235
        %v1237 = vand.u32 %v1236, 4294901760
        %1238 = vmatmul.mubr.f32.gmra.mxu0 %v1237
        %v1239 = vpop.f32.mrf.mxu0
        %v1240 = vadd.f32 %v1151, %v1239
        %v1241 = vpop.f32.mrf.mxu0
        %1242 = vdwg.mxu0
        %1243 = vmatprep.subr.mxu0 0.0
        %v1244 = vand.u32 %v320, 4294901760
        %v1245 = vsub.f32 %v320, %v1244
        %v1246 = vand.u32 %v1245, 4294901760
        %1247 = vmatpush1.msra.mxu0 %v1246
        %1248 = vmatprep.subr.mxu0 0.0
        %v1249 = vand.u32 %v319, 4294901760
        %v1250 = vsub.f32 %v319, %v1249
        %v1251 = vand.u32 %v1250, 4294901760
        %1252 = vmatpush1.msra.mxu0 %v1251
        %1253 = vmatprep.subr.mxu0 0.0
        %v1254 = vand.u32 %v318, 4294901760
        %v1255 = vsub.f32 %v318, %v1254
        %v1256 = vand.u32 %v1255, 4294901760
        %1257 = vmatpush1.msra.mxu0 %v1256
        %1258 = vmatprep.subr.mxu0 0.0
        %v1259 = vand.u32 %v317, 4294901760
        %v1260 = vsub.f32 %v317, %v1259
        %v1261 = vand.u32 %v1260, 4294901760
        %1262 = vmatpush1.msra.mxu0 %v1261
        %1263 = vmatprep.subr.mxu0 0.0
        %v1264 = vand.u32 %v316, 4294901760
        %v1265 = vsub.f32 %v316, %v1264
        %v1266 = vand.u32 %v1265, 4294901760
        %1267 = vmatpush1.msra.mxu0 %v1266
        %1268 = vmatprep.subr.mxu0 0.0
        %v1269 = vand.u32 %v315, 4294901760
        %v1270 = vsub.f32 %v315, %v1269
        %v1271 = vand.u32 %v1270, 4294901760
        %1272 = vmatpush1.msra.mxu0 %v1271
        %1273 = vmatprep.subr.mxu0 0.0
        %v1274 = vand.u32 %v314, 4294901760
        %v1275 = vsub.f32 %v314, %v1274
        %v1276 = vand.u32 %v1275, 4294901760
        %1277 = vmatpush1.msra.mxu0 %v1276
        %1278 = vmatprep.subr.mxu0 0.0
        %v1279 = vand.u32 %v313, 4294901760
        %v1280 = vsub.f32 %v313, %v1279
        %v1281 = vand.u32 %v1280, 4294901760
        %1282 = vmatpush1.msra.mxu0 %v1281
        %1283 = vmatprep.subr.mxu0 0.0
        %v1284 = vand.u32 %v312, 4294901760
        %v1285 = vsub.f32 %v312, %v1284
        %v1286 = vand.u32 %v1285, 4294901760
        %1287 = vmatpush1.msra.mxu0 %v1286
        %1288 = vmatprep.subr.mxu0 0.0
        %v1289 = vand.u32 %v311, 4294901760
        %v1290 = vsub.f32 %v311, %v1289
        %v1291 = vand.u32 %v1290, 4294901760
        %1292 = vmatpush1.msra.mxu0 %v1291
        %1293 = vmatprep.subr.mxu0 0.0
        %v1294 = vand.u32 %v310, 4294901760
        %v1295 = vsub.f32 %v310, %v1294
        %v1296 = vand.u32 %v1295, 4294901760
        %1297 = vmatpush1.msra.mxu0 %v1296
        %1298 = vmatprep.subr.mxu0 0.0
        %v1299 = vand.u32 %v309, 4294901760
        %v1300 = vsub.f32 %v309, %v1299
        %v1301 = vand.u32 %v1300, 4294901760
        %1302 = vmatpush1.msra.mxu0 %v1301
        %1303 = vmatprep.subr.mxu0 0.0
        %v1304 = vand.u32 %v308, 4294901760
        %v1305 = vsub.f32 %v308, %v1304
        %v1306 = vand.u32 %v1305, 4294901760
        %1307 = vmatpush1.msra.mxu0 %v1306
        %1308 = vmatprep.subr.mxu0 0.0
        %v1309 = vand.u32 %v307, 4294901760
        %v1310 = vsub.f32 %v307, %v1309
        %v1311 = vand.u32 %v1310, 4294901760
        %1312 = vmatpush1.msra.mxu0 %v1311
        %1313 = vmatprep.subr.mxu0 0.0
        %v1314 = vand.u32 %v306, 4294901760
        %v1315 = vsub.f32 %v306, %v1314
        %v1316 = vand.u32 %v1315, 4294901760
        %1317 = vmatpush1.msra.mxu0 %v1316
        %1318 = vmatprep.subr.mxu0 0.0
        %v1319 = vand.u32 %v305, 4294901760
        %v1320 = vsub.f32 %v305, %v1319
        %v1321 = vand.u32 %v1320, 4294901760
        %1322 = vmatpush1.msra.mxu0 %v1321
        %1323 = vmatprep.subr.mxu0 0.0
        %1324 = vmatpush2.msra.mxu0 0.0
        %1325 = vmatprep.subr.mxu0 0.0
        %1326 = vmatpush2.msra.mxu0 0.0
        %1327 = vmatprep.subr.mxu0 0.0
        %1328 = vmatpush2.msra.mxu0 0.0
        %1329 = vmatprep.subr.mxu0 0.0
        %1330 = vmatpush2.msra.mxu0 0.0
        %1331 = vmatprep.subr.mxu0 0.0
        %1332 = vmatpush2.msra.mxu0 0.0
        %1333 = vmatprep.subr.mxu0 0.0
        %1334 = vmatpush2.msra.mxu0 0.0
        %1335 = vmatprep.subr.mxu0 0.0
        %1336 = vmatpush2.msra.mxu0 0.0
        %1337 = vmatprep.subr.mxu0 0.0
        %1338 = vmatpush2.msra.mxu0 0.0
        %1339 = vmatprep.subr.mxu0 0.0
        %1340 = vmatpush2.msra.mxu0 0.0
        %1341 = vmatprep.subr.mxu0 0.0
        %1342 = vmatpush2.msra.mxu0 0.0
        %1343 = vmatprep.subr.mxu0 0.0
        %1344 = vmatpush2.msra.mxu0 0.0
        %1345 = vmatprep.subr.mxu0 0.0
        %1346 = vmatpush2.msra.mxu0 0.0
        %1347 = vmatprep.subr.mxu0 0.0
        %1348 = vmatpush2.msra.mxu0 0.0
        %1349 = vmatprep.subr.mxu0 0.0
        %1350 = vmatpush2.msra.mxu0 0.0
        %1351 = vmatprep.subr.mxu0 0.0
        %1352 = vmatpush2.msra.mxu0 0.0
        %1353 = vmatprep.subr.mxu0 0.0
        %1354 = vmatpush2.msra.mxu0 0.0
        %1355 = vmatprep.mubr.f32.mxu0 0.0
        %v1356 = vand.u32 %v801, 4294901760
        %1357 = vmatmul.mubr.f32.gmra.mxu0 %v1356
        %v1358 = vpop.f32.mrf.mxu0
        %v1359 = vadd.f32 %v1240, %v1358
        %v1360 = vpop.f32.mrf.mxu0
        %1361 = vdwg.mxu0
        %1362 = vmatprep.subr.mxu0 0.0
        %v1363 = vand.u32 %v320, 4294901760
        %1364 = vmatpush1.msra.mxu0 %v1363
        %1365 = vmatprep.subr.mxu0 0.0
        %v1366 = vand.u32 %v319, 4294901760
        %1367 = vmatpush1.msra.mxu0 %v1366
        %1368 = vmatprep.subr.mxu0 0.0
        %v1369 = vand.u32 %v318, 4294901760
        %1370 = vmatpush1.msra.mxu0 %v1369
        %1371 = vmatprep.subr.mxu0 0.0
        %v1372 = vand.u32 %v317, 4294901760
        %1373 = vmatpush1.msra.mxu0 %v1372
        %1374 = vmatprep.subr.mxu0 0.0
        %v1375 = vand.u32 %v316, 4294901760
        %1376 = vmatpush1.msra.mxu0 %v1375
        %1377 = vmatprep.subr.mxu0 0.0
        %v1378 = vand.u32 %v315, 4294901760
        %1379 = vmatpush1.msra.mxu0 %v1378
        %1380 = vmatprep.subr.mxu0 0.0
        %v1381 = vand.u32 %v314, 4294901760
        %1382 = vmatpush1.msra.mxu0 %v1381
        %1383 = vmatprep.subr.mxu0 0.0
        %v1384 = vand.u32 %v313, 4294901760
        %1385 = vmatpush1.msra.mxu0 %v1384
        %1386 = vmatprep.subr.mxu0 0.0
        %v1387 = vand.u32 %v312, 4294901760
        %1388 = vmatpush1.msra.mxu0 %v1387
        %1389 = vmatprep.subr.mxu0 0.0
        %v1390 = vand.u32 %v311, 4294901760
        %1391 = vmatpush1.msra.mxu0 %v1390
        %1392 = vmatprep.subr.mxu0 0.0
        %v1393 = vand.u32 %v310, 4294901760
        %1394 = vmatpush1.msra.mxu0 %v1393
        %1395 = vmatprep.subr.mxu0 0.0
        %v1396 = vand.u32 %v309, 4294901760
        %1397 = vmatpush1.msra.mxu0 %v1396
        %1398 = vmatprep.subr.mxu0 0.0
        %v1399 = vand.u32 %v308, 4294901760
        %1400 = vmatpush1.msra.mxu0 %v1399
        %1401 = vmatprep.subr.mxu0 0.0
        %v1402 = vand.u32 %v307, 4294901760
        %1403 = vmatpush1.msra.mxu0 %v1402
        %1404 = vmatprep.subr.mxu0 0.0
        %v1405 = vand.u32 %v306, 4294901760
        %1406 = vmatpush1.msra.mxu0 %v1405
        %1407 = vmatprep.subr.mxu0 0.0
        %v1408 = vand.u32 %v305, 4294901760
        %1409 = vmatpush1.msra.mxu0 %v1408
        %1410 = vmatprep.subr.mxu0 0.0
        %1411 = vmatpush2.msra.mxu0 0.0
        %1412 = vmatprep.subr.mxu0 0.0
        %1413 = vmatpush2.msra.mxu0 0.0
        %1414 = vmatprep.subr.mxu0 0.0
        %1415 = vmatpush2.msra.mxu0 0.0
        %1416 = vmatprep.subr.mxu0 0.0
        %1417 = vmatpush2.msra.mxu0 0.0
        %1418 = vmatprep.subr.mxu0 0.0
        %1419 = vmatpush2.msra.mxu0 0.0
        %1420 = vmatprep.subr.mxu0 0.0
        %1421 = vmatpush2.msra.mxu0 0.0
        %1422 = vmatprep.subr.mxu0 0.0
        %1423 = vmatpush2.msra.mxu0 0.0
        %1424 = vmatprep.subr.mxu0 0.0
        %1425 = vmatpush2.msra.mxu0 0.0
        %1426 = vmatprep.subr.mxu0 0.0
        %1427 = vmatpush2.msra.mxu0 0.0
        %1428 = vmatprep.subr.mxu0 0.0
        %1429 = vmatpush2.msra.mxu0 0.0
        %1430 = vmatprep.subr.mxu0 0.0
        %1431 = vmatpush2.msra.mxu0 0.0
        %1432 = vmatprep.subr.mxu0 0.0
        %1433 = vmatpush2.msra.mxu0 0.0
        %1434 = vmatprep.subr.mxu0 0.0
        %1435 = vmatpush2.msra.mxu0 0.0
        %1436 = vmatprep.subr.mxu0 0.0
        %1437 = vmatpush2.msra.mxu0 0.0
        %1438 = vmatprep.subr.mxu0 0.0
        %1439 = vmatpush2.msra.mxu0 0.0
        %1440 = vmatprep.subr.mxu0 0.0
        %1441 = vmatpush2.msra.mxu0 0.0
        %1442 = vmatprep.mubr.f32.mxu0 0.0
        %v1443 = vand.u32 %v801, 4294901760
        %1444 = vmatmul.mubr.f32.gmra.mxu0 %v1443
        %v1445 = vpop.f32.mrf.mxu0
        %v1446 = vadd.f32 %v1359, %v1445
        %v1447 = vpop.f32.mrf.mxu0
        %1448 = vdwg.mxu0
        %v1449 = vmax.f32 %v1446, 0.0
        %v1451 = vlaneseq
        %v1452 = vshrl.u32 %v1451, 7
        %v1453 = vsub.s32 0, %v1452
        %v1454 = vrot.slane %v339, %v1453
        %1456 = vmatprep.subr.mxu0 0.0
        %v1457 = vand.u32 %v336, 4294901760
        %1458 = vmatpush1.msra.mxu0 %v1457
        %1459 = vmatprep.subr.mxu0 0.0
        %v1460 = vand.u32 %v335, 4294901760
        %1461 = vmatpush1.msra.mxu0 %v1460
        %1462 = vmatprep.subr.mxu0 0.0
        %v1463 = vand.u32 %v334, 4294901760
        %1464 = vmatpush1.msra.mxu0 %v1463
        %1465 = vmatprep.subr.mxu0 0.0
        %v1466 = vand.u32 %v333, 4294901760
        %1467 = vmatpush1.msra.mxu0 %v1466
        %1468 = vmatprep.subr.mxu0 0.0
        %v1469 = vand.u32 %v332, 4294901760
        %1470 = vmatpush1.msra.mxu0 %v1469
        %1471 = vmatprep.subr.mxu0 0.0
        %v1472 = vand.u32 %v331, 4294901760
        %1473 = vmatpush1.msra.mxu0 %v1472
        %1474 = vmatprep.subr.mxu0 0.0
        %v1475 = vand.u32 %v330, 4294901760
        %1476 = vmatpush1.msra.mxu0 %v1475
        %1477 = vmatprep.subr.mxu0 0.0
        %v1478 = vand.u32 %v329, 4294901760
        %1479 = vmatpush1.msra.mxu0 %v1478
        %1480 = vmatprep.subr.mxu0 0.0
        %v1481 = vand.u32 %v328, 4294901760
        %1482 = vmatpush1.msra.mxu0 %v1481
        %1483 = vmatprep.subr.mxu0 0.0
        %v1484 = vand.u32 %v327, 4294901760
        %1485 = vmatpush1.msra.mxu0 %v1484
        %1486 = vmatprep.subr.mxu0 0.0
        %v1487 = vand.u32 %v326, 4294901760
        %1488 = vmatpush1.msra.mxu0 %v1487
        %1489 = vmatprep.subr.mxu0 0.0
        %v1490 = vand.u32 %v325, 4294901760
        %1491 = vmatpush1.msra.mxu0 %v1490
        %1492 = vmatprep.subr.mxu0 0.0
        %v1493 = vand.u32 %v324, 4294901760
        %1494 = vmatpush1.msra.mxu0 %v1493
        %1495 = vmatprep.subr.mxu0 0.0
        %v1496 = vand.u32 %v323, 4294901760
        %1497 = vmatpush1.msra.mxu0 %v1496
        %1498 = vmatprep.subr.mxu0 0.0
        %v1499 = vand.u32 %v322, 4294901760
        %1500 = vmatpush1.msra.mxu0 %v1499
        %1501 = vmatprep.subr.mxu0 0.0
        %v1502 = vand.u32 %v321, 4294901760
        %1503 = vmatpush1.msra.mxu0 %v1502
        %1504 = vmatprep.subr.mxu0 0.0
        %1505 = vmatpush2.msra.mxu0 0.0
        %1506 = vmatprep.subr.mxu0 0.0
        %1507 = vmatpush2.msra.mxu0 0.0
        %1508 = vmatprep.subr.mxu0 0.0
        %1509 = vmatpush2.msra.mxu0 0.0
        %1510 = vmatprep.subr.mxu0 0.0
        %1511 = vmatpush2.msra.mxu0 0.0
        %1512 = vmatprep.subr.mxu0 0.0
        %1513 = vmatpush2.msra.mxu0 0.0
        %1514 = vmatprep.subr.mxu0 0.0
        %1515 = vmatpush2.msra.mxu0 0.0
        %1516 = vmatprep.subr.mxu0 0.0
        %1517 = vmatpush2.msra.mxu0 0.0
        %1518 = vmatprep.subr.mxu0 0.0
        %1519 = vmatpush2.msra.mxu0 0.0
        %1520 = vmatprep.subr.mxu0 0.0
        %1521 = vmatpush2.msra.mxu0 0.0
        %1522 = vmatprep.subr.mxu0 0.0
        %1523 = vmatpush2.msra.mxu0 0.0
        %1524 = vmatprep.subr.mxu0 0.0
        %1525 = vmatpush2.msra.mxu0 0.0
        %1526 = vmatprep.subr.mxu0 0.0
        %1527 = vmatpush2.msra.mxu0 0.0
        %1528 = vmatprep.subr.mxu0 0.0
        %1529 = vmatpush2.msra.mxu0 0.0
        %1530 = vmatprep.subr.mxu0 0.0
        %1531 = vmatpush2.msra.mxu0 0.0
        %1532 = vmatprep.subr.mxu0 0.0
        %1533 = vmatpush2.msra.mxu0 0.0
        %1534 = vmatprep.subr.mxu0 0.0
        %1535 = vmatpush2.msra.mxu0 0.0
        %1536 = vmatprep.mubr.f32.mxu0 0.0
        %v1537 = vand.u32 %v1449, 4294901760
        %v1538 = vsub.f32 %v1449, %v1537
        %v1539 = vand.u32 %v1538, 4294901760
        %v1540 = vsub.f32 %v1538, %v1539
        %v1541 = vand.u32 %v1540, 4294901760
        %1542 = vmatmul.mubr.f32.gmra.mxu0 %v1541
        %v1543 = vpop.f32.mrf.mxu0
        %v1544 = vadd.f32 %v1454, %v1543
        %v1545 = vpop.f32.mrf.mxu0
        %1546 = vdwg.mxu0
        %1547 = vmatprep.subr.mxu0 0.0
        %v1548 = vand.u32 %v336, 4294901760
        %v1549 = vsub.f32 %v336, %v1548
        %v1550 = vand.u32 %v1549, 4294901760
        %v1551 = vsub.f32 %v1549, %v1550
        %v1552 = vand.u32 %v1551, 4294901760
        %1553 = vmatpush1.msra.mxu0 %v1552
        %1554 = vmatprep.subr.mxu0 0.0
        %v1555 = vand.u32 %v335, 4294901760
        %v1556 = vsub.f32 %v335, %v1555
        %v1557 = vand.u32 %v1556, 4294901760
        %v1558 = vsub.f32 %v1556, %v1557
        %v1559 = vand.u32 %v1558, 4294901760
        %1560 = vmatpush1.msra.mxu0 %v1559
        %1561 = vmatprep.subr.mxu0 0.0
        %v1562 = vand.u32 %v334, 4294901760
        %v1563 = vsub.f32 %v334, %v1562
        %v1564 = vand.u32 %v1563, 4294901760
        %v1565 = vsub.f32 %v1563, %v1564
        %v1566 = vand.u32 %v1565, 4294901760
        %1567 = vmatpush1.msra.mxu0 %v1566
        %1568 = vmatprep.subr.mxu0 0.0
        %v1569 = vand.u32 %v333, 4294901760
        %v1570 = vsub.f32 %v333, %v1569
        %v1571 = vand.u32 %v1570, 4294901760
        %v1572 = vsub.f32 %v1570, %v1571
        %v1573 = vand.u32 %v1572, 4294901760
        %1574 = vmatpush1.msra.mxu0 %v1573
        %1575 = vmatprep.subr.mxu0 0.0
        %v1576 = vand.u32 %v332, 4294901760
        %v1577 = vsub.f32 %v332, %v1576
        %v1578 = vand.u32 %v1577, 4294901760
        %v1579 = vsub.f32 %v1577, %v1578
        %v1580 = vand.u32 %v1579, 4294901760
        %1581 = vmatpush1.msra.mxu0 %v1580
        %1582 = vmatprep.subr.mxu0 0.0
        %v1583 = vand.u32 %v331, 4294901760
        %v1584 = vsub.f32 %v331, %v1583
        %v1585 = vand.u32 %v1584, 4294901760
        %v1586 = vsub.f32 %v1584, %v1585
        %v1587 = vand.u32 %v1586, 4294901760
        %1588 = vmatpush1.msra.mxu0 %v1587
        %1589 = vmatprep.subr.mxu0 0.0
        %v1590 = vand.u32 %v330, 4294901760
        %v1591 = vsub.f32 %v330, %v1590
        %v1592 = vand.u32 %v1591, 4294901760
        %v1593 = vsub.f32 %v1591, %v1592
        %v1594 = vand.u32 %v1593, 4294901760
        %1595 = vmatpush1.msra.mxu0 %v1594
        %1596 = vmatprep.subr.mxu0 0.0
        %v1597 = vand.u32 %v329, 4294901760
        %v1598 = vsub.f32 %v329, %v1597
        %v1599 = vand.u32 %v1598, 4294901760
        %v1600 = vsub.f32 %v1598, %v1599
        %v1601 = vand.u32 %v1600, 4294901760
        %1602 = vmatpush1.msra.mxu0 %v1601
        %1603 = vmatprep.subr.mxu0 0.0
        %v1604 = vand.u32 %v328, 4294901760
        %v1605 = vsub.f32 %v328, %v1604
        %v1606 = vand.u32 %v1605, 4294901760
        %v1607 = vsub.f32 %v1605, %v1606
        %v1608 = vand.u32 %v1607, 4294901760
        %1609 = vmatpush1.msra.mxu0 %v1608
        %1610 = vmatprep.subr.mxu0 0.0
        %v1611 = vand.u32 %v327, 4294901760
        %v1612 = vsub.f32 %v327, %v1611
        %v1613 = vand.u32 %v1612, 4294901760
        %v1614 = vsub.f32 %v1612, %v1613
        %v1615 = vand.u32 %v1614, 4294901760
        %1616 = vmatpush1.msra.mxu0 %v1615
        %1617 = vmatprep.subr.mxu0 0.0
        %v1618 = vand.u32 %v326, 4294901760
        %v1619 = vsub.f32 %v326, %v1618
        %v1620 = vand.u32 %v1619, 4294901760
        %v1621 = vsub.f32 %v1619, %v1620
        %v1622 = vand.u32 %v1621, 4294901760
        %1623 = vmatpush1.msra.mxu0 %v1622
        %1624 = vmatprep.subr.mxu0 0.0
        %v1625 = vand.u32 %v325, 4294901760
        %v1626 = vsub.f32 %v325, %v1625
        %v1627 = vand.u32 %v1626, 4294901760
        %v1628 = vsub.f32 %v1626, %v1627
        %v1629 = vand.u32 %v1628, 4294901760
        %1630 = vmatpush1.msra.mxu0 %v1629
        %1631 = vmatprep.subr.mxu0 0.0
        %v1632 = vand.u32 %v324, 4294901760
        %v1633 = vsub.f32 %v324, %v1632
        %v1634 = vand.u32 %v1633, 4294901760
        %v1635 = vsub.f32 %v1633, %v1634
        %v1636 = vand.u32 %v1635, 4294901760
        %1637 = vmatpush1.msra.mxu0 %v1636
        %1638 = vmatprep.subr.mxu0 0.0
        %v1639 = vand.u32 %v323, 4294901760
        %v1640 = vsub.f32 %v323, %v1639
        %v1641 = vand.u32 %v1640, 4294901760
        %v1642 = vsub.f32 %v1640, %v1641
        %v1643 = vand.u32 %v1642, 4294901760
        %1644 = vmatpush1.msra.mxu0 %v1643
        %1645 = vmatprep.subr.mxu0 0.0
        %v1646 = vand.u32 %v322, 4294901760
        %v1647 = vsub.f32 %v322, %v1646
        %v1648 = vand.u32 %v1647, 4294901760
        %v1649 = vsub.f32 %v1647, %v1648
        %v1650 = vand.u32 %v1649, 4294901760
        %1651 = vmatpush1.msra.mxu0 %v1650
        %1652 = vmatprep.subr.mxu0 0.0
        %v1653 = vand.u32 %v321, 4294901760
        %v1654 = vsub.f32 %v321, %v1653
        %v1655 = vand.u32 %v1654, 4294901760
        %v1656 = vsub.f32 %v1654, %v1655
        %v1657 = vand.u32 %v1656, 4294901760
        %1658 = vmatpush1.msra.mxu0 %v1657
        %1659 = vmatprep.subr.mxu0 0.0
        %1660 = vmatpush2.msra.mxu0 0.0
        %1661 = vmatprep.subr.mxu0 0.0
        %1662 = vmatpush2.msra.mxu0 0.0
        %1663 = vmatprep.subr.mxu0 0.0
        %1664 = vmatpush2.msra.mxu0 0.0
        %1665 = vmatprep.subr.mxu0 0.0
        %1666 = vmatpush2.msra.mxu0 0.0
        %1667 = vmatprep.subr.mxu0 0.0
        %1668 = vmatpush2.msra.mxu0 0.0
        %1669 = vmatprep.subr.mxu0 0.0
        %1670 = vmatpush2.msra.mxu0 0.0
        %1671 = vmatprep.subr.mxu0 0.0
        %1672 = vmatpush2.msra.mxu0 0.0
        %1673 = vmatprep.subr.mxu0 0.0
        %1674 = vmatpush2.msra.mxu0 0.0
        %1675 = vmatprep.subr.mxu0 0.0
        %1676 = vmatpush2.msra.mxu0 0.0
        %1677 = vmatprep.subr.mxu0 0.0
        %1678 = vmatpush2.msra.mxu0 0.0
        %1679 = vmatprep.subr.mxu0 0.0
        %1680 = vmatpush2.msra.mxu0 0.0
        %1681 = vmatprep.subr.mxu0 0.0
        %1682 = vmatpush2.msra.mxu0 0.0
        %1683 = vmatprep.subr.mxu0 0.0
        %1684 = vmatpush2.msra.mxu0 0.0
        %1685 = vmatprep.subr.mxu0 0.0
        %1686 = vmatpush2.msra.mxu0 0.0
        %1687 = vmatprep.subr.mxu0 0.0
        %1688 = vmatpush2.msra.mxu0 0.0
        %1689 = vmatprep.subr.mxu0 0.0
        %1690 = vmatpush2.msra.mxu0 0.0
        %1691 = vmatprep.mubr.f32.mxu0 0.0
        %v1692 = vand.u32 %v1449, 4294901760
        %1693 = vmatmul.mubr.f32.gmra.mxu0 %v1692
        %v1694 = vpop.f32.mrf.mxu0
        %v1695 = vadd.f32 %v1544, %v1694
        %v1696 = vpop.f32.mrf.mxu0
        %1697 = vdwg.mxu0
        %1698 = vmatprep.subr.mxu0 0.0
        %v1699 = vand.u32 %v336, 4294901760
        %v1700 = vsub.f32 %v336, %v1699
        %1701 = vmatpush1.msra.mxu0 %v1700
        %1702 = vmatprep.subr.mxu0 0.0
        %v1703 = vand.u32 %v335, 4294901760
        %v1704 = vsub.f32 %v335, %v1703
        %1705 = vmatpush1.msra.mxu0 %v1704
        %1706 = vmatprep.subr.mxu0 0.0
        %v1707 = vand.u32 %v334, 4294901760
        %v1708 = vsub.f32 %v334, %v1707
        %1709 = vmatpush1.msra.mxu0 %v1708
        %1710 = vmatprep.subr.mxu0 0.0
        %v1711 = vand.u32 %v333, 4294901760
        %v1712 = vsub.f32 %v333, %v1711
        %1713 = vmatpush1.msra.mxu0 %v1712
        %1714 = vmatprep.subr.mxu0 0.0
        %v1715 = vand.u32 %v332, 4294901760
        %v1716 = vsub.f32 %v332, %v1715
        %1717 = vmatpush1.msra.mxu0 %v1716
        %1718 = vmatprep.subr.mxu0 0.0
        %v1719 = vand.u32 %v331, 4294901760
        %v1720 = vsub.f32 %v331, %v1719
        %1721 = vmatpush1.msra.mxu0 %v1720
        %1722 = vmatprep.subr.mxu0 0.0
        %v1723 = vand.u32 %v330, 4294901760
        %v1724 = vsub.f32 %v330, %v1723
        %1725 = vmatpush1.msra.mxu0 %v1724
        %1726 = vmatprep.subr.mxu0 0.0
        %v1727 = vand.u32 %v329, 4294901760
        %v1728 = vsub.f32 %v329, %v1727
        %1729 = vmatpush1.msra.mxu0 %v1728
        %1730 = vmatprep.subr.mxu0 0.0
        %v1731 = vand.u32 %v328, 4294901760
        %v1732 = vsub.f32 %v328, %v1731
        %1733 = vmatpush1.msra.mxu0 %v1732
        %1734 = vmatprep.subr.mxu0 0.0
        %v1735 = vand.u32 %v327, 4294901760
        %v1736 = vsub.f32 %v327, %v1735
        %1737 = vmatpush1.msra.mxu0 %v1736
        %1738 = vmatprep.subr.mxu0 0.0
        %v1739 = vand.u32 %v326, 4294901760
        %v1740 = vsub.f32 %v326, %v1739
        %1741 = vmatpush1.msra.mxu0 %v1740
        %1742 = vmatprep.subr.mxu0 0.0
        %v1743 = vand.u32 %v325, 4294901760
        %v1744 = vsub.f32 %v325, %v1743
        %1745 = vmatpush1.msra.mxu0 %v1744
        %1746 = vmatprep.subr.mxu0 0.0
        %v1747 = vand.u32 %v324, 4294901760
        %v1748 = vsub.f32 %v324, %v1747
        %1749 = vmatpush1.msra.mxu0 %v1748
        %1750 = vmatprep.subr.mxu0 0.0
        %v1751 = vand.u32 %v323, 4294901760
        %v1752 = vsub.f32 %v323, %v1751
        %1753 = vmatpush1.msra.mxu0 %v1752
        %1754 = vmatprep.subr.mxu0 0.0
        %v1755 = vand.u32 %v322, 4294901760
        %v1756 = vsub.f32 %v322, %v1755
        %1757 = vmatpush1.msra.mxu0 %v1756
        %1758 = vmatprep.subr.mxu0 0.0
        %v1759 = vand.u32 %v321, 4294901760
        %v1760 = vsub.f32 %v321, %v1759
        %1761 = vmatpush1.msra.mxu0 %v1760
        %1762 = vmatprep.subr.mxu0 0.0
        %1763 = vmatpush2.msra.mxu0 0.0
        %1764 = vmatprep.subr.mxu0 0.0
        %1765 = vmatpush2.msra.mxu0 0.0
        %1766 = vmatprep.subr.mxu0 0.0
        %1767 = vmatpush2.msra.mxu0 0.0
        %1768 = vmatprep.subr.mxu0 0.0
        %1769 = vmatpush2.msra.mxu0 0.0
        %1770 = vmatprep.subr.mxu0 0.0
        %1771 = vmatpush2.msra.mxu0 0.0
        %1772 = vmatprep.subr.mxu0 0.0
        %1773 = vmatpush2.msra.mxu0 0.0
        %1774 = vmatprep.subr.mxu0 0.0
        %1775 = vmatpush2.msra.mxu0 0.0
        %1776 = vmatprep.subr.mxu0 0.0
        %1777 = vmatpush2.msra.mxu0 0.0
        %1778 = vmatprep.subr.mxu0 0.0
        %1779 = vmatpush2.msra.mxu0 0.0
        %1780 = vmatprep.subr.mxu0 0.0
        %1781 = vmatpush2.msra.mxu0 0.0
        %1782 = vmatprep.subr.mxu0 0.0
        %1783 = vmatpush2.msra.mxu0 0.0
        %1784 = vmatprep.subr.mxu0 0.0
        %1785 = vmatpush2.msra.mxu0 0.0
        %1786 = vmatprep.subr.mxu0 0.0
        %1787 = vmatpush2.msra.mxu0 0.0
        %1788 = vmatprep.subr.mxu0 0.0
        %1789 = vmatpush2.msra.mxu0 0.0
        %1790 = vmatprep.subr.mxu0 0.0
        %1791 = vmatpush2.msra.mxu0 0.0
        %1792 = vmatprep.subr.mxu0 0.0
        %1793 = vmatpush2.msra.mxu0 0.0
        %1794 = vmatprep.mubr.f32.mxu0 0.0
        %v1795 = vand.u32 %v1449, 4294901760
        %v1796 = vsub.f32 %v1449, %v1795
        %1797 = vmatmul.mubr.f32.gmra.mxu0 %v1796
        %v1798 = vpop.f32.mrf.mxu0
        %v1799 = vadd.f32 %v1695, %v1798
        %v1800 = vpop.f32.mrf.mxu0
        %1801 = vdwg.mxu0
        %1802 = vmatprep.subr.mxu0 0.0
        %v1803 = vand.u32 %v336, 4294901760
        %1804 = vmatpush1.msra.mxu0 %v1803
        %1805 = vmatprep.subr.mxu0 0.0
        %v1806 = vand.u32 %v335, 4294901760
        %1807 = vmatpush1.msra.mxu0 %v1806
        %1808 = vmatprep.subr.mxu0 0.0
        %v1809 = vand.u32 %v334, 4294901760
        %1810 = vmatpush1.msra.mxu0 %v1809
        %1811 = vmatprep.subr.mxu0 0.0
        %v1812 = vand.u32 %v333, 4294901760
        %1813 = vmatpush1.msra.mxu0 %v1812
        %1814 = vmatprep.subr.mxu0 0.0
        %v1815 = vand.u32 %v332, 4294901760
        %1816 = vmatpush1.msra.mxu0 %v1815
        %1817 = vmatprep.subr.mxu0 0.0
        %v1818 = vand.u32 %v331, 4294901760
        %1819 = vmatpush1.msra.mxu0 %v1818
        %1820 = vmatprep.subr.mxu0 0.0
        %v1821 = vand.u32 %v330, 4294901760
        %1822 = vmatpush1.msra.mxu0 %v1821
        %1823 = vmatprep.subr.mxu0 0.0
        %v1824 = vand.u32 %v329, 4294901760
        %1825 = vmatpush1.msra.mxu0 %v1824
        %1826 = vmatprep.subr.mxu0 0.0
        %v1827 = vand.u32 %v328, 4294901760
        %1828 = vmatpush1.msra.mxu0 %v1827
        %1829 = vmatprep.subr.mxu0 0.0
        %v1830 = vand.u32 %v327, 4294901760
        %1831 = vmatpush1.msra.mxu0 %v1830
        %1832 = vmatprep.subr.mxu0 0.0
        %v1833 = vand.u32 %v326, 4294901760
        %1834 = vmatpush1.msra.mxu0 %v1833
        %1835 = vmatprep.subr.mxu0 0.0
        %v1836 = vand.u32 %v325, 4294901760
        %1837 = vmatpush1.msra.mxu0 %v1836
        %1838 = vmatprep.subr.mxu0 0.0
        %v1839 = vand.u32 %v324, 4294901760
        %1840 = vmatpush1.msra.mxu0 %v1839
        %1841 = vmatprep.subr.mxu0 0.0
        %v1842 = vand.u32 %v323, 4294901760
        %1843 = vmatpush1.msra.mxu0 %v1842
        %1844 = vmatprep.subr.mxu0 0.0
        %v1845 = vand.u32 %v322, 4294901760
        %1846 = vmatpush1.msra.mxu0 %v1845
        %1847 = vmatprep.subr.mxu0 0.0
        %v1848 = vand.u32 %v321, 4294901760
        %1849 = vmatpush1.msra.mxu0 %v1848
        %1850 = vmatprep.subr.mxu0 0.0
        %1851 = vmatpush2.msra.mxu0 0.0
        %1852 = vmatprep.subr.mxu0 0.0
        %1853 = vmatpush2.msra.mxu0 0.0
        %1854 = vmatprep.subr.mxu0 0.0
        %1855 = vmatpush2.msra.mxu0 0.0
        %1856 = vmatprep.subr.mxu0 0.0
        %1857 = vmatpush2.msra.mxu0 0.0
        %1858 = vmatprep.subr.mxu0 0.0
        %1859 = vmatpush2.msra.mxu0 0.0
        %1860 = vmatprep.subr.mxu0 0.0
        %1861 = vmatpush2.msra.mxu0 0.0
        %1862 = vmatprep.subr.mxu0 0.0
        %1863 = vmatpush2.msra.mxu0 0.0
        %1864 = vmatprep.subr.mxu0 0.0
        %1865 = vmatpush2.msra.mxu0 0.0
        %1866 = vmatprep.subr.mxu0 0.0
        %1867 = vmatpush2.msra.mxu0 0.0
        %1868 = vmatprep.subr.mxu0 0.0
        %1869 = vmatpush2.msra.mxu0 0.0
        %1870 = vmatprep.subr.mxu0 0.0
        %1871 = vmatpush2.msra.mxu0 0.0
        %1872 = vmatprep.subr.mxu0 0.0
        %1873 = vmatpush2.msra.mxu0 0.0
        %1874 = vmatprep.subr.mxu0 0.0
        %1875 = vmatpush2.msra.mxu0 0.0
        %1876 = vmatprep.subr.mxu0 0.0
        %1877 = vmatpush2.msra.mxu0 0.0
        %1878 = vmatprep.subr.mxu0 0.0
        %1879 = vmatpush2.msra.mxu0 0.0
        %1880 = vmatprep.subr.mxu0 0.0
        %1881 = vmatpush2.msra.mxu0 0.0
        %1882 = vmatprep.mubr.f32.mxu0 0.0
        %v1883 = vand.u32 %v1449, 4294901760
        %v1884 = vsub.f32 %v1449, %v1883
        %v1885 = vand.u32 %v1884, 4294901760
        %1886 = vmatmul.mubr.f32.gmra.mxu0 %v1885
        %v1887 = vpop.f32.mrf.mxu0
        %v1888 = vadd.f32 %v1799, %v1887
        %v1889 = vpop.f32.mrf.mxu0
        %1890 = vdwg.mxu0
        %1891 = vmatprep.subr.mxu0 0.0
        %v1892 = vand.u32 %v336, 4294901760
        %v1893 = vsub.f32 %v336, %v1892
        %v1894 = vand.u32 %v1893, 4294901760
        %1895 = vmatpush1.msra.mxu0 %v1894
        %1896 = vmatprep.subr.mxu0 0.0
        %v1897 = vand.u32 %v335, 4294901760
        %v1898 = vsub.f32 %v335, %v1897
        %v1899 = vand.u32 %v1898, 4294901760
        %1900 = vmatpush1.msra.mxu0 %v1899
        %1901 = vmatprep.subr.mxu0 0.0
        %v1902 = vand.u32 %v334, 4294901760
        %v1903 = vsub.f32 %v334, %v1902
        %v1904 = vand.u32 %v1903, 4294901760
        %1905 = vmatpush1.msra.mxu0 %v1904
        %1906 = vmatprep.subr.mxu0 0.0
        %v1907 = vand.u32 %v333, 4294901760
        %v1908 = vsub.f32 %v333, %v1907
        %v1909 = vand.u32 %v1908, 4294901760
        %1910 = vmatpush1.msra.mxu0 %v1909
        %1911 = vmatprep.subr.mxu0 0.0
        %v1912 = vand.u32 %v332, 4294901760
        %v1913 = vsub.f32 %v332, %v1912
        %v1914 = vand.u32 %v1913, 4294901760
        %1915 = vmatpush1.msra.mxu0 %v1914
        %1916 = vmatprep.subr.mxu0 0.0
        %v1917 = vand.u32 %v331, 4294901760
        %v1918 = vsub.f32 %v331, %v1917
        %v1919 = vand.u32 %v1918, 4294901760
        %1920 = vmatpush1.msra.mxu0 %v1919
        %1921 = vmatprep.subr.mxu0 0.0
        %v1922 = vand.u32 %v330, 4294901760
        %v1923 = vsub.f32 %v330, %v1922
        %v1924 = vand.u32 %v1923, 4294901760
        %1925 = vmatpush1.msra.mxu0 %v1924
        %1926 = vmatprep.subr.mxu0 0.0
        %v1927 = vand.u32 %v329, 4294901760
        %v1928 = vsub.f32 %v329, %v1927
        %v1929 = vand.u32 %v1928, 4294901760
        %1930 = vmatpush1.msra.mxu0 %v1929
        %1931 = vmatprep.subr.mxu0 0.0
        %v1932 = vand.u32 %v328, 4294901760
        %v1933 = vsub.f32 %v328, %v1932
        %v1934 = vand.u32 %v1933, 4294901760
        %1935 = vmatpush1.msra.mxu0 %v1934
        %1936 = vmatprep.subr.mxu0 0.0
        %v1937 = vand.u32 %v327, 4294901760
        %v1938 = vsub.f32 %v327, %v1937
        %v1939 = vand.u32 %v1938, 4294901760
        %1940 = vmatpush1.msra.mxu0 %v1939
        %1941 = vmatprep.subr.mxu0 0.0
        %v1942 = vand.u32 %v326, 4294901760
        %v1943 = vsub.f32 %v326, %v1942
        %v1944 = vand.u32 %v1943, 4294901760
        %1945 = vmatpush1.msra.mxu0 %v1944
        %1946 = vmatprep.subr.mxu0 0.0
        %v1947 = vand.u32 %v325, 4294901760
        %v1948 = vsub.f32 %v325, %v1947
        %v1949 = vand.u32 %v1948, 4294901760
        %1950 = vmatpush1.msra.mxu0 %v1949
        %1951 = vmatprep.subr.mxu0 0.0
        %v1952 = vand.u32 %v324, 4294901760
        %v1953 = vsub.f32 %v324, %v1952
        %v1954 = vand.u32 %v1953, 4294901760
        %1955 = vmatpush1.msra.mxu0 %v1954
        %1956 = vmatprep.subr.mxu0 0.0
        %v1957 = vand.u32 %v323, 4294901760
        %v1958 = vsub.f32 %v323, %v1957
        %v1959 = vand.u32 %v1958, 4294901760
        %1960 = vmatpush1.msra.mxu0 %v1959
        %1961 = vmatprep.subr.mxu0 0.0
        %v1962 = vand.u32 %v322, 4294901760
        %v1963 = vsub.f32 %v322, %v1962
        %v1964 = vand.u32 %v1963, 4294901760
        %1965 = vmatpush1.msra.mxu0 %v1964
        %1966 = vmatprep.subr.mxu0 0.0
        %v1967 = vand.u32 %v321, 4294901760
        %v1968 = vsub.f32 %v321, %v1967
        %v1969 = vand.u32 %v1968, 4294901760
        %1970 = vmatpush1.msra.mxu0 %v1969
        %1971 = vmatprep.subr.mxu0 0.0
        %1972 = vmatpush2.msra.mxu0 0.0
        %1973 = vmatprep.subr.mxu0 0.0
        %1974 = vmatpush2.msra.mxu0 0.0
        %1975 = vmatprep.subr.mxu0 0.0
        %1976 = vmatpush2.msra.mxu0 0.0
        %1977 = vmatprep.subr.mxu0 0.0
        %1978 = vmatpush2.msra.mxu0 0.0
        %1979 = vmatprep.subr.mxu0 0.0
        %1980 = vmatpush2.msra.mxu0 0.0
        %1981 = vmatprep.subr.mxu0 0.0
        %1982 = vmatpush2.msra.mxu0 0.0
        %1983 = vmatprep.subr.mxu0 0.0
        %1984 = vmatpush2.msra.mxu0 0.0
        %1985 = vmatprep.subr.mxu0 0.0
        %1986 = vmatpush2.msra.mxu0 0.0
        %1987 = vmatprep.subr.mxu0 0.0
        %1988 = vmatpush2.msra.mxu0 0.0
        %1989 = vmatprep.subr.mxu0 0.0
        %1990 = vmatpush2.msra.mxu0 0.0
        %1991 = vmatprep.subr.mxu0 0.0
        %1992 = vmatpush2.msra.mxu0 0.0
        %1993 = vmatprep.subr.mxu0 0.0
        %1994 = vmatpush2.msra.mxu0 0.0
        %1995 = vmatprep.subr.mxu0 0.0
        %1996 = vmatpush2.msra.mxu0 0.0
        %1997 = vmatprep.subr.mxu0 0.0
        %1998 = vmatpush2.msra.mxu0 0.0
        %1999 = vmatprep.subr.mxu0 0.0
        %2000 = vmatpush2.msra.mxu0 0.0
        %2001 = vmatprep.subr.mxu0 0.0
        %2002 = vmatpush2.msra.mxu0 0.0
        %2003 = vmatprep.mubr.f32.mxu0 0.0
        %v2004 = vand.u32 %v1449, 4294901760
        %2005 = vmatmul.mubr.f32.gmra.mxu0 %v2004
        %v2006 = vpop.f32.mrf.mxu0
        %v2007 = vadd.f32 %v1888, %v2006
        %v2008 = vpop.f32.mrf.mxu0
        %2009 = vdwg.mxu0
        %2010 = vmatprep.subr.mxu0 0.0
        %v2011 = vand.u32 %v336, 4294901760
        %2012 = vmatpush1.msra.mxu0 %v2011
        %2013 = vmatprep.subr.mxu0 0.0
        %v2014 = vand.u32 %v335, 4294901760
        %2015 = vmatpush1.msra.mxu0 %v2014
        %2016 = vmatprep.subr.mxu0 0.0
        %v2017 = vand.u32 %v334, 4294901760
        %2018 = vmatpush1.msra.mxu0 %v2017
        %2019 = vmatprep.subr.mxu0 0.0
        %v2020 = vand.u32 %v333, 4294901760
        %2021 = vmatpush1.msra.mxu0 %v2020
        %2022 = vmatprep.subr.mxu0 0.0
        %v2023 = vand.u32 %v332, 4294901760
        %2024 = vmatpush1.msra.mxu0 %v2023
        %2025 = vmatprep.subr.mxu0 0.0
        %v2026 = vand.u32 %v331, 4294901760
        %2027 = vmatpush1.msra.mxu0 %v2026
        %2028 = vmatprep.subr.mxu0 0.0
        %v2029 = vand.u32 %v330, 4294901760
        %2030 = vmatpush1.msra.mxu0 %v2029
        %2031 = vmatprep.subr.mxu0 0.0
        %v2032 = vand.u32 %v329, 4294901760
        %2033 = vmatpush1.msra.mxu0 %v2032
        %2034 = vmatprep.subr.mxu0 0.0
        %v2035 = vand.u32 %v328, 4294901760
        %2036 = vmatpush1.msra.mxu0 %v2035
        %2037 = vmatprep.subr.mxu0 0.0
        %v2038 = vand.u32 %v327, 4294901760
        %2039 = vmatpush1.msra.mxu0 %v2038
        %2040 = vmatprep.subr.mxu0 0.0
        %v2041 = vand.u32 %v326, 4294901760
        %2042 = vmatpush1.msra.mxu0 %v2041
        %2043 = vmatprep.subr.mxu0 0.0
        %v2044 = vand.u32 %v325, 4294901760
        %2045 = vmatpush1.msra.mxu0 %v2044
        %2046 = vmatprep.subr.mxu0 0.0
        %v2047 = vand.u32 %v324, 4294901760
        %2048 = vmatpush1.msra.mxu0 %v2047
        %2049 = vmatprep.subr.mxu0 0.0
        %v2050 = vand.u32 %v323, 4294901760
        %2051 = vmatpush1.msra.mxu0 %v2050
        %2052 = vmatprep.subr.mxu0 0.0
        %v2053 = vand.u32 %v322, 4294901760
        %2054 = vmatpush1.msra.mxu0 %v2053
        %2055 = vmatprep.subr.mxu0 0.0
        %v2056 = vand.u32 %v321, 4294901760
        %2057 = vmatpush1.msra.mxu0 %v2056
        %2058 = vmatprep.subr.mxu0 0.0
        %2059 = vmatpush2.msra.mxu0 0.0
        %2060 = vmatprep.subr.mxu0 0.0
        %2061 = vmatpush2.msra.mxu0 0.0
        %2062 = vmatprep.subr.mxu0 0.0
        %2063 = vmatpush2.msra.mxu0 0.0
        %2064 = vmatprep.subr.mxu0 0.0
        %2065 = vmatpush2.msra.mxu0 0.0
        %2066 = vmatprep.subr.mxu0 0.0
        %2067 = vmatpush2.msra.mxu0 0.0
        %2068 = vmatprep.subr.mxu0 0.0
        %2069 = vmatpush2.msra.mxu0 0.0
        %2070 = vmatprep.subr.mxu0 0.0
        %2071 = vmatpush2.msra.mxu0 0.0
        %2072 = vmatprep.subr.mxu0 0.0
        %2073 = vmatpush2.msra.mxu0 0.0
        %2074 = vmatprep.subr.mxu0 0.0
        %2075 = vmatpush2.msra.mxu0 0.0
        %2076 = vmatprep.subr.mxu0 0.0
        %2077 = vmatpush2.msra.mxu0 0.0
        %2078 = vmatprep.subr.mxu0 0.0
        %2079 = vmatpush2.msra.mxu0 0.0
        %2080 = vmatprep.subr.mxu0 0.0
        %2081 = vmatpush2.msra.mxu0 0.0
        %2082 = vmatprep.subr.mxu0 0.0
        %2083 = vmatpush2.msra.mxu0 0.0
        %2084 = vmatprep.subr.mxu0 0.0
        %2085 = vmatpush2.msra.mxu0 0.0
        %2086 = vmatprep.subr.mxu0 0.0
        %2087 = vmatpush2.msra.mxu0 0.0
        %2088 = vmatprep.subr.mxu0 0.0
        %2089 = vmatpush2.msra.mxu0 0.0
        %2090 = vmatprep.mubr.f32.mxu0 0.0
        %v2091 = vand.u32 %v1449, 4294901760
        %2092 = vmatmul.mubr.f32.gmra.mxu0 %v2091
        %v2093 = vpop.f32.mrf.mxu0
        %v2094 = vadd.f32 %v2007, %v2093
        %v2095 = vpop.f32.mrf.mxu0
        %2096 = vdwg.mxu0
        %2097 = vst [vmem:[%s299] sm:$0xff] %v2094
        %s2098 = sand.u32 %s183, 1
        %s2099 = scalar_lea.sflag [#allocation4], %s2098
        %s2100 = sand.u32 %s183, 1
        %s2101 = smul.addr %s2100, 8
        %s2102 = scalar_lea.vmem [#allocation7], %s2101
        // Predicated region
        $region57: #{tpu_custom_call.1} parent=47 // pred_check
          %p2103 = pneg %p193
        $region58: #{tpu_custom_call.1} parent=47 // pred_check_branch
          %2105 = sbr.rel (%p2103) target = $region60
        $region59: #{tpu_custom_call.1} parent=47 // pred_region
          %s2107 = ssub.s32 128, 128
          %2108 = vsyncadd %s2099, %s2107
          %s2109 = smul.addr %s23, 128
          %s2110 = scalar_lea.hbm %s7, %s2109
          %s2112 = sshll.u32 %s2102, 4
          %s2113 = int_to_ptr.vmem [resolvable:$true] %s2112
          %2115 = dma.vmem_to_hbm [thread:$0]  %s2113, 128, %s2110, %s2099
        $region60: #{tpu_custom_call.1} parent=47 // pred_fallthru
          _
      $region48: #{tpu_custom_call.1} parent=5 // pred_fallthru
        _
      %p2116 = scmp.le.s32.totalorder 2, %s18
      // Predicated region
      $region61: #{tpu_custom_call.1} parent=5 // pred_check
        %p2117 = pneg %p2116
      $region62: #{tpu_custom_call.1} parent=5 // pred_check_branch
        %2119 = sbr.rel (%p2117) target = $region64
      $region63: #{tpu_custom_call.1} parent=5 // pred_region
        %s2120 = ssub.s32 %s18, 2
        // Predicated region
        $region65: #{tpu_custom_call.1} parent=63 // pred_check
          %p2121 = pneg %p199
        $region66: #{tpu_custom_call.1} parent=63 // pred_check_branch
          %2123 = sbr.rel (%p2121) target = $region68
        $region67: #{tpu_custom_call.1} parent=63 // pred_region
          %s2124 = sand.u32 %s184, 1
          %s2125 = scalar_lea.sflag [#allocation4], %s2124
          %s2126 = sand.u32 %s184, 1
          %s2127 = smul.addr %s2126, 8
          %s2128 = scalar_lea.vmem [#allocation7], %s2127
          %2129 = dma.done %s2125, 128
        $region68: #{tpu_custom_call.1} parent=63 // pred_fallthru
          _
      $region64: #{tpu_custom_call.1} parent=5 // pred_fallthru
        _
    $region6: #{tpu_custom_call.1} parent=1 // loop_footer
      %s22 = sadd.s32 1, %s18
    $region7: #{tpu_custom_call.1} parent=1 // loop_footer_branch
      %17 = sbr.rel target = $region3
    $region8: #{tpu_custom_call.1} parent=1 // loop_exit
      _
    %2130 = vsyncpa [#allocation3], 1
    %s2131 = scalar_lea.sflag [#allocation3], 1
    %2132 = vsyncpa %s2131, 1
    %2133 = vsyncpa [#allocation6], 1
    %2134 = vsyncpa [#allocation4], 1
    %s2135 = scalar_lea.sflag [#allocation4], 1
    %2136 = vsyncpa %s2135, 1

// kernel: tpu_custom_call.1
$region0: #{tpu_custom_call.1}
  #allocation0 [shape = 'u32[]', space=smem, size = 0x4, offset = 0x4, fixed_abs, tag = 'smem constant byte address 0x4 - core index']
  #allocation1 [shape = 'u32[144,128]{1,0:T(1,128)}', space=vmem, size = 0x12000, scoped, tag = 'internal scratch']
  %s0 = inlined_call_operand.vmem [shape: f32[16,4], index: 0, kind: input, shape index: {}]
  %s1 = inlined_call_operand.vmem [shape: f32[4,128], index: 1, kind: input, shape index: {}]
  %s2 = inlined_call_operand.vmem [shape: f32[1,128], index: 2, kind: input, shape index: {}]
  %s3 = inlined_call_operand.hbm [shape: f32[128,128], index: 3, kind: input, shape index: {}]
  %s4 = inlined_call_operand.vmem [shape: f32[1,128], index: 4, kind: input, shape index: {}]
  %s5 = inlined_call_operand.hbm [shape: f32[128,128], index: 5, kind: input, shape index: {}]
  %s6 = inlined_call_operand.vmem [shape: f32[1,128], index: 6, kind: input, shape index: {}]
  %s7 = inlined_call_operand.hbm [shape: f32[16,128], index: 7, kind: output, shape index: {}]
  %s8 = sld [smem:[#allocation0]]
  $region69: #{tpu_custom_call.1} parent=0
    _
  %s10 = ssub.s32 1, %s8
  %s11 = scalar_select 0, %s10, %s8
  $region1: #{tpu_custom_call.1} parent=0
    #allocation2 [shape = 'u8[65536]{0}', space=vmem, size = 0x10000, scoped, tag = 'input window, operand 3, single buffered']
    #allocation3 [shape = 's32[2]{0}', space=sflag, size = 0x8, scoped, tag = 'scoped memory for tpu_custom_call.1']
    #allocation4 [shape = 's32[2]{0}', space=sflag, size = 0x8, scoped, tag = 'scoped memory for tpu_custom_call.1']
    #allocation5 [shape = 'u8[65536]{0}', space=vmem, size = 0x10000, scoped, tag = 'input window, operand 5, single buffered']
    #allocation6 [shape = 's32[1]{0}', space=sflag, size = 0x4, scoped, tag = 'scoped memory for tpu_custom_call.1']
    #allocation7 [shape = 'u8[8192]{0}', space=vmem, size = 0x2000, scoped, tag = 'output window, operand 0']
    %12 = vsyncpa [#allocation3], 0
    %13 = vsyncpa [#allocation6], 0
    %14 = vsyncpa [#allocation4], 0
    %s15 = scalar_lea.sflag [#allocation4], 1
    %16 = vsyncpa %s15, 0
    loop: start=0, step=1, limit=4
    $region2: #{tpu_custom_call.1} parent=1 // loop_pre_header
      _
    $region3: #{tpu_custom_call.1} parent=1 // loop_header
      %s18 = sphi 0, %s22
      %p19 = scmp.ge.s32.totalorder %s18, 4
      %s28 = sphi 0, %s30
      %s31 = sphi 0, %s28
      %s32 = sphi 0, %s31
      %s48 = sphi 0, %s32
      %s52 = sphi 0, %s52
      %s54 = sphi 0, %s52
      %s55 = sphi 0, %s54
      %s69 = sphi 0, %s55
      %s73 = sphi 0, %s73
      %s75 = sphi 0, %s73
      %s76 = sphi 0, %s75
      %s90 = sphi 0, %s76
      %s94 = sphi 0, %s94
      %s96 = sphi 0, %s94
      %s97 = sphi 0, %s96
      %s111 = sphi 0, %s97
      %s115 = sphi 0, %s115
      %s117 = sphi 0, %s115
      %s118 = sphi 0, %s117
      %s132 = sphi 0, %s118
      %s136 = sphi 0, %s136
      %s138 = sphi 0, %s136
      %s139 = sphi 0, %s138
      %s153 = sphi 0, %s139
      %s157 = sphi 0, %s157
      %s159 = sphi 0, %s157
      %s160 = sphi 0, %s159
      %s174 = sphi 0, %s160
      %s180 = sphi 0, %s182
      %s183 = sphi 0, %s180
      %s184 = sphi 0, %s183
      %s200 = sphi 0, %s184
    $region4: #{tpu_custom_call.1} parent=1 // loop_header_branch
      %21 = sbr.rel (%p19) target = $region8
    $region5: #{tpu_custom_call.1} parent=1 // loop_body
      %s23 = ssub.s32 %s18, 1
      %s24 = ssub.s32 %s18, 2
      %s25 = sadd.s32 %s18, 1
      %s26 = ssub.s32 %s18, %s25
      %p27 = scmp.eq.s32.totalorder %s26, 0
      %s29 = sadd.s32 %s28, 1
      %s30 = scalar_select %p27, %s28, %s29
      %p33 = pneg %p27
      %p34 = scmp.eq.s32.totalorder %s18, 1
      %p35 = por %p33, %p34
      %p36 = scmp.ne.s32.totalorder %s28, %s31
      %p37 = scmp.eq.s32.totalorder %s18, 0
      %p38 = por %p36, %p37
      %p39 = scmp.ne.s32.totalorder %s28, %s31
      %p40 = scmp.eq.s32.totalorder %s23, 1
      %p41 = por %p39, %p40
      %p42 = scmp.ne.s32.totalorder %s31, %s32
      %p43 = scmp.eq.s32.totalorder %s23, 0
      %p44 = por %p42, %p43
      %p45 = scmp.ne.s32.totalorder %s31, %s32
      %p46 = scmp.eq.s32.totalorder %s24, 1
      %p47 = por %p45, %p46
      %p49 = scmp.ne.s32.totalorder %s32, %s48
      %p50 = scmp.eq.s32.totalorder %s24, 0
      %p51 = por %p49, %p50
      %s53 = sadd.s32 %s52, 1
      %p56 = scmp.eq.s32.totalorder %s18, 1
      %p57 = scmp.ne.s32.totalorder %s52, %s54
      %p58 = scmp.eq.s32.totalorder %s18, 0
      %p59 = por %p57, %p58
      %p60 = scmp.ne.s32.totalorder %s52, %s54
      %p61 = scmp.eq.s32.totalorder %s23, 1
      %p62 = por %p60, %p61
      %p63 = scmp.ne.s32.totalorder %s54, %s55
      %p64 = scmp.eq.s32.totalorder %s23, 0
      %p65 = por %p63, %p64
      %p66 = scmp.ne.s32.totalorder %s54, %s55
      %p67 = scmp.eq.s32.totalorder %s24, 1
      %p68 = por %p66, %p67
      %p70 = scmp.ne.s32.totalorder %s55, %s69
      %p71 = scmp.eq.s32.totalorder %s24, 0
      %p72 = por %p70, %p71
      %s74 = sadd.s32 %s73, 1
      %p77 = scmp.eq.s32.totalorder %s18, 1
      %p78 = scmp.ne.s32.totalorder %s73, %s75
      %p79 = scmp.eq.s32.totalorder %s18, 0
      %p80 = por %p78, %p79
      %p81 = scmp.ne.s32.totalorder %s73, %s75
      %p82 = scmp.eq.s32.totalorder %s23, 1
      %p83 = por %p81, %p82
      %p84 = scmp.ne.s32.totalorder %s75, %s76
      %p85 = scmp.eq.s32.totalorder %s23, 0
      %p86 = por %p84, %p85
      %p87 = scmp.ne.s32.totalorder %s75, %s76
      %p88 = scmp.eq.s32.totalorder %s24, 1
      %p89 = por %p87, %p88
      %p91 = scmp.ne.s32.totalorder %s76, %s90
      %p92 = scmp.eq.s32.totalorder %s24, 0
      %p93 = por %p91, %p92
      %s95 = sadd.s32 %s94, 1
      %p98 = scmp.eq.s32.totalorder %s18, 1
      %p99 = scmp.ne.s32.totalorder %s94, %s96
      %p100 = scmp.eq.s32.totalorder %s18, 0
      %p101 = por %p99, %p100
      %p102 = scmp.ne.s32.totalorder %s94, %s96
      %p103 = scmp.eq.s32.totalorder %s23, 1
      %p104 = por %p102, %p103
      %p105 = scmp.ne.s32.totalorder %s96, %s97
      %p106 = scmp.eq.s32.totalorder %s23, 0
      %p107 = por %p105, %p106
      %p108 = scmp.ne.s32.totalorder %s96, %s97
      %p109 = scmp.eq.s32.totalorder %s24, 1
      %p110 = por %p108, %p109
      %p112 = scmp.ne.s32.totalorder %s97, %s111
      %p113 = scmp.eq.s32.totalorder %s24, 0
      %p114 = por %p112, %p113
      %s116 = sadd.s32 %s115, 1
      %p119 = scmp.eq.s32.totalorder %s18, 1
      %p120 = scmp.ne.s32.totalorder %s115, %s117
      %p121 = scmp.eq.s32.totalorder %s18, 0
      %p122 = por %p120, %p121
      %p123 = scmp.ne.s32.totalorder %s115, %s117
      %p124 = scmp.eq.s32.totalorder %s23, 1
      %p125 = por %p123, %p124
      %p126 = scmp.ne.s32.totalorder %s117, %s118
      %p127 = scmp.eq.s32.totalorder %s23, 0
      %p128 = por %p126, %p127
      %p129 = scmp.ne.s32.totalorder %s117, %s118
      %p130 = scmp.eq.s32.totalorder %s24, 1
      %p131 = por %p129, %p130
      %p133 = scmp.ne.s32.totalorder %s118, %s132
      %p134 = scmp.eq.s32.totalorder %s24, 0
      %p135 = por %p133, %p134
      %s137 = sadd.s32 %s136, 1
      %p140 = scmp.eq.s32.totalorder %s18, 1
      %p141 = scmp.ne.s32.totalorder %s136, %s138
      %p142 = scmp.eq.s32.totalorder %s18, 0
      %p143 = por %p141, %p142
      %p144 = scmp.ne.s32.totalorder %s136, %s138
      %p145 = scmp.eq.s32.totalorder %s23, 1
      %p146 = por %p144, %p145
      %p147 = scmp.ne.s32.totalorder %s138, %s139
      %p148 = scmp.eq.s32.totalorder %s23, 0
      %p149 = por %p147, %p148
      %p150 = scmp.ne.s32.totalorder %s138, %s139
      %p151 = scmp.eq.s32.totalorder %s24, 1
      %p152 = por %p150, %p151
      %p154 = scmp.ne.s32.totalorder %s139, %s153
      %p155 = scmp.eq.s32.totalorder %s24, 0
      %p156 = por %p154, %p155
      %s158 = sadd.s32 %s157, 1
      %p161 = scmp.eq.s32.totalorder %s18, 1
      %p162 = scmp.ne.s32.totalorder %s157, %s159
      %p163 = scmp.eq.s32.totalorder %s18, 0
      %p164 = por %p162, %p163
      %p165 = scmp.ne.s32.totalorder %s157, %s159
      %p166 = scmp.eq.s32.totalorder %s23, 1
      %p167 = por %p165, %p166
      %p168 = scmp.ne.s32.totalorder %s159, %s160
      %p169 = scmp.eq.s32.totalorder %s23, 0
      %p170 = por %p168, %p169
      %p171 = scmp.ne.s32.totalorder %s159, %s160
      %p172 = scmp.eq.s32.totalorder %s24, 1
      %p173 = por %p171, %p172
      %p175 = scmp.ne.s32.totalorder %s160, %s174
      %p176 = scmp.eq.s32.totalorder %s24, 0
      %p177 = por %p175, %p176
      %s178 = ssub.s32 %s18, %s25
      %p179 = scmp.eq.s32.totalorder %s178, 0
      %s181 = sadd.s32 %s180, 1
      %s182 = scalar_select %p179, %s180, %s181
      %p185 = pneg %p179
      %p186 = scmp.eq.s32.totalorder %s18, 1
      %p187 = por %p185, %p186
      %p188 = scmp.ne.s32.totalorder %s180, %s183
      %p189 = scmp.eq.s32.totalorder %s18, 0
      %p190 = por %p188, %p189
      %p191 = scmp.ne.s32.totalorder %s180, %s183
      %p192 = scmp.eq.s32.totalorder %s23, 1
      %p193 = por %p191, %p192
      %p194 = scmp.ne.s32.totalorder %s183, %s184
      %p195 = scmp.eq.s32.totalorder %s23, 0
      %p196 = por %p194, %p195
      %p197 = scmp.ne.s32.totalorder %s183, %s184
      %p198 = scmp.eq.s32.totalorder %s24, 1
      %p199 = por %p197, %p198
      %p201 = scmp.ne.s32.totalorder %s184, %s200
      %p202 = scmp.eq.s32.totalorder %s24, 0
      %p203 = por %p201, %p202
      %p204 = scmp.le.s32.totalorder 1, %s18
      %p205 = scmp.lt.s32.totalorder %s18, 3
      %p206 = pnand %p204, %p205
      %p207 = pneg %p206
      // Predicated region
      $region9: #{tpu_custom_call.1} parent=5 // pred_check
        _
      $region10: #{tpu_custom_call.1} parent=5 // pred_check_branch
        %209 = sbr.rel (%p206) target = $region12
      $region11: #{tpu_custom_call.1} parent=5 // pred_region
        %s210 = ssub.s32 %s18, 1
        // Predicated region
        $region13: #{tpu_custom_call.1} parent=11 // pred_check
          %p211 = pneg %p65
        $region14: #{tpu_custom_call.1} parent=11 // pred_check_branch
          %213 = sbr.rel (%p211) target = $region16
        $region15: #{tpu_custom_call.1} parent=11 // pred_region
          _
        $region16: #{tpu_custom_call.1} parent=11 // pred_fallthru
          _
        // Predicated region
        $region17: #{tpu_custom_call.1} parent=11 // pred_check
          %p214 = pneg %p86
        $region18: #{tpu_custom_call.1} parent=11 // pred_check_branch
          %216 = sbr.rel (%p214) target = $region20
        $region19: #{tpu_custom_call.1} parent=11 // pred_region
          _
        $region20: #{tpu_custom_call.1} parent=11 // pred_fallthru
          _
        // Predicated region
        $region21: #{tpu_custom_call.1} parent=11 // pred_check
          %p217 = pneg %p107
        $region22: #{tpu_custom_call.1} parent=11 // pred_check_branch
          %219 = sbr.rel (%p217) target = $region24
        $region23: #{tpu_custom_call.1} parent=11 // pred_region
          %s221 = ssub.s32 2048, 2048
          %222 = vsyncadd [#allocation3], %s221
          %s223 = sshll.u32 [#allocation2], 4
          %s224 = int_to_ptr.vmem [resolvable:$true] %s223
          %229 = dma.hbm_to_vmem [thread:$0]  %s3, 2048, %s224, [#allocation3], 128, 128, 8
        $region24: #{tpu_custom_call.1} parent=11 // pred_fallthru
          _
        // Predicated region
        $region25: #{tpu_custom_call.1} parent=11 // pred_check
          %p230 = pneg %p128
        $region26: #{tpu_custom_call.1} parent=11 // pred_check_branch
          %232 = sbr.rel (%p230) target = $region28
        $region27: #{tpu_custom_call.1} parent=11 // pred_region
          _
        $region28: #{tpu_custom_call.1} parent=11 // pred_fallthru
          _
        // Predicated region
        $region29: #{tpu_custom_call.1} parent=11 // pred_check
          %p233 = pneg %p149
        $region30: #{tpu_custom_call.1} parent=11 // pred_check_branch
          %235 = sbr.rel (%p233) target = $region32
        $region31: #{tpu_custom_call.1} parent=11 // pred_region
          %s237 = ssub.s32 2048, 2048
          %238 = vsyncadd [#allocation6], %s237
          %s239 = sshll.u32 [#allocation5], 4
          %s240 = int_to_ptr.vmem [resolvable:$true] %s239
          %245 = dma.hbm_to_vmem [thread:$0]  %s5, 2048, %s240, [#allocation6], 128, 128, 8
        $region32: #{tpu_custom_call.1} parent=11 // pred_fallthru
          _
        // Predicated region
        $region33: #{tpu_custom_call.1} parent=11 // pred_check
          %p246 = pneg %p170
        $region34: #{tpu_custom_call.1} parent=11 // pred_check_branch
          %248 = sbr.rel (%p246) target = $region36
        $region35: #{tpu_custom_call.1} parent=11 // pred_region
          _
        $region36: #{tpu_custom_call.1} parent=11 // pred_fallthru
          _
      $region12: #{tpu_custom_call.1} parent=5 // pred_fallthru
        _
      %p249 = scmp.lt.s32.totalorder %s18, 2
      // Predicated region
      $region37: #{tpu_custom_call.1} parent=5 // pred_check
        %p250 = pneg %p249
      $region38: #{tpu_custom_call.1} parent=5 // pred_check_branch
        %252 = sbr.rel (%p250) target = $region40
      $region39: #{tpu_custom_call.1} parent=5 // pred_region
        // Predicated region
        $region41: #{tpu_custom_call.1} parent=39 // pred_check
          %p253 = pneg %p38
        $region42: #{tpu_custom_call.1} parent=39 // pred_check_branch
          %255 = sbr.rel (%p253) target = $region44
        $region43: #{tpu_custom_call.1} parent=39 // pred_region
          %p256 = scmp.lt.s32.totalorder %s18, 1
          %s257 = scalar_select %p256, %s18, 1
          %s258 = smul.addr %s257, 8
          %s259 = scalar_lea.vmem %s0, %s258
        $region44: #{tpu_custom_call.1} parent=39 // pred_fallthru
          _
      $region40: #{tpu_custom_call.1} parent=5 // pred_fallthru
        _
      %p260 = scmp.le.s32.totalorder 1, %s18
      %p261 = scmp.lt.s32.totalorder %s18, 3
      %p262 = pnand %p260, %p261
      %p263 = pneg %p262
      // Predicated region
      $region45: #{tpu_custom_call.1} parent=5 // pred_check
        _
      $region46: #{tpu_custom_call.1} parent=5 // pred_check_branch
        %265 = sbr.rel (%p262) target = $region48
      $region47: #{tpu_custom_call.1} parent=5 // pred_region
        %s266 = ssub.s32 %s18, 1
        // Predicated region
        $region49: #{tpu_custom_call.1} parent=47 // pred_check
          %p267 = pneg %p107
        $region50: #{tpu_custom_call.1} parent=47 // pred_check_branch
          %269 = sbr.rel (%p267) target = $region52
        $region51: #{tpu_custom_call.1} parent=47 // pred_region
          %270 = dma.done [#allocation3], 2048
        $region52: #{tpu_custom_call.1} parent=47 // pred_fallthru
          _
        // Predicated region
        $region53: #{tpu_custom_call.1} parent=47 // pred_check
          %p271 = pneg %p149
        $region54: #{tpu_custom_call.1} parent=47 // pred_check_branch
          %273 = sbr.rel (%p271) target = $region56
        $region55: #{tpu_custom_call.1} parent=47 // pred_region
          %274 = dma.done [#allocation6], 2048
        $region56: #{tpu_custom_call.1} parent=47 // pred_fallthru
          _
        %p275 = scmp.lt.s32.totalorder %s23, 1
        %s276 = scalar_select %p275, %s23, 1
        %s277 = smul.addr %s276, 8
        %s278 = scalar_lea.vmem %s0, %s277
        %p279 = pneg %p44
        %p280 = pneg %p41
        %p281 = pneg %p65
        %p282 = pneg %p62
        %p283 = pneg %p86
        %p284 = pneg %p83
        %p285 = pneg %p107
        %p286 = pneg %p104
        %p287 = pneg %p128
        %p288 = pneg %p125
        %p289 = pneg %p149
        %p290 = pneg %p146
        %p291 = pneg %p170
        %p292 = pneg %p167
        %p293 = pneg %p196
        %p294 = pneg %p193
        %s295 = sand.u32 %s183, 1
        %s296 = scalar_lea.sflag [#allocation4], %s295
        %s297 = sand.u32 %s183, 1
        %s298 = smul.addr %s297, 8
        %s299 = scalar_lea.vmem [#allocation7], %s298
        %p300 = scmp.lt.s32.totalorder %s23, 1
        %s301 = scalar_select %p300, %s23, 1
        %s302 = smul.addr %s301, 8
        %s303 = scalar_lea.vmem %s0, %s302
        %v304 = vld [vmem:[%s1] sm:$0xf]
        %v305 = vld [vmem:[#allocation2] sm:$0xff]
        %v306 = vld [vmem:[#allocation2 + $0x8] sm:$0xff]
        %v307 = vld [vmem:[#allocation2 + $0x10] sm:$0xff]
        %v308 = vld [vmem:[#allocation2 + $0x18] sm:$0xff]
        %v309 = vld [vmem:[#allocation2 + $0x20] sm:$0xff]
        %v310 = vld [vmem:[#allocation2 + $0x28] sm:$0xff]
        %v311 = vld [vmem:[#allocation2 + $0x30] sm:$0xff]
        %v312 = vld [vmem:[#allocation2 + $0x38] sm:$0xff]
        %v313 = vld [vmem:[#allocation2 + $0x40] sm:$0xff]
        %v314 = vld [vmem:[#allocation2 + $0x48] sm:$0xff]
        %v315 = vld [vmem:[#allocation2 + $0x50] sm:$0xff]
        %v316 = vld [vmem:[#allocation2 + $0x58] sm:$0xff]
        %v317 = vld [vmem:[#allocation2 + $0x60] sm:$0xff]
        %v318 = vld [vmem:[#allocation2 + $0x68] sm:$0xff]
        %v319 = vld [vmem:[#allocation2 + $0x70] sm:$0xff]
        %v320 = vld [vmem:[#allocation2 + $0x78] sm:$0xff]
        %v321 = vld [vmem:[#allocation5] sm:$0xff]
        %v322 = vld [vmem:[#allocation5 + $0x8] sm:$0xff]
        %v323 = vld [vmem:[#allocation5 + $0x10] sm:$0xff]
        %v324 = vld [vmem:[#allocation5 + $0x18] sm:$0xff]
        %v325 = vld [vmem:[#allocation5 + $0x20] sm:$0xff]
        %v326 = vld [vmem:[#allocation5 + $0x28] sm:$0xff]
        %v327 = vld [vmem:[#allocation5 + $0x30] sm:$0xff]
        %v328 = vld [vmem:[#allocation5 + $0x38] sm:$0xff]
        %v329 = vld [vmem:[#allocation5 + $0x40] sm:$0xff]
        %v330 = vld [vmem:[#allocation5 + $0x48] sm:$0xff]
        %v331 = vld [vmem:[#allocation5 + $0x50] sm:$0xff]
        %v332 = vld [vmem:[#allocation5 + $0x58] sm:$0xff]
        %v333 = vld [vmem:[#allocation5 + $0x60] sm:$0xff]
        %v334 = vld [vmem:[#allocation5 + $0x68] sm:$0xff]
        %v335 = vld [vmem:[#allocation5 + $0x70] sm:$0xff]
        %v336 = vld [vmem:[#allocation5 + $0x78] sm:$0xff]
        %v337 = vld [vmem:[%s2] sm:$0x1]
        %v338 = vld [vmem:[%s4] sm:$0x1]
        %v339 = vld [vmem:[%s6] sm:$0x1]
        %v340 = vld [vmem:[%s303] sm:$0xff]
        %v342 = vlaneseq
        %v343 = vshrl.u32 %v342, 7
        %v344 = vsub.s32 0, %v343
        %v345 = vrot.slane %v337, %v344
        %vm347 = vcmask 31744
        %v349 = vsel %vm347, %v340, 0
        %vm351 = vcmask 1043456
        %v353 = vsel %vm351, %v304, 0
        %355 = vmatprep.subr.mxu0 0.0
        %356 = vmatpush1.msra.mxu0 0.0
        %357 = vmatprep.subr.mxu0 0.0
        %358 = vmatpush1.msra.mxu0 0.0
        %359 = vmatprep.subr.mxu0 0.0
        %360 = vmatpush1.msra.mxu0 0.0
        %361 = vmatprep.subr.mxu0 0.0
        %362 = vmatpush1.msra.mxu0 0.0
        %363 = vmatprep.subr.mxu0 0.0
        %364 = vmatpush1.msra.mxu0 0.0
        %365 = vmatprep.subr.mxu0 0.0
        %366 = vmatpush1.msra.mxu0 0.0
        %367 = vmatprep.subr.mxu0 0.0
        %368 = vmatpush1.msra.mxu0 0.0
        %369 = vmatprep.subr.mxu0 0.0
        %370 = vmatpush1.msra.mxu0 0.0
        %371 = vmatprep.subr.mxu0 0.0
        %372 = vmatpush1.msra.mxu0 0.0
        %373 = vmatprep.subr.mxu0 0.0
        %374 = vmatpush1.msra.mxu0 0.0
        %375 = vmatprep.subr.mxu0 0.0
        %376 = vmatpush1.msra.mxu0 0.0
        %377 = vmatprep.subr.mxu0 0.0
        %378 = vmatpush1.msra.mxu0 0.0
        %379 = vmatprep.subr.mxu0 0.0
        %380 = vmatpush1.msra.mxu0 0.0
        %381 = vmatprep.subr.mxu0 0.0
        %382 = vmatpush1.msra.mxu0 0.0
        %383 = vmatprep.subr.mxu0 0.0
        %384 = vmatpush1.msra.mxu0 0.0
        %385 = vmatprep.subr.mxu0 0.0
        %v386 = vand.u32 %v353, 4294901760
        %387 = vmatpush1.msra.mxu0 %v386
        %388 = vmatprep.subr.mxu0 0.0
        %389 = vmatpush2.msra.mxu0 0.0
        %390 = vmatprep.subr.mxu0 0.0
        %391 = vmatpush2.msra.mxu0 0.0
        %392 = vmatprep.subr.mxu0 0.0
        %393 = vmatpush2.msra.mxu0 0.0
        %394 = vmatprep.subr.mxu0 0.0
        %395 = vmatpush2.msra.mxu0 0.0
        %396 = vmatprep.subr.mxu0 0.0
        %397 = vmatpush2.msra.mxu0 0.0
        %398 = vmatprep.subr.mxu0 0.0
        %399 = vmatpush2.msra.mxu0 0.0
        %400 = vmatprep.subr.mxu0 0.0
        %401 = vmatpush2.msra.mxu0 0.0
        %402 = vmatprep.subr.mxu0 0.0
        %403 = vmatpush2.msra.mxu0 0.0
        %404 = vmatprep.subr.mxu0 0.0
        %405 = vmatpush2.msra.mxu0 0.0
        %406 = vmatprep.subr.mxu0 0.0
        %407 = vmatpush2.msra.mxu0 0.0
        %408 = vmatprep.subr.mxu0 0.0
        %409 = vmatpush2.msra.mxu0 0.0
        %410 = vmatprep.subr.mxu0 0.0
        %411 = vmatpush2.msra.mxu0 0.0
        %412 = vmatprep.subr.mxu0 0.0
        %413 = vmatpush2.msra.mxu0 0.0
        %414 = vmatprep.subr.mxu0 0.0
        %415 = vmatpush2.msra.mxu0 0.0
        %416 = vmatprep.subr.mxu0 0.0
        %417 = vmatpush2.msra.mxu0 0.0
        %418 = vmatprep.subr.mxu0 0.0
        %419 = vmatpush2.msra.mxu0 0.0
        %420 = vmatprep.mubr.f32.mxu0 0.0
        %v421 = vand.u32 %v349, 4294901760
        %v422 = vsub.f32 %v349, %v421
        %v423 = vand.u32 %v422, 4294901760
        %v424 = vsub.f32 %v422, %v423
        %v425 = vand.u32 %v424, 4294901760
        %426 = vmatmul.mubr.f32.gmra.mxu0 %v425
        %v427 = vpop.f32.mrf.mxu0
        %v428 = vadd.f32 %v345, %v427
        %v429 = vpop.f32.mrf.mxu0
        %430 = vdwg.mxu0
        %431 = vmatprep.subr.mxu0 0.0
        %432 = vmatpush1.msra.mxu0 0.0
        %433 = vmatprep.subr.mxu0 0.0
        %434 = vmatpush1.msra.mxu0 0.0
        %435 = vmatprep.subr.mxu0 0.0
        %436 = vmatpush1.msra.mxu0 0.0
        %437 = vmatprep.subr.mxu0 0.0
        %438 = vmatpush1.msra.mxu0 0.0
        %439 = vmatprep.subr.mxu0 0.0
        %440 = vmatpush1.msra.mxu0 0.0
        %441 = vmatprep.subr.mxu0 0.0
        %442 = vmatpush1.msra.mxu0 0.0
        %443 = vmatprep.subr.mxu0 0.0
        %444 = vmatpush1.msra.mxu0 0.0
        %445 = vmatprep.subr.mxu0 0.0
        %446 = vmatpush1.msra.mxu0 0.0
        %447 = vmatprep.subr.mxu0 0.0
        %448 = vmatpush1.msra.mxu0 0.0
        %449 = vmatprep.subr.mxu0 0.0
        %450 = vmatpush1.msra.mxu0 0.0
        %451 = vmatprep.subr.mxu0 0.0
        %452 = vmatpush1.msra.mxu0 0.0
        %453 = vmatprep.subr.mxu0 0.0
        %454 = vmatpush1.msra.mxu0 0.0
        %455 = vmatprep.subr.mxu0 0.0
        %456 = vmatpush1.msra.mxu0 0.0
        %457 = vmatprep.subr.mxu0 0.0
        %458 = vmatpush1.msra.mxu0 0.0
        %459 = vmatprep.subr.mxu0 0.0
        %460 = vmatpush1.msra.mxu0 0.0
        %461 = vmatprep.subr.mxu0 0.0
        %v462 = vand.u32 %v353, 4294901760
        %v463 = vsub.f32 %v353, %v462
        %v464 = vand.u32 %v463, 4294901760
        %v465 = vsub.f32 %v463, %v464
        %v466 = vand.u32 %v465, 4294901760
        %467 = vmatpush1.msra.mxu0 %v466
        %468 = vmatprep.subr.mxu0 0.0
        %469 = vmatpush2.msra.mxu0 0.0
        %470 = vmatprep.subr.mxu0 0.0
        %471 = vmatpush2.msra.mxu0 0.0
        %472 = vmatprep.subr.mxu0 0.0
        %473 = vmatpush2.msra.mxu0 0.0
        %474 = vmatprep.subr.mxu0 0.0
        %475 = vmatpush2.msra.mxu0 0.0
        %476 = vmatprep.subr.mxu0 0.0
        %477 = vmatpush2.msra.mxu0 0.0
        %478 = vmatprep.subr.mxu0 0.0
        %479 = vmatpush2.msra.mxu0 0.0
        %480 = vmatprep.subr.mxu0 0.0
        %481 = vmatpush2.msra.mxu0 0.0
        %482 = vmatprep.subr.mxu0 0.0
        %483 = vmatpush2.msra.mxu0 0.0
        %484 = vmatprep.subr.mxu0 0.0
        %485 = vmatpush2.msra.mxu0 0.0
        %486 = vmatprep.subr.mxu0 0.0
        %487 = vmatpush2.msra.mxu0 0.0
        %488 = vmatprep.subr.mxu0 0.0
        %489 = vmatpush2.msra.mxu0 0.0
        %490 = vmatprep.subr.mxu0 0.0
        %491 = vmatpush2.msra.mxu0 0.0
        %492 = vmatprep.subr.mxu0 0.0
        %493 = vmatpush2.msra.mxu0 0.0
        %494 = vmatprep.subr.mxu0 0.0
        %495 = vmatpush2.msra.mxu0 0.0
        %496 = vmatprep.subr.mxu0 0.0
        %497 = vmatpush2.msra.mxu0 0.0
        %498 = vmatprep.subr.mxu0 0.0
        %499 = vmatpush2.msra.mxu0 0.0
        %500 = vmatprep.mubr.f32.mxu0 0.0
        %v501 = vand.u32 %v349, 4294901760
        %502 = vmatmul.mubr.f32.gmra.mxu0 %v501
        %v503 = vpop.f32.mrf.mxu0
        %v504 = vadd.f32 %v428, %v503
        %v505 = vpop.f32.mrf.mxu0
        %506 = vdwg.mxu0
        %507 = vmatprep.subr.mxu0 0.0
        %508 = vmatpush1.msra.mxu0 0.0
        %509 = vmatprep.subr.mxu0 0.0
        %510 = vmatpush1.msra.mxu0 0.0
        %511 = vmatprep.subr.mxu0 0.0
        %512 = vmatpush1.msra.mxu0 0.0
        %513 = vmatprep.subr.mxu0 0.0
        %514 = vmatpush1.msra.mxu0 0.0
        %515 = vmatprep.subr.mxu0 0.0
        %516 = vmatpush1.msra.mxu0 0.0
        %517 = vmatprep.subr.mxu0 0.0
        %518 = vmatpush1.msra.mxu0 0.0
        %519 = vmatprep.subr.mxu0 0.0
        %520 = vmatpush1.msra.mxu0 0.0
        %521 = vmatprep.subr.mxu0 0.0
        %522 = vmatpush1.msra.mxu0 0.0
        %523 = vmatprep.subr.mxu0 0.0
        %524 = vmatpush1.msra.mxu0 0.0
        %525 = vmatprep.subr.mxu0 0.0
        %526 = vmatpush1.msra.mxu0 0.0
        %527 = vmatprep.subr.mxu0 0.0
        %528 = vmatpush1.msra.mxu0 0.0
        %529 = vmatprep.subr.mxu0 0.0
        %530 = vmatpush1.msra.mxu0 0.0
        %531 = vmatprep.subr.mxu0 0.0
        %532 = vmatpush1.msra.mxu0 0.0
        %533 = vmatprep.subr.mxu0 0.0
        %534 = vmatpush1.msra.mxu0 0.0
        %535 = vmatprep.subr.mxu0 0.0
        %536 = vmatpush1.msra.mxu0 0.0
        %537 = vmatprep.subr.mxu0 0.0
        %v538 = vand.u32 %v353, 4294901760
        %v539 = vsub.f32 %v353, %v538
        %540 = vmatpush1.msra.mxu0 %v539
        %541 = vmatprep.subr.mxu0 0.0
        %542 = vmatpush2.msra.mxu0 0.0
        %543 = vmatprep.subr.mxu0 0.0
        %544 = vmatpush2.msra.mxu0 0.0
        %545 = vmatprep.subr.mxu0 0.0
        %546 = vmatpush2.msra.mxu0 0.0
        %547 = vmatprep.subr.mxu0 0.0
        %548 = vmatpush2.msra.mxu0 0.0
        %549 = vmatprep.subr.mxu0 0.0
        %550 = vmatpush2.msra.mxu0 0.0
        %551 = vmatprep.subr.mxu0 0.0
        %552 = vmatpush2.msra.mxu0 0.0
        %553 = vmatprep.subr.mxu0 0.0
        %554 = vmatpush2.msra.mxu0 0.0
        %555 = vmatprep.subr.mxu0 0.0
        %556 = vmatpush2.msra.mxu0 0.0
        %557 = vmatprep.subr.mxu0 0.0
        %558 = vmatpush2.msra.mxu0 0.0
        %559 = vmatprep.subr.mxu0 0.0
        %560 = vmatpush2.msra.mxu0 0.0
        %561 = vmatprep.subr.mxu0 0.0
        %562 = vmatpush2.msra.mxu0 0.0
        %563 = vmatprep.subr.mxu0 0.0
        %564 = vmatpush2.msra.mxu0 0.0
        %565 = vmatprep.subr.mxu0 0.0
        %566 = vmatpush2.msra.mxu0 0.0
        %567 = vmatprep.subr.mxu0 0.0
        %568 = vmatpush2.msra.mxu0 0.0
        %569 = vmatprep.subr.mxu0 0.0
        %570 = vmatpush2.msra.mxu0 0.0
        %571 = vmatprep.subr.mxu0 0.0
        %572 = vmatpush2.msra.mxu0 0.0
        %573 = vmatprep.mubr.f32.mxu0 0.0
        %v574 = vand.u32 %v349, 4294901760
        %v575 = vsub.f32 %v349, %v574
        %576 = vmatmul.mubr.f32.gmra.mxu0 %v575
        %v577 = vpop.f32.mrf.mxu0
        %v578 = vadd.f32 %v504, %v577
        %v579 = vpop.f32.mrf.mxu0
        %580 = vdwg.mxu0
        %581 = vmatprep.subr.mxu0 0.0
        %582 = vmatpush1.msra.mxu0 0.0
        %583 = vmatprep.subr.mxu0 0.0
        %584 = vmatpush1.msra.mxu0 0.0
        %585 = vmatprep.subr.mxu0 0.0
        %586 = vmatpush1.msra.mxu0 0.0
        %587 = vmatprep.subr.mxu0 0.0
        %588 = vmatpush1.msra.mxu0 0.0
        %589 = vmatprep.subr.mxu0 0.0
        %590 = vmatpush1.msra.mxu0 0.0
        %591 = vmatprep.subr.mxu0 0.0
        %592 = vmatpush1.msra.mxu0 0.0
        %593 = vmatprep.subr.mxu0 0.0
        %594 = vmatpush1.msra.mxu0 0.0
        %595 = vmatprep.subr.mxu0 0.0
        %596 = vmatpush1.msra.mxu0 0.0
        %597 = vmatprep.subr.mxu0 0.0
        %598 = vmatpush1.msra.mxu0 0.0
        %599 = vmatprep.subr.mxu0 0.0
        %600 = vmatpush1.msra.mxu0 0.0
        %601 = vmatprep.subr.mxu0 0.0
        %602 = vmatpush1.msra.mxu0 0.0
        %603 = vmatprep.subr.mxu0 0.0
        %604 = vmatpush1.msra.mxu0 0.0
        %605 = vmatprep.subr.mxu0 0.0
        %606 = vmatpush1.msra.mxu0 0.0
        %607 = vmatprep.subr.mxu0 0.0
        %608 = vmatpush1.msra.mxu0 0.0
        %609 = vmatprep.subr.mxu0 0.0
        %610 = vmatpush1.msra.mxu0 0.0
        %611 = vmatprep.subr.mxu0 0.0
        %v612 = vand.u32 %v353, 4294901760
        %613 = vmatpush1.msra.mxu0 %v612
        %614 = vmatprep.subr.mxu0 0.0
        %615 = vmatpush2.msra.mxu0 0.0
        %616 = vmatprep.subr.mxu0 0.0
        %617 = vmatpush2.msra.mxu0 0.0
        %618 = vmatprep.subr.mxu0 0.0
        %619 = vmatpush2.msra.mxu0 0.0
        %620 = vmatprep.subr.mxu0 0.0
        %621 = vmatpush2.msra.mxu0 0.0
        %622 = vmatprep.subr.mxu0 0.0
        %623 = vmatpush2.msra.mxu0 0.0
        %624 = vmatprep.subr.mxu0 0.0
        %625 = vmatpush2.msra.mxu0 0.0
        %626 = vmatprep.subr.mxu0 0.0
        %627 = vmatpush2.msra.mxu0 0.0
        %628 = vmatprep.subr.mxu0 0.0
        %629 = vmatpush2.msra.mxu0 0.0
        %630 = vmatprep.subr.mxu0 0.0
        %631 = vmatpush2.msra.mxu0 0.0
        %632 = vmatprep.subr.mxu0 0.0
        %633 = vmatpush2.msra.mxu0 0.0
        %634 = vmatprep.subr.mxu0 0.0
        %635 = vmatpush2.msra.mxu0 0.0
        %636 = vmatprep.subr.mxu0 0.0
        %637 = vmatpush2.msra.mxu0 0.0
        %638 = vmatprep.subr.mxu0 0.0
        %639 = vmatpush2.msra.mxu0 0.0
        %640 = vmatprep.subr.mxu0 0.0
        %641 = vmatpush2.msra.mxu0 0.0
        %642 = vmatprep.subr.mxu0 0.0
        %643 = vmatpush2.msra.mxu0 0.0
        %644 = vmatprep.subr.mxu0 0.0
        %645 = vmatpush2.msra.mxu0 0.0
        %646 = vmatprep.mubr.f32.mxu0 0.0
        %v647 = vand.u32 %v349, 4294901760
        %v648 = vsub.f32 %v349, %v647
        %v649 = vand.u32 %v648, 4294901760
        %650 = vmatmul.mubr.f32.gmra.mxu0 %v649
        %v651 = vpop.f32.mrf.mxu0
        %v652 = vadd.f32 %v578, %v651
        %v653 = vpop.f32.mrf.mxu0
        %654 = vdwg.mxu0
        %655 = vmatprep.subr.mxu0 0.0
        %656 = vmatpush1.msra.mxu0 0.0
        %657 = vmatprep.subr.mxu0 0.0
        %658 = vmatpush1.msra.mxu0 0.0
        %659 = vmatprep.subr.mxu0 0.0
        %660 = vmatpush1.msra.mxu0 0.0
        %661 = vmatprep.subr.mxu0 0.0
        %662 = vmatpush1.msra.mxu0 0.0
        %663 = vmatprep.subr.mxu0 0.0
        %664 = vmatpush1.msra.mxu0 0.0
        %665 = vmatprep.subr.mxu0 0.0
        %666 = vmatpush1.msra.mxu0 0.0
        %667 = vmatprep.subr.mxu0 0.0
        %668 = vmatpush1.msra.mxu0 0.0
        %669 = vmatprep.subr.mxu0 0.0
        %670 = vmatpush1.msra.mxu0 0.0
        %671 = vmatprep.subr.mxu0 0.0
        %672 = vmatpush1.msra.mxu0 0.0
        %673 = vmatprep.subr.mxu0 0.0
        %674 = vmatpush1.msra.mxu0 0.0
        %675 = vmatprep.subr.mxu0 0.0
        %676 = vmatpush1.msra.mxu0 0.0
        %677 = vmatprep.subr.mxu0 0.0
        %678 = vmatpush1.msra.mxu0 0.0
        %679 = vmatprep.subr.mxu0 0.0
        %680 = vmatpush1.msra.mxu0 0.0
        %681 = vmatprep.subr.mxu0 0.0
        %682 = vmatpush1.msra.mxu0 0.0
        %683 = vmatprep.subr.mxu0 0.0
        %684 = vmatpush1.msra.mxu0 0.0
        %685 = vmatprep.subr.mxu0 0.0
        %v686 = vand.u32 %v353, 4294901760
        %v687 = vsub.f32 %v353, %v686
        %v688 = vand.u32 %v687, 4294901760
        %689 = vmatpush1.msra.mxu0 %v688
        %690 = vmatprep.subr.mxu0 0.0
        %691 = vmatpush2.msra.mxu0 0.0
        %692 = vmatprep.subr.mxu0 0.0
        %693 = vmatpush2.msra.mxu0 0.0
        %694 = vmatprep.subr.mxu0 0.0
        %695 = vmatpush2.msra.mxu0 0.0
        %696 = vmatprep.subr.mxu0 0.0
        %697 = vmatpush2.msra.mxu0 0.0
        %698 = vmatprep.subr.mxu0 0.0
        %699 = vmatpush2.msra.mxu0 0.0
        %700 = vmatprep.subr.mxu0 0.0
        %701 = vmatpush2.msra.mxu0 0.0
        %702 = vmatprep.subr.mxu0 0.0
        %703 = vmatpush2.msra.mxu0 0.0
        %704 = vmatprep.subr.mxu0 0.0
        %705 = vmatpush2.msra.mxu0 0.0
        %706 = vmatprep.subr.mxu0 0.0
        %707 = vmatpush2.msra.mxu0 0.0
        %708 = vmatprep.subr.mxu0 0.0
        %709 = vmatpush2.msra.mxu0 0.0
        %710 = vmatprep.subr.mxu0 0.0
        %711 = vmatpush2.msra.mxu0 0.0
        %712 = vmatprep.subr.mxu0 0.0
        %713 = vmatpush2.msra.mxu0 0.0
        %714 = vmatprep.subr.mxu0 0.0
        %715 = vmatpush2.msra.mxu0 0.0
        %716 = vmatprep.subr.mxu0 0.0
        %717 = vmatpush2.msra.mxu0 0.0
        %718 = vmatprep.subr.mxu0 0.0
        %719 = vmatpush2.msra.mxu0 0.0
        %720 = vmatprep.subr.mxu0 0.0
        %721 = vmatpush2.msra.mxu0 0.0
        %722 = vmatprep.mubr.f32.mxu0 0.0
        %v723 = vand.u32 %v349, 4294901760
        %724 = vmatmul.mubr.f32.gmra.mxu0 %v723
        %v725 = vpop.f32.mrf.mxu0
        %v726 = vadd.f32 %v652, %v725
        %v727 = vpop.f32.mrf.mxu0
        %728 = vdwg.mxu0
        %729 = vmatprep.subr.mxu0 0.0
        %730 = vmatpush1.msra.mxu0 0.0
        %731 = vmatprep.subr.mxu0 0.0
        %732 = vmatpush1.msra.mxu0 0.0
        %733 = vmatprep.subr.mxu0 0.0
        %734 = vmatpush1.msra.mxu0 0.0
        %735 = vmatprep.subr.mxu0 0.0
        %736 = vmatpush1.msra.mxu0 0.0
        %737 = vmatprep.subr.mxu0 0.0
        %738 = vmatpush1.msra.mxu0 0.0
        %739 = vmatprep.subr.mxu0 0.0
        %740 = vmatpush1.msra.mxu0 0.0
        %741 = vmatprep.subr.mxu0 0.0
        %742 = vmatpush1.msra.mxu0 0.0
        %743 = vmatprep.subr.mxu0 0.0
        %744 = vmatpush1.msra.mxu0 0.0
        %745 = vmatprep.subr.mxu0 0.0
        %746 = vmatpush1.msra.mxu0 0.0
        %747 = vmatprep.subr.mxu0 0.0
        %748 = vmatpush1.msra.mxu0 0.0
        %749 = vmatprep.subr.mxu0 0.0
        %750 = vmatpush1.msra.mxu0 0.0
        %751 = vmatprep.subr.mxu0 0.0
        %752 = vmatpush1.msra.mxu0 0.0
        %753 = vmatprep.subr.mxu0 0.0
        %754 = vmatpush1.msra.mxu0 0.0
        %755 = vmatprep.subr.mxu0 0.0
        %756 = vmatpush1.msra.mxu0 0.0
        %757 = vmatprep.subr.mxu0 0.0
        %758 = vmatpush1.msra.mxu0 0.0
        %759 = vmatprep.subr.mxu0 0.0
        %v760 = vand.u32 %v353, 4294901760
        %761 = vmatpush1.msra.mxu0 %v760
        %762 = vmatprep.subr.mxu0 0.0
        %763 = vmatpush2.msra.mxu0 0.0
        %764 = vmatprep.subr.mxu0 0.0
        %765 = vmatpush2.msra.mxu0 0.0
        %766 = vmatprep.subr.mxu0 0.0
        %767 = vmatpush2.msra.mxu0 0.0
        %768 = vmatprep.subr.mxu0 0.0
        %769 = vmatpush2.msra.mxu0 0.0
        %770 = vmatprep.subr.mxu0 0.0
        %771 = vmatpush2.msra.mxu0 0.0
        %772 = vmatprep.subr.mxu0 0.0
        %773 = vmatpush2.msra.mxu0 0.0
        %774 = vmatprep.subr.mxu0 0.0
        %775 = vmatpush2.msra.mxu0 0.0
        %776 = vmatprep.subr.mxu0 0.0
        %777 = vmatpush2.msra.mxu0 0.0
        %778 = vmatprep.subr.mxu0 0.0
        %779 = vmatpush2.msra.mxu0 0.0
        %780 = vmatprep.subr.mxu0 0.0
        %781 = vmatpush2.msra.mxu0 0.0
        %782 = vmatprep.subr.mxu0 0.0
        %783 = vmatpush2.msra.mxu0 0.0
        %784 = vmatprep.subr.mxu0 0.0
        %785 = vmatpush2.msra.mxu0 0.0
        %786 = vmatprep.subr.mxu0 0.0
        %787 = vmatpush2.msra.mxu0 0.0
        %788 = vmatprep.subr.mxu0 0.0
        %789 = vmatpush2.msra.mxu0 0.0
        %790 = vmatprep.subr.mxu0 0.0
        %791 = vmatpush2.msra.mxu0 0.0
        %792 = vmatprep.subr.mxu0 0.0
        %793 = vmatpush2.msra.mxu0 0.0
        %794 = vmatprep.mubr.f32.mxu0 0.0
        %v795 = vand.u32 %v349, 4294901760
        %796 = vmatmul.mubr.f32.gmra.mxu0 %v795
        %v797 = vpop.f32.mrf.mxu0
        %v798 = vadd.f32 %v726, %v797
        %v799 = vpop.f32.mrf.mxu0
        %800 = vdwg.mxu0
        %v801 = vmax.f32 %v798, 0.0
        %v803 = vlaneseq
        %v804 = vshrl.u32 %v803, 7
        %v805 = vsub.s32 0, %v804
        %v806 = vrot.slane %v338, %v805
        %808 = vmatprep.subr.mxu0 0.0
        %v809 = vand.u32 %v320, 4294901760
        %810 = vmatpush1.msra.mxu0 %v809
        %811 = vmatprep.subr.mxu0 0.0
        %v812 = vand.u32 %v319, 4294901760
        %813 = vmatpush1.msra.mxu0 %v812
        %814 = vmatprep.subr.mxu0 0.0
        %v815 = vand.u32 %v318, 4294901760
        %816 = vmatpush1.msra.mxu0 %v815
        %817 = vmatprep.subr.mxu0 0.0
        %v818 = vand.u32 %v317, 4294901760
        %819 = vmatpush1.msra.mxu0 %v818
        %820 = vmatprep.subr.mxu0 0.0
        %v821 = vand.u32 %v316, 4294901760
        %822 = vmatpush1.msra.mxu0 %v821
        %823 = vmatprep.subr.mxu0 0.0
        %v824 = vand.u32 %v315, 4294901760
        %825 = vmatpush1.msra.mxu0 %v824
        %826 = vmatprep.subr.mxu0 0.0
        %v827 = vand.u32 %v314, 4294901760
        %828 = vmatpush1.msra.mxu0 %v827
        %829 = vmatprep.subr.mxu0 0.0
        %v830 = vand.u32 %v313, 4294901760
        %831 = vmatpush1.msra.mxu0 %v830
        %832 = vmatprep.subr.mxu0 0.0
        %v833 = vand.u32 %v312, 4294901760
        %834 = vmatpush1.msra.mxu0 %v833
        %835 = vmatprep.subr.mxu0 0.0
        %v836 = vand.u32 %v311, 4294901760
        %837 = vmatpush1.msra.mxu0 %v836
        %838 = vmatprep.subr.mxu0 0.0
        %v839 = vand.u32 %v310, 4294901760
        %840 = vmatpush1.msra.mxu0 %v839
        %841 = vmatprep.subr.mxu0 0.0
        %v842 = vand.u32 %v309, 4294901760
        %843 = vmatpush1.msra.mxu0 %v842
        %844 = vmatprep.subr.mxu0 0.0
        %v845 = vand.u32 %v308, 4294901760
        %846 = vmatpush1.msra.mxu0 %v845
        %847 = vmatprep.subr.mxu0 0.0
        %v848 = vand.u32 %v307, 4294901760
        %849 = vmatpush1.msra.mxu0 %v848
        %850 = vmatprep.subr.mxu0 0.0
        %v851 = vand.u32 %v306, 4294901760
        %852 = vmatpush1.msra.mxu0 %v851
        %853 = vmatprep.subr.mxu0 0.0
        %v854 = vand.u32 %v305, 4294901760
        %855 = vmatpush1.msra.mxu0 %v854
        %856 = vmatprep.subr.mxu0 0.0
        %857 = vmatpush2.msra.mxu0 0.0
        %858 = vmatprep.subr.mxu0 0.0
        %859 = vmatpush2.msra.mxu0 0.0
        %860 = vmatprep.subr.mxu0 0.0
        %861 = vmatpush2.msra.mxu0 0.0
        %862 = vmatprep.subr.mxu0 0.0
        %863 = vmatpush2.msra.mxu0 0.0
        %864 = vmatprep.subr.mxu0 0.0
        %865 = vmatpush2.msra.mxu0 0.0
        %866 = vmatprep.subr.mxu0 0.0
        %867 = vmatpush2.msra.mxu0 0.0
        %868 = vmatprep.subr.mxu0 0.0
        %869 = vmatpush2.msra.mxu0 0.0
        %870 = vmatprep.subr.mxu0 0.0
        %871 = vmatpush2.msra.mxu0 0.0
        %872 = vmatprep.subr.mxu0 0.0
        %873 = vmatpush2.msra.mxu0 0.0
        %874 = vmatprep.subr.mxu0 0.0
        %875 = vmatpush2.msra.mxu0 0.0
        %876 = vmatprep.subr.mxu0 0.0
        %877 = vmatpush2.msra.mxu0 0.0
        %878 = vmatprep.subr.mxu0 0.0
        %879 = vmatpush2.msra.mxu0 0.0
        %880 = vmatprep.subr.mxu0 0.0
        %881 = vmatpush2.msra.mxu0 0.0
        %882 = vmatprep.subr.mxu0 0.0
        %883 = vmatpush2.msra.mxu0 0.0
        %884 = vmatprep.subr.mxu0 0.0
        %885 = vmatpush2.msra.mxu0 0.0
        %886 = vmatprep.subr.mxu0 0.0
        %887 = vmatpush2.msra.mxu0 0.0
        %888 = vmatprep.mubr.f32.mxu0 0.0
        %v889 = vand.u32 %v801, 4294901760
        %v890 = vsub.f32 %v801, %v889
        %v891 = vand.u32 %v890, 4294901760
        %v892 = vsub.f32 %v890, %v891
        %v893 = vand.u32 %v892, 4294901760
        %894 = vmatmul.mubr.f32.gmra.mxu0 %v893
        %v895 = vpop.f32.mrf.mxu0
        %v896 = vadd.f32 %v806, %v895
        %v897 = vpop.f32.mrf.mxu0
        %898 = vdwg.mxu0
        %899 = vmatprep.subr.mxu0 0.0
        %v900 = vand.u32 %v320, 4294901760
        %v901 = vsub.f32 %v320, %v900
        %v902 = vand.u32 %v901, 4294901760
        %v903 = vsub.f32 %v901, %v902
        %v904 = vand.u32 %v903, 4294901760
        %905 = vmatpush1.msra.mxu0 %v904
        %906 = vmatprep.subr.mxu0 0.0
        %v907 = vand.u32 %v319, 4294901760
        %v908 = vsub.f32 %v319, %v907
        %v909 = vand.u32 %v908, 4294901760
        %v910 = vsub.f32 %v908, %v909
        %v911 = vand.u32 %v910, 4294901760
        %912 = vmatpush1.msra.mxu0 %v911
        %913 = vmatprep.subr.mxu0 0.0
        %v914 = vand.u32 %v318, 4294901760
        %v915 = vsub.f32 %v318, %v914
        %v916 = vand.u32 %v915, 4294901760
        %v917 = vsub.f32 %v915, %v916
        %v918 = vand.u32 %v917, 4294901760
        %919 = vmatpush1.msra.mxu0 %v918
        %920 = vmatprep.subr.mxu0 0.0
        %v921 = vand.u32 %v317, 4294901760
        %v922 = vsub.f32 %v317, %v921
        %v923 = vand.u32 %v922, 4294901760
        %v924 = vsub.f32 %v922, %v923
        %v925 = vand.u32 %v924, 4294901760
        %926 = vmatpush1.msra.mxu0 %v925
        %927 = vmatprep.subr.mxu0 0.0
        %v928 = vand.u32 %v316, 4294901760
        %v929 = vsub.f32 %v316, %v928
        %v930 = vand.u32 %v929, 4294901760
        %v931 = vsub.f32 %v929, %v930
        %v932 = vand.u32 %v931, 4294901760
        %933 = vmatpush1.msra.mxu0 %v932
        %934 = vmatprep.subr.mxu0 0.0
        %v935 = vand.u32 %v315, 4294901760
        %v936 = vsub.f32 %v315, %v935
        %v937 = vand.u32 %v936, 4294901760
        %v938 = vsub.f32 %v936, %v937
        %v939 = vand.u32 %v938, 4294901760
        %940 = vmatpush1.msra.mxu0 %v939
        %941 = vmatprep.subr.mxu0 0.0
        %v942 = vand.u32 %v314, 4294901760
        %v943 = vsub.f32 %v314, %v942
        %v944 = vand.u32 %v943, 4294901760
        %v945 = vsub.f32 %v943, %v944
        %v946 = vand.u32 %v945, 4294901760
        %947 = vmatpush1.msra.mxu0 %v946
        %948 = vmatprep.subr.mxu0 0.0
        %v949 = vand.u32 %v313, 4294901760
        %v950 = vsub.f32 %v313, %v949
        %v951 = vand.u32 %v950, 4294901760
        %v952 = vsub.f32 %v950, %v951
        %v953 = vand.u32 %v952, 4294901760
        %954 = vmatpush1.msra.mxu0 %v953
        %955 = vmatprep.subr.mxu0 0.0
        %v956 = vand.u32 %v312, 4294901760
        %v957 = vsub.f32 %v312, %v956
        %v958 = vand.u32 %v957, 4294901760
        %v959 = vsub.f32 %v957, %v958
        %v960 = vand.u32 %v959, 4294901760
        %961 = vmatpush1.msra.mxu0 %v960
        %962 = vmatprep.subr.mxu0 0.0
        %v963 = vand.u32 %v311, 4294901760
        %v964 = vsub.f32 %v311, %v963
        %v965 = vand.u32 %v964, 4294901760
        %v966 = vsub.f32 %v964, %v965
        %v967 = vand.u32 %v966, 4294901760
        %968 = vmatpush1.msra.mxu0 %v967
        %969 = vmatprep.subr.mxu0 0.0
        %v970 = vand.u32 %v310, 4294901760
        %v971 = vsub.f32 %v310, %v970
        %v972 = vand.u32 %v971, 4294901760
        %v973 = vsub.f32 %v971, %v972
        %v974 = vand.u32 %v973, 4294901760
        %975 = vmatpush1.msra.mxu0 %v974
        %976 = vmatprep.subr.mxu0 0.0
        %v977 = vand.u32 %v309, 4294901760
        %v978 = vsub.f32 %v309, %v977
        %v979 = vand.u32 %v978, 4294901760
        %v980 = vsub.f32 %v978, %v979
        %v981 = vand.u32 %v980, 4294901760
        %982 = vmatpush1.msra.mxu0 %v981
        %983 = vmatprep.subr.mxu0 0.0
        %v984 = vand.u32 %v308, 4294901760
        %v985 = vsub.f32 %v308, %v984
        %v986 = vand.u32 %v985, 4294901760
        %v987 = vsub.f32 %v985, %v986
        %v988 = vand.u32 %v987, 4294901760
        %989 = vmatpush1.msra.mxu0 %v988
        %990 = vmatprep.subr.mxu0 0.0
        %v991 = vand.u32 %v307, 4294901760
        %v992 = vsub.f32 %v307, %v991
        %v993 = vand.u32 %v992, 4294901760
        %v994 = vsub.f32 %v992, %v993
        %v995 = vand.u32 %v994, 4294901760
        %996 = vmatpush1.msra.mxu0 %v995
        %997 = vmatprep.subr.mxu0 0.0
        %v998 = vand.u32 %v306, 4294901760
        %v999 = vsub.f32 %v306, %v998
        %v1000 = vand.u32 %v999, 4294901760
        %v1001 = vsub.f32 %v999, %v1000
        %v1002 = vand.u32 %v1001, 4294901760
        %1003 = vmatpush1.msra.mxu0 %v1002
        %1004 = vmatprep.subr.mxu0 0.0
        %v1005 = vand.u32 %v305, 4294901760
        %v1006 = vsub.f32 %v305, %v1005
        %v1007 = vand.u32 %v1006, 4294901760
        %v1008 = vsub.f32 %v1006, %v1007
        %v1009 = vand.u32 %v1008, 4294901760
        %1010 = vmatpush1.msra.mxu0 %v1009
        %1011 = vmatprep.subr.mxu0 0.0
        %1012 = vmatpush2.msra.mxu0 0.0
        %1013 = vmatprep.subr.mxu0 0.0
        %1014 = vmatpush2.msra.mxu0 0.0
        %1015 = vmatprep.subr.mxu0 0.0
        %1016 = vmatpush2.msra.mxu0 0.0
        %1017 = vmatprep.subr.mxu0 0.0
        %1018 = vmatpush2.msra.mxu0 0.0
        %1019 = vmatprep.subr.mxu0 0.0
        %1020 = vmatpush2.msra.mxu0 0.0
        %1021 = vmatprep.subr.mxu0 0.0
        %1022 = vmatpush2.msra.mxu0 0.0
        %1023 = vmatprep.subr.mxu0 0.0
        %1024 = vmatpush2.msra.mxu0 0.0
        %1025 = vmatprep.subr.mxu0 0.0
        %1026 = vmatpush2.msra.mxu0 0.0
        %1027 = vmatprep.subr.mxu0 0.0
        %1028 = vmatpush2.msra.mxu0 0.0
        %1029 = vmatprep.subr.mxu0 0.0
        %1030 = vmatpush2.msra.mxu0 0.0
        %1031 = vmatprep.subr.mxu0 0.0
        %1032 = vmatpush2.msra.mxu0 0.0
        %1033 = vmatprep.subr.mxu0 0.0
        %1034 = vmatpush2.msra.mxu0 0.0
        %1035 = vmatprep.subr.mxu0 0.0
        %1036 = vmatpush2.msra.mxu0 0.0
        %1037 = vmatprep.subr.mxu0 0.0
        %1038 = vmatpush2.msra.mxu0 0.0
        %1039 = vmatprep.subr.mxu0 0.0
        %1040 = vmatpush2.msra.mxu0 0.0
        %1041 = vmatprep.subr.mxu0 0.0
        %1042 = vmatpush2.msra.mxu0 0.0
        %1043 = vmatprep.mubr.f32.mxu0 0.0
        %v1044 = vand.u32 %v801, 4294901760
        %1045 = vmatmul.mubr.f32.gmra.mxu0 %v1044
        %v1046 = vpop.f32.mrf.mxu0
        %v1047 = vadd.f32 %v896, %v1046
        %v1048 = vpop.f32.mrf.mxu0
        %1049 = vdwg.mxu0
        %1050 = vmatprep.subr.mxu0 0.0
        %v1051 = vand.u32 %v320, 4294901760
        %v1052 = vsub.f32 %v320, %v1051
        %1053 = vmatpush1.msra.mxu0 %v1052
        %1054 = vmatprep.subr.mxu0 0.0
        %v1055 = vand.u32 %v319, 4294901760
        %v1056 = vsub.f32 %v319, %v1055
        %1057 = vmatpush1.msra.mxu0 %v1056
        %1058 = vmatprep.subr.mxu0 0.0
        %v1059 = vand.u32 %v318, 4294901760
        %v1060 = vsub.f32 %v318, %v1059
        %1061 = vmatpush1.msra.mxu0 %v1060
        %1062 = vmatprep.subr.mxu0 0.0
        %v1063 = vand.u32 %v317, 4294901760
        %v1064 = vsub.f32 %v317, %v1063
        %1065 = vmatpush1.msra.mxu0 %v1064
        %1066 = vmatprep.subr.mxu0 0.0
        %v1067 = vand.u32 %v316, 4294901760
        %v1068 = vsub.f32 %v316, %v1067
        %1069 = vmatpush1.msra.mxu0 %v1068
        %1070 = vmatprep.subr.mxu0 0.0
        %v1071 = vand.u32 %v315, 4294901760
        %v1072 = vsub.f32 %v315, %v1071
        %1073 = vmatpush1.msra.mxu0 %v1072
        %1074 = vmatprep.subr.mxu0 0.0
        %v1075 = vand.u32 %v314, 4294901760
        %v1076 = vsub.f32 %v314, %v1075
        %1077 = vmatpush1.msra.mxu0 %v1076
        %1078 = vmatprep.subr.mxu0 0.0
        %v1079 = vand.u32 %v313, 4294901760
        %v1080 = vsub.f32 %v313, %v1079
        %1081 = vmatpush1.msra.mxu0 %v1080
        %1082 = vmatprep.subr.mxu0 0.0
        %v1083 = vand.u32 %v312, 4294901760
        %v1084 = vsub.f32 %v312, %v1083
        %1085 = vmatpush1.msra.mxu0 %v1084
        %1086 = vmatprep.subr.mxu0 0.0
        %v1087 = vand.u32 %v311, 4294901760
        %v1088 = vsub.f32 %v311, %v1087
        %1089 = vmatpush1.msra.mxu0 %v1088
        %1090 = vmatprep.subr.mxu0 0.0
        %v1091 = vand.u32 %v310, 4294901760
        %v1092 = vsub.f32 %v310, %v1091
        %1093 = vmatpush1.msra.mxu0 %v1092
        %1094 = vmatprep.subr.mxu0 0.0
        %v1095 = vand.u32 %v309, 4294901760
        %v1096 = vsub.f32 %v309, %v1095
        %1097 = vmatpush1.msra.mxu0 %v1096
        %1098 = vmatprep.subr.mxu0 0.0
        %v1099 = vand.u32 %v308, 4294901760
        %v1100 = vsub.f32 %v308, %v1099
        %1101 = vmatpush1.msra.mxu0 %v1100
        %1102 = vmatprep.subr.mxu0 0.0
        %v1103 = vand.u32 %v307, 4294901760
        %v1104 = vsub.f32 %v307, %v1103
        %1105 = vmatpush1.msra.mxu0 %v1104
        %1106 = vmatprep.subr.mxu0 0.0
        %v1107 = vand.u32 %v306, 4294901760
        %v1108 = vsub.f32 %v306, %v1107
        %1109 = vmatpush1.msra.mxu0 %v1108
        %1110 = vmatprep.subr.mxu0 0.0
        %v1111 = vand.u32 %v305, 4294901760
        %v1112 = vsub.f32 %v305, %v1111
        %1113 = vmatpush1.msra.mxu0 %v1112
        %1114 = vmatprep.subr.mxu0 0.0
        %1115 = vmatpush2.msra.mxu0 0.0
        %1116 = vmatprep.subr.mxu0 0.0
        %1117 = vmatpush2.msra.mxu0 0.0
        %1118 = vmatprep.subr.mxu0 0.0
        %1119 = vmatpush2.msra.mxu0 0.0
        %1120 = vmatprep.subr.mxu0 0.0
        %1121 = vmatpush2.msra.mxu0 0.0
        %1122 = vmatprep.subr.mxu0 0.0
        %1123 = vmatpush2.msra.mxu0 0.0
        %1124 = vmatprep.subr.mxu0 0.0
        %1125 = vmatpush2.msra.mxu0 0.0
        %1126 = vmatprep.subr.mxu0 0.0
        %1127 = vmatpush2.msra.mxu0 0.0
        %1128 = vmatprep.subr.mxu0 0.0
        %1129 = vmatpush2.msra.mxu0 0.0
        %1130 = vmatprep.subr.mxu0 0.0
        %1131 = vmatpush2.msra.mxu0 0.0
        %1132 = vmatprep.subr.mxu0 0.0
        %1133 = vmatpush2.msra.mxu0 0.0
        %1134 = vmatprep.subr.mxu0 0.0
        %1135 = vmatpush2.msra.mxu0 0.0
        %1136 = vmatprep.subr.mxu0 0.0
        %1137 = vmatpush2.msra.mxu0 0.0
        %1138 = vmatprep.subr.mxu0 0.0
        %1139 = vmatpush2.msra.mxu0 0.0
        %1140 = vmatprep.subr.mxu0 0.0
        %1141 = vmatpush2.msra.mxu0 0.0
        %1142 = vmatprep.subr.mxu0 0.0
        %1143 = vmatpush2.msra.mxu0 0.0
        %1144 = vmatprep.subr.mxu0 0.0
        %1145 = vmatpush2.msra.mxu0 0.0
        %1146 = vmatprep.mubr.f32.mxu0 0.0
        %v1147 = vand.u32 %v801, 4294901760
        %v1148 = vsub.f32 %v801, %v1147
        %1149 = vmatmul.mubr.f32.gmra.mxu0 %v1148
        %v1150 = vpop.f32.mrf.mxu0
        %v1151 = vadd.f32 %v1047, %v1150
        %v1152 = vpop.f32.mrf.mxu0
        %1153 = vdwg.mxu0
        %1154 = vmatprep.subr.mxu0 0.0
        %v1155 = vand.u32 %v320, 4294901760
        %1156 = vmatpush1.msra.mxu0 %v1155
        %1157 = vmatprep.subr.mxu0 0.0
        %v1158 = vand.u32 %v319, 4294901760
        %1159 = vmatpush1.msra.mxu0 %v1158
        %1160 = vmatprep.subr.mxu0 0.0
        %v1161 = vand.u32 %v318, 4294901760
        %1162 = vmatpush1.msra.mxu0 %v1161
        %1163 = vmatprep.subr.mxu0 0.0
        %v1164 = vand.u32 %v317, 4294901760
        %1165 = vmatpush1.msra.mxu0 %v1164
        %1166 = vmatprep.subr.mxu0 0.0
        %v1167 = vand.u32 %v316, 4294901760
        %1168 = vmatpush1.msra.mxu0 %v1167
        %1169 = vmatprep.subr.mxu0 0.0
        %v1170 = vand.u32 %v315, 4294901760
        %1171 = vmatpush1.msra.mxu0 %v1170
        %1172 = vmatprep.subr.mxu0 0.0
        %v1173 = vand.u32 %v314, 4294901760
        %1174 = vmatpush1.msra.mxu0 %v1173
        %1175 = vmatprep.subr.mxu0 0.0
        %v1176 = vand.u32 %v313, 4294901760
        %1177 = vmatpush1.msra.mxu0 %v1176
        %1178 = vmatprep.subr.mxu0 0.0
        %v1179 = vand.u32 %v312, 4294901760
        %1180 = vmatpush1.msra.mxu0 %v1179
        %1181 = vmatprep.subr.mxu0 0.0
        %v1182 = vand.u32 %v311, 4294901760
        %1183 = vmatpush1.msra.mxu0 %v1182
        %1184 = vmatprep.subr.mxu0 0.0
        %v1185 = vand.u32 %v310, 4294901760
        %1186 = vmatpush1.msra.mxu0 %v1185
        %1187 = vmatprep.subr.mxu0 0.0
        %v1188 = vand.u32 %v309, 4294901760
        %1189 = vmatpush1.msra.mxu0 %v1188
        %1190 = vmatprep.subr.mxu0 0.0
        %v1191 = vand.u32 %v308, 4294901760
        %1192 = vmatpush1.msra.mxu0 %v1191
        %1193 = vmatprep.subr.mxu0 0.0
        %v1194 = vand.u32 %v307, 4294901760
        %1195 = vmatpush1.msra.mxu0 %v1194
        %1196 = vmatprep.subr.mxu0 0.0
        %v1197 = vand.u32 %v306, 4294901760
        %1198 = vmatpush1.msra.mxu0 %v1197
        %1199 = vmatprep.subr.mxu0 0.0
        %v1200 = vand.u32 %v305, 4294901760
        %1201 = vmatpush1.msra.mxu0 %v1200
        %1202 = vmatprep.subr.mxu0 0.0
        %1203 = vmatpush2.msra.mxu0 0.0
        %1204 = vmatprep.subr.mxu0 0.0
        %1205 = vmatpush2.msra.mxu0 0.0
        %1206 = vmatprep.subr.mxu0 0.0
        %1207 = vmatpush2.msra.mxu0 0.0
        %1208 = vmatprep.subr.mxu0 0.0
        %1209 = vmatpush2.msra.mxu0 0.0
        %1210 = vmatprep.subr.mxu0 0.0
        %1211 = vmatpush2.msra.mxu0 0.0
        %1212 = vmatprep.subr.mxu0 0.0
        %1213 = vmatpush2.msra.mxu0 0.0
        %1214 = vmatprep.subr.mxu0 0.0
        %1215 = vmatpush2.msra.mxu0 0.0
        %1216 = vmatprep.subr.mxu0 0.0
        %1217 = vmatpush2.msra.mxu0 0.0
        %1218 = vmatprep.subr.mxu0 0.0
        %1219 = vmatpush2.msra.mxu0 0.0
        %1220 = vmatprep.subr.mxu0 0.0
        %1221 = vmatpush2.msra.mxu0 0.0
        %1222 = vmatprep.subr.mxu0 0.0
        %1223 = vmatpush2.msra.mxu0 0.0
        %1224 = vmatprep.subr.mxu0 0.0
        %1225 = vmatpush2.msra.mxu0 0.0
        %1226 = vmatprep.subr.mxu0 0.0
        %1227 = vmatpush2.msra.mxu0 0.0
        %1228 = vmatprep.subr.mxu0 0.0
        %1229 = vmatpush2.msra.mxu0 0.0
        %1230 = vmatprep.subr.mxu0 0.0
        %1231 = vmatpush2.msra.mxu0 0.0
        %1232 = vmatprep.subr.mxu0 0.0
        %1233 = vmatpush2.msra.mxu0 0.0
        %1234 = vmatprep.mubr.f32.mxu0 0.0
        %v1235 = vand.u32 %v801, 4294901760
        %v1236 = vsub.f32 %v801, %v1235
        %v1237 = vand.u32 %v1236, 4294901760
        %1238 = vmatmul.mubr.f32.gmra.mxu0 %v1237
        %v1239 = vpop.f32.mrf.mxu0
        %v1240 = vadd.f32 %v1151, %v1239
        %v1241 = vpop.f32.mrf.mxu0
        %1242 = vdwg.mxu0
        %1243 = vmatprep.subr.mxu0 0.0
        %v1244 = vand.u32 %v320, 4294901760
        %v1245 = vsub.f32 %v320, %v1244
        %v1246 = vand.u32 %v1245, 4294901760
        %1247 = vmatpush1.msra.mxu0 %v1246
        %1248 = vmatprep.subr.mxu0 0.0
        %v1249 = vand.u32 %v319, 4294901760
        %v1250 = vsub.f32 %v319, %v1249
        %v1251 = vand.u32 %v1250, 4294901760
        %1252 = vmatpush1.msra.mxu0 %v1251
        %1253 = vmatprep.subr.mxu0 0.0
        %v1254 = vand.u32 %v318, 4294901760
        %v1255 = vsub.f32 %v318, %v1254
        %v1256 = vand.u32 %v1255, 4294901760
        %1257 = vmatpush1.msra.mxu0 %v1256
        %1258 = vmatprep.subr.mxu0 0.0
        %v1259 = vand.u32 %v317, 4294901760
        %v1260 = vsub.f32 %v317, %v1259
        %v1261 = vand.u32 %v1260, 4294901760
        %1262 = vmatpush1.msra.mxu0 %v1261
        %1263 = vmatprep.subr.mxu0 0.0
        %v1264 = vand.u32 %v316, 4294901760
        %v1265 = vsub.f32 %v316, %v1264
        %v1266 = vand.u32 %v1265, 4294901760
        %1267 = vmatpush1.msra.mxu0 %v1266
        %1268 = vmatprep.subr.mxu0 0.0
        %v1269 = vand.u32 %v315, 4294901760
        %v1270 = vsub.f32 %v315, %v1269
        %v1271 = vand.u32 %v1270, 4294901760
        %1272 = vmatpush1.msra.mxu0 %v1271
        %1273 = vmatprep.subr.mxu0 0.0
        %v1274 = vand.u32 %v314, 4294901760
        %v1275 = vsub.f32 %v314, %v1274
        %v1276 = vand.u32 %v1275, 4294901760
        %1277 = vmatpush1.msra.mxu0 %v1276
        %1278 = vmatprep.subr.mxu0 0.0
        %v1279 = vand.u32 %v313, 4294901760
        %v1280 = vsub.f32 %v313, %v1279
        %v1281 = vand.u32 %v1280, 4294901760
        %1282 = vmatpush1.msra.mxu0 %v1281
        %1283 = vmatprep.subr.mxu0 0.0
        %v1284 = vand.u32 %v312, 4294901760
        %v1285 = vsub.f32 %v312, %v1284
        %v1286 = vand.u32 %v1285, 4294901760
        %1287 = vmatpush1.msra.mxu0 %v1286
        %1288 = vmatprep.subr.mxu0 0.0
        %v1289 = vand.u32 %v311, 4294901760
        %v1290 = vsub.f32 %v311, %v1289
        %v1291 = vand.u32 %v1290, 4294901760
        %1292 = vmatpush1.msra.mxu0 %v1291
        %1293 = vmatprep.subr.mxu0 0.0
        %v1294 = vand.u32 %v310, 4294901760
        %v1295 = vsub.f32 %v310, %v1294
        %v1296 = vand.u32 %v1295, 4294901760
        %1297 = vmatpush1.msra.mxu0 %v1296
        %1298 = vmatprep.subr.mxu0 0.0
        %v1299 = vand.u32 %v309, 4294901760
        %v1300 = vsub.f32 %v309, %v1299
        %v1301 = vand.u32 %v1300, 4294901760
        %1302 = vmatpush1.msra.mxu0 %v1301
        %1303 = vmatprep.subr.mxu0 0.0
        %v1304 = vand.u32 %v308, 4294901760
        %v1305 = vsub.f32 %v308, %v1304
        %v1306 = vand.u32 %v1305, 4294901760
        %1307 = vmatpush1.msra.mxu0 %v1306
        %1308 = vmatprep.subr.mxu0 0.0
        %v1309 = vand.u32 %v307, 4294901760
        %v1310 = vsub.f32 %v307, %v1309
        %v1311 = vand.u32 %v1310, 4294901760
        %1312 = vmatpush1.msra.mxu0 %v1311
        %1313 = vmatprep.subr.mxu0 0.0
        %v1314 = vand.u32 %v306, 4294901760
        %v1315 = vsub.f32 %v306, %v1314
        %v1316 = vand.u32 %v1315, 4294901760
        %1317 = vmatpush1.msra.mxu0 %v1316
        %1318 = vmatprep.subr.mxu0 0.0
        %v1319 = vand.u32 %v305, 4294901760
        %v1320 = vsub.f32 %v305, %v1319
        %v1321 = vand.u32 %v1320, 4294901760
        %1322 = vmatpush1.msra.mxu0 %v1321
        %1323 = vmatprep.subr.mxu0 0.0
        %1324 = vmatpush2.msra.mxu0 0.0
        %1325 = vmatprep.subr.mxu0 0.0
        %1326 = vmatpush2.msra.mxu0 0.0
        %1327 = vmatprep.subr.mxu0 0.0
        %1328 = vmatpush2.msra.mxu0 0.0
        %1329 = vmatprep.subr.mxu0 0.0
        %1330 = vmatpush2.msra.mxu0 0.0
        %1331 = vmatprep.subr.mxu0 0.0
        %1332 = vmatpush2.msra.mxu0 0.0
        %1333 = vmatprep.subr.mxu0 0.0
        %1334 = vmatpush2.msra.mxu0 0.0
        %1335 = vmatprep.subr.mxu0 0.0
        %1336 = vmatpush2.msra.mxu0 0.0
        %1337 = vmatprep.subr.mxu0 0.0
        %1338 = vmatpush2.msra.mxu0 0.0
        %1339 = vmatprep.subr.mxu0 0.0
        %1340 = vmatpush2.msra.mxu0 0.0
        %1341 = vmatprep.subr.mxu0 0.0
        %1342 = vmatpush2.msra.mxu0 0.0
        %1343 = vmatprep.subr.mxu0 0.0
        %1344 = vmatpush2.msra.mxu0 0.0
        %1345 = vmatprep.subr.mxu0 0.0
        %1346 = vmatpush2.msra.mxu0 0.0
        %1347 = vmatprep.subr.mxu0 0.0
        %1348 = vmatpush2.msra.mxu0 0.0
        %1349 = vmatprep.subr.mxu0 0.0
        %1350 = vmatpush2.msra.mxu0 0.0
        %1351 = vmatprep.subr.mxu0 0.0
        %1352 = vmatpush2.msra.mxu0 0.0
        %1353 = vmatprep.subr.mxu0 0.0
        %1354 = vmatpush2.msra.mxu0 0.0
        %1355 = vmatprep.mubr.f32.mxu0 0.0
        %v1356 = vand.u32 %v801, 4294901760
        %1357 = vmatmul.mubr.f32.gmra.mxu0 %v1356
        %v1358 = vpop.f32.mrf.mxu0
        %v1359 = vadd.f32 %v1240, %v1358
        %v1360 = vpop.f32.mrf.mxu0
        %1361 = vdwg.mxu0
        %1362 = vmatprep.subr.mxu0 0.0
        %v1363 = vand.u32 %v320, 4294901760
        %1364 = vmatpush1.msra.mxu0 %v1363
        %1365 = vmatprep.subr.mxu0 0.0
        %v1366 = vand.u32 %v319, 4294901760
        %1367 = vmatpush1.msra.mxu0 %v1366
        %1368 = vmatprep.subr.mxu0 0.0
        %v1369 = vand.u32 %v318, 4294901760
        %1370 = vmatpush1.msra.mxu0 %v1369
        %1371 = vmatprep.subr.mxu0 0.0
        %v1372 = vand.u32 %v317, 4294901760
        %1373 = vmatpush1.msra.mxu0 %v1372
        %1374 = vmatprep.subr.mxu0 0.0
        %v1375 = vand.u32 %v316, 4294901760
        %1376 = vmatpush1.msra.mxu0 %v1375
        %1377 = vmatprep.subr.mxu0 0.0
        %v1378 = vand.u32 %v315, 4294901760
        %1379 = vmatpush1.msra.mxu0 %v1378
        %1380 = vmatprep.subr.mxu0 0.0
        %v1381 = vand.u32 %v314, 4294901760
        %1382 = vmatpush1.msra.mxu0 %v1381
        %1383 = vmatprep.subr.mxu0 0.0
        %v1384 = vand.u32 %v313, 4294901760
        %1385 = vmatpush1.msra.mxu0 %v1384
        %1386 = vmatprep.subr.mxu0 0.0
        %v1387 = vand.u32 %v312, 4294901760
        %1388 = vmatpush1.msra.mxu0 %v1387
        %1389 = vmatprep.subr.mxu0 0.0
        %v1390 = vand.u32 %v311, 4294901760
        %1391 = vmatpush1.msra.mxu0 %v1390
        %1392 = vmatprep.subr.mxu0 0.0
        %v1393 = vand.u32 %v310, 4294901760
        %1394 = vmatpush1.msra.mxu0 %v1393
        %1395 = vmatprep.subr.mxu0 0.0
        %v1396 = vand.u32 %v309, 4294901760
        %1397 = vmatpush1.msra.mxu0 %v1396
        %1398 = vmatprep.subr.mxu0 0.0
        %v1399 = vand.u32 %v308, 4294901760
        %1400 = vmatpush1.msra.mxu0 %v1399
        %1401 = vmatprep.subr.mxu0 0.0
        %v1402 = vand.u32 %v307, 4294901760
        %1403 = vmatpush1.msra.mxu0 %v1402
        %1404 = vmatprep.subr.mxu0 0.0
        %v1405 = vand.u32 %v306, 4294901760
        %1406 = vmatpush1.msra.mxu0 %v1405
        %1407 = vmatprep.subr.mxu0 0.0
        %v1408 = vand.u32 %v305, 4294901760
        %1409 = vmatpush1.msra.mxu0 %v1408
        %1410 = vmatprep.subr.mxu0 0.0
        %1411 = vmatpush2.msra.mxu0 0.0
        %1412 = vmatprep.subr.mxu0 0.0
        %1413 = vmatpush2.msra.mxu0 0.0
        %1414 = vmatprep.subr.mxu0 0.0
        %1415 = vmatpush2.msra.mxu0 0.0
        %1416 = vmatprep.subr.mxu0 0.0
        %1417 = vmatpush2.msra.mxu0 0.0
        %1418 = vmatprep.subr.mxu0 0.0
        %1419 = vmatpush2.msra.mxu0 0.0
        %1420 = vmatprep.subr.mxu0 0.0
        %1421 = vmatpush2.msra.mxu0 0.0
        %1422 = vmatprep.subr.mxu0 0.0
        %1423 = vmatpush2.msra.mxu0 0.0
        %1424 = vmatprep.subr.mxu0 0.0
        %1425 = vmatpush2.msra.mxu0 0.0
        %1426 = vmatprep.subr.mxu0 0.0
        %1427 = vmatpush2.msra.mxu0 0.0
        %1428 = vmatprep.subr.mxu0 0.0
        %1429 = vmatpush2.msra.mxu0 0.0
        %1430 = vmatprep.subr.mxu0 0.0
        %1431 = vmatpush2.msra.mxu0 0.0
        %1432 = vmatprep.subr.mxu0 0.0
        %1433 = vmatpush2.msra.mxu0 0.0
        %1434 = vmatprep.subr.mxu0 0.0
        %1435 = vmatpush2.msra.mxu0 0.0
        %1436 = vmatprep.subr.mxu0 0.0
        %1437 = vmatpush2.msra.mxu0 0.0
        %1438 = vmatprep.subr.mxu0 0.0
        %1439 = vmatpush2.msra.mxu0 0.0
        %1440 = vmatprep.subr.mxu0 0.0
        %1441 = vmatpush2.msra.mxu0 0.0
        %1442 = vmatprep.mubr.f32.mxu0 0.0
        %v1443 = vand.u32 %v801, 4294901760
        %1444 = vmatmul.mubr.f32.gmra.mxu0 %v1443
        %v1445 = vpop.f32.mrf.mxu0
        %v1446 = vadd.f32 %v1359, %v1445
        %v1447 = vpop.f32.mrf.mxu0
        %1448 = vdwg.mxu0
        %v1449 = vmax.f32 %v1446, 0.0
        %v1451 = vlaneseq
        %v1452 = vshrl.u32 %v1451, 7
        %v1453 = vsub.s32 0, %v1452
        %v1454 = vrot.slane %v339, %v1453
        %1456 = vmatprep.subr.mxu0 0.0
        %v1457 = vand.u32 %v336, 4294901760
        %1458 = vmatpush1.msra.mxu0 %v1457
        %1459 = vmatprep.subr.mxu0 0.0
        %v1460 = vand.u32 %v335, 4294901760
        %1461 = vmatpush1.msra.mxu0 %v1460
        %1462 = vmatprep.subr.mxu0 0.0
        %v1463 = vand.u32 %v334, 4294901760
        %1464 = vmatpush1.msra.mxu0 %v1463
        %1465 = vmatprep.subr.mxu0 0.0
        %v1466 = vand.u32 %v333, 4294901760
        %1467 = vmatpush1.msra.mxu0 %v1466
        %1468 = vmatprep.subr.mxu0 0.0
        %v1469 = vand.u32 %v332, 4294901760
        %1470 = vmatpush1.msra.mxu0 %v1469
        %1471 = vmatprep.subr.mxu0 0.0
        %v1472 = vand.u32 %v331, 4294901760
        %1473 = vmatpush1.msra.mxu0 %v1472
        %1474 = vmatprep.subr.mxu0 0.0
        %v1475 = vand.u32 %v330, 4294901760
        %1476 = vmatpush1.msra.mxu0 %v1475
        %1477 = vmatprep.subr.mxu0 0.0
        %v1478 = vand.u32 %v329, 4294901760
        %1479 = vmatpush1.msra.mxu0 %v1478
        %1480 = vmatprep.subr.mxu0 0.0
        %v1481 = vand.u32 %v328, 4294901760
        %1482 = vmatpush1.msra.mxu0 %v1481
        %1483 = vmatprep.subr.mxu0 0.0
        %v1484 = vand.u32 %v327, 4294901760
        %1485 = vmatpush1.msra.mxu0 %v1484
        %1486 = vmatprep.subr.mxu0 0.0
        %v1487 = vand.u32 %v326, 4294901760
        %1488 = vmatpush1.msra.mxu0 %v1487
        %1489 = vmatprep.subr.mxu0 0.0
        %v1490 = vand.u32 %v325, 4294901760
        %1491 = vmatpush1.msra.mxu0 %v1490
        %1492 = vmatprep.subr.mxu0 0.0
        %v1493 = vand.u32 %v324, 4294901760
        %1494 = vmatpush1.msra.mxu0 %v1493
        %1495 = vmatprep.subr.mxu0 0.0
        %v1496 = vand.u32 %v323, 4294901760
        %1497 = vmatpush1.msra.mxu0 %v1496
        %1498 = vmatprep.subr.mxu0 0.0
        %v1499 = vand.u32 %v322, 4294901760
        %1500 = vmatpush1.msra.mxu0 %v1499
        %1501 = vmatprep.subr.mxu0 0.0
        %v1502 = vand.u32 %v321, 4294901760
        %1503 = vmatpush1.msra.mxu0 %v1502
        %1504 = vmatprep.subr.mxu0 0.0
        %1505 = vmatpush2.msra.mxu0 0.0
        %1506 = vmatprep.subr.mxu0 0.0
        %1507 = vmatpush2.msra.mxu0 0.0
        %1508 = vmatprep.subr.mxu0 0.0
        %1509 = vmatpush2.msra.mxu0 0.0
        %1510 = vmatprep.subr.mxu0 0.0
        %1511 = vmatpush2.msra.mxu0 0.0
        %1512 = vmatprep.subr.mxu0 0.0
        %1513 = vmatpush2.msra.mxu0 0.0
        %1514 = vmatprep.subr.mxu0 0.0
        %1515 = vmatpush2.msra.mxu0 0.0
        %1516 = vmatprep.subr.mxu0 0.0
        %1517 = vmatpush2.msra.mxu0 0.0
        %1518 = vmatprep.subr.mxu0 0.0
        %1519 = vmatpush2.msra.mxu0 0.0
        %1520 = vmatprep.subr.mxu0 0.0
        %1521 = vmatpush2.msra.mxu0 0.0
        %1522 = vmatprep.subr.mxu0 0.0
        %1523 = vmatpush2.msra.mxu0 0.0
        %1524 = vmatprep.subr.mxu0 0.0
        %1525 = vmatpush2.msra.mxu0 0.0
        %1526 = vmatprep.subr.mxu0 0.0
        %1527 = vmatpush2.msra.mxu0 0.0
        %1528 = vmatprep.subr.mxu0 0.0
        %1529 = vmatpush2.msra.mxu0 0.0
        %1530 = vmatprep.subr.mxu0 0.0
        %1531 = vmatpush2.msra.mxu0 0.0
        %1532 = vmatprep.subr.mxu0 0.0
        %1533 = vmatpush2.msra.mxu0 0.0
        %1534 = vmatprep.subr.mxu0 0.0
        %1535 = vmatpush2.msra.mxu0 0.0
        %1536 = vmatprep.mubr.f32.mxu0 0.0
        %v1537 = vand.u32 %v1449, 4294901760
        %v1538 = vsub.f32 %v1449, %v1537
        %v1539 = vand.u32 %v1538, 4294901760
        %v1540 = vsub.f32 %v1538, %v1539
        %v1541 = vand.u32 %v1540, 4294901760
        %1542 = vmatmul.mubr.f32.gmra.mxu0 %v1541
        %v1543 = vpop.f32.mrf.mxu0
        %v1544 = vadd.f32 %v1454, %v1543
        %v1545 = vpop.f32.mrf.mxu0
        %1546 = vdwg.mxu0
        %1547 = vmatprep.subr.mxu0 0.0
        %v1548 = vand.u32 %v336, 4294901760
        %v1549 = vsub.f32 %v336, %v1548
        %v1550 = vand.u32 %v1549, 4294901760
        %v1551 = vsub.f32 %v1549, %v1550
        %v1552 = vand.u32 %v1551, 4294901760
        %1553 = vmatpush1.msra.mxu0 %v1552
        %1554 = vmatprep.subr.mxu0 0.0
        %v1555 = vand.u32 %v335, 4294901760
        %v1556 = vsub.f32 %v335, %v1555
        %v1557 = vand.u32 %v1556, 4294901760
        %v1558 = vsub.f32 %v1556, %v1557
        %v1559 = vand.u32 %v1558, 4294901760
        %1560 = vmatpush1.msra.mxu0 %v1559
        %1561 = vmatprep.subr.mxu0 0.0
        %v1562 = vand.u32 %v334, 4294901760
        %v1563 = vsub.f32 %v334, %v1562
        %v1564 = vand.u32 %v1563, 4294901760
        %v1565 = vsub.f32 %v1563, %v1564
        %v1566 = vand.u32 %v1565, 4294901760
        %1567 = vmatpush1.msra.mxu0 %v1566
        %1568 = vmatprep.subr.mxu0 0.0
        %v1569 = vand.u32 %v333, 4294901760
        %v1570 = vsub.f32 %v333, %v1569
        %v1571 = vand.u32 %v1570, 4294901760
        %v1572 = vsub.f32 %v1570, %v1571
        %v1573 = vand.u32 %v1572, 4294901760
        %1574 = vmatpush1.msra.mxu0 %v1573
        %1575 = vmatprep.subr.mxu0 0.0
        %v1576 = vand.u32 %v332, 4294901760
        %v1577 = vsub.f32 %v332, %v1576
        %v1578 = vand.u32 %v1577, 4294901760
        %v1579 = vsub.f32 %v1577, %v1578
        %v1580 = vand.u32 %v1579, 4294901760
        %1581 = vmatpush1.msra.mxu0 %v1580
        %1582 = vmatprep.subr.mxu0 0.0
        %v1583 = vand.u32 %v331, 4294901760
        %v1584 = vsub.f32 %v331, %v1583
        %v1585 = vand.u32 %v1584, 4294901760
        %v1586 = vsub.f32 %v1584, %v1585
        %v1587 = vand.u32 %v1586, 4294901760
        %1588 = vmatpush1.msra.mxu0 %v1587
        %1589 = vmatprep.subr.mxu0 0.0
        %v1590 = vand.u32 %v330, 4294901760
        %v1591 = vsub.f32 %v330, %v1590
        %v1592 = vand.u32 %v1591, 4294901760
        %v1593 = vsub.f32 %v1591, %v1592
        %v1594 = vand.u32 %v1593, 4294901760
        %1595 = vmatpush1.msra.mxu0 %v1594
        %1596 = vmatprep.subr.mxu0 0.0
        %v1597 = vand.u32 %v329, 4294901760
        %v1598 = vsub.f32 %v329, %v1597
        %v1599 = vand.u32 %v1598, 4294901760
        %v1600 = vsub.f32 %v1598, %v1599
        %v1601 = vand.u32 %v1600, 4294901760
        %1602 = vmatpush1.msra.mxu0 %v1601
        %1603 = vmatprep.subr.mxu0 0.0
        %v1604 = vand.u32 %v328, 4294901760
        %v1605 = vsub.f32 %v328, %v1604
        %v1606 = vand.u32 %v1605, 4294901760
        %v1607 = vsub.f32 %v1605, %v1606
        %v1608 = vand.u32 %v1607, 4294901760
        %1609 = vmatpush1.msra.mxu0 %v1608
        %1610 = vmatprep.subr.mxu0 0.0
        %v1611 = vand.u32 %v327, 4294901760
        %v1612 = vsub.f32 %v327, %v1611
        %v1613 = vand.u32 %v1612, 4294901760
        %v1614 = vsub.f32 %v1612, %v1613
        %v1615 = vand.u32 %v1614, 4294901760
        %1616 = vmatpush1.msra.mxu0 %v1615
        %1617 = vmatprep.subr.mxu0 0.0
        %v1618 = vand.u32 %v326, 4294901760
        %v1619 = vsub.f32 %v326, %v1618
        %v1620 = vand.u32 %v1619, 4294901760
        %v1621 = vsub.f32 %v1619, %v1620
        %v1622 = vand.u32 %v1621, 4294901760
        %1623 = vmatpush1.msra.mxu0 %v1622
        %1624 = vmatprep.subr.mxu0 0.0
        %v1625 = vand.u32 %v325, 4294901760
        %v1626 = vsub.f32 %v325, %v1625
        %v1627 = vand.u32 %v1626, 4294901760
        %v1628 = vsub.f32 %v1626, %v1627
        %v1629 = vand.u32 %v1628, 4294901760
        %1630 = vmatpush1.msra.mxu0 %v1629
        %1631 = vmatprep.subr.mxu0 0.0
        %v1632 = vand.u32 %v324, 4294901760
        %v1633 = vsub.f32 %v324, %v1632
        %v1634 = vand.u32 %v1633, 4294901760
        %v1635 = vsub.f32 %v1633, %v1634
        %v1636 = vand.u32 %v1635, 4294901760
        %1637 = vmatpush1.msra.mxu0 %v1636
        %1638 = vmatprep.subr.mxu0 0.0
        %v1639 = vand.u32 %v323, 4294901760
        %v1640 = vsub.f32 %v323, %v1639
        %v1641 = vand.u32 %v1640, 4294901760
        %v1642 = vsub.f32 %v1640, %v1641
        %v1643 = vand.u32 %v1642, 4294901760
        %1644 = vmatpush1.msra.mxu0 %v1643
        %1645 = vmatprep.subr.mxu0 0.0
        %v1646 = vand.u32 %v322, 4294901760
        %v1647 = vsub.f32 %v322, %v1646
        %v1648 = vand.u32 %v1647, 4294901760
        %v1649 = vsub.f32 %v1647, %v1648
        %v1650 = vand.u32 %v1649, 4294901760
        %1651 = vmatpush1.msra.mxu0 %v1650
        %1652 = vmatprep.subr.mxu0 0.0
        %v1653 = vand.u32 %v321, 4294901760
        %v1654 = vsub.f32 %v321, %v1653
        %v1655 = vand.u32 %v1654, 4294901760
        %v1656 = vsub.f32 %v1654, %v1655
        %v1657 = vand.u32 %v1656, 4294901760
        %1658 = vmatpush1.msra.mxu0 %v1657
        %1659 = vmatprep.subr.mxu0 0.0
        %1660 = vmatpush2.msra.mxu0 0.0
        %1661 = vmatprep.subr.mxu0 0.0
        %1662 = vmatpush2.msra.mxu0 0.0
        %1663 = vmatprep.subr.mxu0 0.0
        %1664 = vmatpush2.msra.mxu0 0.0
        %1665 = vmatprep.subr.mxu0 0.0
        %1666 = vmatpush2.msra.mxu0 0.0
        %1667 = vmatprep.subr.mxu0 0.0
        %1668 = vmatpush2.msra.mxu0 0.0
        %1669 = vmatprep.subr.mxu0 0.0
        %1670 = vmatpush2.msra.mxu0 0.0
        %1671 = vmatprep.subr.mxu0 0.0
        %1672 = vmatpush2.msra.mxu0 0.0
        %1673 = vmatprep.subr.mxu0 0.0
        %1674 = vmatpush2.msra.mxu0 0.0
        %1675 = vmatprep.subr.mxu0 0.0
        %1676 = vmatpush2.msra.mxu0 0.0
        %1677 = vmatprep.subr.mxu0 0.0
        %1678 = vmatpush2.msra.mxu0 0.0
        %1679 = vmatprep.subr.mxu0 0.0
        %1680 = vmatpush2.msra.mxu0 0.0
        %1681 = vmatprep.subr.mxu0 0.0
        %1682 = vmatpush2.msra.mxu0 0.0
        %1683 = vmatprep.subr.mxu0 0.0
        %1684 = vmatpush2.msra.mxu0 0.0
        %1685 = vmatprep.subr.mxu0 0.0
        %1686 = vmatpush2.msra.mxu0 0.0
        %1687 = vmatprep.subr.mxu0 0.0
        %1688 = vmatpush2.msra.mxu0 0.0
        %1689 = vmatprep.subr.mxu0 0.0
        %1690 = vmatpush2.msra.mxu0 0.0
        %1691 = vmatprep.mubr.f32.mxu0 0.0
        %v1692 = vand.u32 %v1449, 4294901760
        %1693 = vmatmul.mubr.f32.gmra.mxu0 %v1692
        %v1694 = vpop.f32.mrf.mxu0
        %v1695 = vadd.f32 %v1544, %v1694
        %v1696 = vpop.f32.mrf.mxu0
        %1697 = vdwg.mxu0
        %1698 = vmatprep.subr.mxu0 0.0
        %v1699 = vand.u32 %v336, 4294901760
        %v1700 = vsub.f32 %v336, %v1699
        %1701 = vmatpush1.msra.mxu0 %v1700
        %1702 = vmatprep.subr.mxu0 0.0
        %v1703 = vand.u32 %v335, 4294901760
        %v1704 = vsub.f32 %v335, %v1703
        %1705 = vmatpush1.msra.mxu0 %v1704
        %1706 = vmatprep.subr.mxu0 0.0
        %v1707 = vand.u32 %v334, 4294901760
        %v1708 = vsub.f32 %v334, %v1707
        %1709 = vmatpush1.msra.mxu0 %v1708
        %1710 = vmatprep.subr.mxu0 0.0
        %v1711 = vand.u32 %v333, 4294901760
        %v1712 = vsub.f32 %v333, %v1711
        %1713 = vmatpush1.msra.mxu0 %v1712
        %1714 = vmatprep.subr.mxu0 0.0
        %v1715 = vand.u32 %v332, 4294901760
        %v1716 = vsub.f32 %v332, %v1715
        %1717 = vmatpush1.msra.mxu0 %v1716
        %1718 = vmatprep.subr.mxu0 0.0
        %v1719 = vand.u32 %v331, 4294901760
        %v1720 = vsub.f32 %v331, %v1719
        %1721 = vmatpush1.msra.mxu0 %v1720
        %1722 = vmatprep.subr.mxu0 0.0
        %v1723 = vand.u32 %v330, 4294901760
        %v1724 = vsub.f32 %v330, %v1723
        %1725 = vmatpush1.msra.mxu0 %v1724
        %1726 = vmatprep.subr.mxu0 0.0
        %v1727 = vand.u32 %v329, 4294901760
        %v1728 = vsub.f32 %v329, %v1727
        %1729 = vmatpush1.msra.mxu0 %v1728
        %1730 = vmatprep.subr.mxu0 0.0
        %v1731 = vand.u32 %v328, 4294901760
        %v1732 = vsub.f32 %v328, %v1731
        %1733 = vmatpush1.msra.mxu0 %v1732
        %1734 = vmatprep.subr.mxu0 0.0
        %v1735 = vand.u32 %v327, 4294901760
        %v1736 = vsub.f32 %v327, %v1735
        %1737 = vmatpush1.msra.mxu0 %v1736
        %1738 = vmatprep.subr.mxu0 0.0
        %v1739 = vand.u32 %v326, 4294901760
        %v1740 = vsub.f32 %v326, %v1739
        %1741 = vmatpush1.msra.mxu0 %v1740
        %1742 = vmatprep.subr.mxu0 0.0
        %v1743 = vand.u32 %v325, 4294901760
        %v1744 = vsub.f32 %v325, %v1743
        %1745 = vmatpush1.msra.mxu0 %v1744
        %1746 = vmatprep.subr.mxu0 0.0
        %v1747 = vand.u32 %v324, 4294901760
        %v1748 = vsub.f32 %v324, %v1747
        %1749 = vmatpush1.msra.mxu0 %v1748
        %1750 = vmatprep.subr.mxu0 0.0
        %v1751 = vand.u32 %v323, 4294901760
        %v1752 = vsub.f32 %v323, %v1751
        %1753 = vmatpush1.msra.mxu0 %v1752
        %1754 = vmatprep.subr.mxu0 0.0
        %v1755 = vand.u32 %v322, 4294901760
        %v1756 = vsub.f32 %v322, %v1755
        %1757 = vmatpush1.msra.mxu0 %v1756
        %1758 = vmatprep.subr.mxu0 0.0
        %v1759 = vand.u32 %v321, 4294901760
        %v1760 = vsub.f32 %v321, %v1759
        %1761 = vmatpush1.msra.mxu0 %v1760
        %1762 = vmatprep.subr.mxu0 0.0
        %1763 = vmatpush2.msra.mxu0 0.0
        %1764 = vmatprep.subr.mxu0 0.0
        %1765 = vmatpush2.msra.mxu0 0.0
        %1766 = vmatprep.subr.mxu0 0.0
        %1767 = vmatpush2.msra.mxu0 0.0
        %1768 = vmatprep.subr.mxu0 0.0
        %1769 = vmatpush2.msra.mxu0 0.0
        %1770 = vmatprep.subr.mxu0 0.0
        %1771 = vmatpush2.msra.mxu0 0.0
        %1772 = vmatprep.subr.mxu0 0.0
        %1773 = vmatpush2.msra.mxu0 0.0
        %1774 = vmatprep.subr.mxu0 0.0
        %1775 = vmatpush2.msra.mxu0 0.0
        %1776 = vmatprep.subr.mxu0 0.0
        %1777 = vmatpush2.msra.mxu0 0.0
        %1778 = vmatprep.subr.mxu0 0.0
        %1779 = vmatpush2.msra.mxu0 0.0
        %1780 = vmatprep.subr.mxu0 0.0
        %1781 = vmatpush2.msra.mxu0 0.0
        %1782 = vmatprep.subr.mxu0 0.0
        %1783 = vmatpush2.msra.mxu0 0.0
        %1784 = vmatprep.subr.mxu0 0.0
        %1785 = vmatpush2.msra.mxu0 0.0
        %1786 = vmatprep.subr.mxu0 0.0
        %1787 = vmatpush2.msra.mxu0 0.0
        %1788 = vmatprep.subr.mxu0 0.0
        %1789 = vmatpush2.msra.mxu0 0.0
        %1790 = vmatprep.subr.mxu0 0.0
        %1791 = vmatpush2.msra.mxu0 0.0
        %1792 = vmatprep.subr.mxu0 0.0
        %1793 = vmatpush2.msra.mxu0 0.0
        %1794 = vmatprep.mubr.f32.mxu0 0.0
        %v1795 = vand.u32 %v1449, 4294901760
        %v1796 = vsub.f32 %v1449, %v1795
        %1797 = vmatmul.mubr.f32.gmra.mxu0 %v1796
        %v1798 = vpop.f32.mrf.mxu0
        %v1799 = vadd.f32 %v1695, %v1798
        %v1800 = vpop.f32.mrf.mxu0
        %1801 = vdwg.mxu0
        %1802 = vmatprep.subr.mxu0 0.0
        %v1803 = vand.u32 %v336, 4294901760
        %1804 = vmatpush1.msra.mxu0 %v1803
        %1805 = vmatprep.subr.mxu0 0.0
        %v1806 = vand.u32 %v335, 4294901760
        %1807 = vmatpush1.msra.mxu0 %v1806
        %1808 = vmatprep.subr.mxu0 0.0
        %v1809 = vand.u32 %v334, 4294901760
        %1810 = vmatpush1.msra.mxu0 %v1809
        %1811 = vmatprep.subr.mxu0 0.0
        %v1812 = vand.u32 %v333, 4294901760
        %1813 = vmatpush1.msra.mxu0 %v1812
        %1814 = vmatprep.subr.mxu0 0.0
        %v1815 = vand.u32 %v332, 4294901760
        %1816 = vmatpush1.msra.mxu0 %v1815
        %1817 = vmatprep.subr.mxu0 0.0
        %v1818 = vand.u32 %v331, 4294901760
        %1819 = vmatpush1.msra.mxu0 %v1818
        %1820 = vmatprep.subr.mxu0 0.0
        %v1821 = vand.u32 %v330, 4294901760
        %1822 = vmatpush1.msra.mxu0 %v1821
        %1823 = vmatprep.subr.mxu0 0.0
        %v1824 = vand.u32 %v329, 4294901760
        %1825 = vmatpush1.msra.mxu0 %v1824
        %1826 = vmatprep.subr.mxu0 0.0
        %v1827 = vand.u32 %v328, 4294901760
        %1828 = vmatpush1.msra.mxu0 %v1827
        %1829 = vmatprep.subr.mxu0 0.0
        %v1830 = vand.u32 %v327, 4294901760
        %1831 = vmatpush1.msra.mxu0 %v1830
        %1832 = vmatprep.subr.mxu0 0.0
        %v1833 = vand.u32 %v326, 4294901760
        %1834 = vmatpush1.msra.mxu0 %v1833
        %1835 = vmatprep.subr.mxu0 0.0
        %v1836 = vand.u32 %v325, 4294901760
        %1837 = vmatpush1.msra.mxu0 %v1836
        %1838 = vmatprep.subr.mxu0 0.0
        %v1839 = vand.u32 %v324, 4294901760
        %1840 = vmatpush1.msra.mxu0 %v1839
        %1841 = vmatprep.subr.mxu0 0.0
        %v1842 = vand.u32 %v323, 4294901760
        %1843 = vmatpush1.msra.mxu0 %v1842
        %1844 = vmatprep.subr.mxu0 0.0
        %v1845 = vand.u32 %v322, 4294901760
        %1846 = vmatpush1.msra.mxu0 %v1845
        %1847 = vmatprep.subr.mxu0 0.0
        %v1848 = vand.u32 %v321, 4294901760
        %1849 = vmatpush1.msra.mxu0 %v1848
        %1850 = vmatprep.subr.mxu0 0.0
        %1851 = vmatpush2.msra.mxu0 0.0
        %1852 = vmatprep.subr.mxu0 0.0
        %1853 = vmatpush2.msra.mxu0 0.0
        %1854 = vmatprep.subr.mxu0 0.0
        %1855 = vmatpush2.msra.mxu0 0.0
        %1856 = vmatprep.subr.mxu0 0.0
        %1857 = vmatpush2.msra.mxu0 0.0
        %1858 = vmatprep.subr.mxu0 0.0
        %1859 = vmatpush2.msra.mxu0 0.0
        %1860 = vmatprep.subr.mxu0 0.0
        %1861 = vmatpush2.msra.mxu0 0.0
        %1862 = vmatprep.subr.mxu0 0.0
        %1863 = vmatpush2.msra.mxu0 0.0
        %1864 = vmatprep.subr.mxu0 0.0
        %1865 = vmatpush2.msra.mxu0 0.0
        %1866 = vmatprep.subr.mxu0 0.0
        %1867 = vmatpush2.msra.mxu0 0.0
        %1868 = vmatprep.subr.mxu0 0.0
        %1869 = vmatpush2.msra.mxu0 0.0
        %1870 = vmatprep.subr.mxu0 0.0
        %1871 = vmatpush2.msra.mxu0 0.0
        %1872 = vmatprep.subr.mxu0 0.0
        %1873 = vmatpush2.msra.mxu0 0.0
        %1874 = vmatprep.subr.mxu0 0.0
        %1875 = vmatpush2.msra.mxu0 0.0
        %1876 = vmatprep.subr.mxu0 0.0
        %1877 = vmatpush2.msra.mxu0 0.0
        %1878 = vmatprep.subr.mxu0 0.0
        %1879 = vmatpush2.msra.mxu0 0.0
        %1880 = vmatprep.subr.mxu0 0.0
        %1881 = vmatpush2.msra.mxu0 0.0
        %1882 = vmatprep.mubr.f32.mxu0 0.0
        %v1883 = vand.u32 %v1449, 4294901760
        %v1884 = vsub.f32 %v1449, %v1883
        %v1885 = vand.u32 %v1884, 4294901760
        %1886 = vmatmul.mubr.f32.gmra.mxu0 %v1885
        %v1887 = vpop.f32.mrf.mxu0
        %v1888 = vadd.f32 %v1799, %v1887
        %v1889 = vpop.f32.mrf.mxu0
        %1890 = vdwg.mxu0
        %1891 = vmatprep.subr.mxu0 0.0
        %v1892 = vand.u32 %v336, 4294901760
        %v1893 = vsub.f32 %v336, %v1892
        %v1894 = vand.u32 %v1893, 4294901760
        %1895 = vmatpush1.msra.mxu0 %v1894
        %1896 = vmatprep.subr.mxu0 0.0
        %v1897 = vand.u32 %v335, 4294901760
        %v1898 = vsub.f32 %v335, %v1897
        %v1899 = vand.u32 %v1898, 4294901760
        %1900 = vmatpush1.msra.mxu0 %v1899
        %1901 = vmatprep.subr.mxu0 0.0
        %v1902 = vand.u32 %v334, 4294901760
        %v1903 = vsub.f32 %v334, %v1902
        %v1904 = vand.u32 %v1903, 4294901760
        %1905 = vmatpush1.msra.mxu0 %v1904
        %1906 = vmatprep.subr.mxu0 0.0
        %v1907 = vand.u32 %v333, 4294901760
        %v1908 = vsub.f32 %v333, %v1907
        %v1909 = vand.u32 %v1908, 4294901760
        %1910 = vmatpush1.msra.mxu0 %v1909
        %1911 = vmatprep.subr.mxu0 0.0
        %v1912 = vand.u32 %v332, 4294901760
        %v1913 = vsub.f32 %v332, %v1912
        %v1914 = vand.u32 %v1913, 4294901760
        %1915 = vmatpush1.msra.mxu0 %v1914
        %1916 = vmatprep.subr.mxu0 0.0
        %v1917 = vand.u32 %v331, 4294901760
        %v1918 = vsub.f32 %v331, %v1917
        %v1919 = vand.u32 %v1918, 4294901760
        %1920 = vmatpush1.msra.mxu0 %v1919
        %1921 = vmatprep.subr.mxu0 0.0
        %v1922 = vand.u32 %v330, 4294901760
        %v1923 = vsub.f32 %v330, %v1922
        %v1924 = vand.u32 %v1923, 4294901760
        %1925 = vmatpush1.msra.mxu0 %v1924
        %1926 = vmatprep.subr.mxu0 0.0
        %v1927 = vand.u32 %v329, 4294901760
        %v1928 = vsub.f32 %v329, %v1927
        %v1929 = vand.u32 %v1928, 4294901760
        %1930 = vmatpush1.msra.mxu0 %v1929
        %1931 = vmatprep.subr.mxu0 0.0
        %v1932 = vand.u32 %v328, 4294901760
        %v1933 = vsub.f32 %v328, %v1932
        %v1934 = vand.u32 %v1933, 4294901760
        %1935 = vmatpush1.msra.mxu0 %v1934
        %1936 = vmatprep.subr.mxu0 0.0
        %v1937 = vand.u32 %v327, 4294901760
        %v1938 = vsub.f32 %v327, %v1937
        %v1939 = vand.u32 %v1938, 4294901760
        %1940 = vmatpush1.msra.mxu0 %v1939
        %1941 = vmatprep.subr.mxu0 0.0
        %v1942 = vand.u32 %v326, 4294901760
        %v1943 = vsub.f32 %v326, %v1942
        %v1944 = vand.u32 %v1943, 4294901760
        %1945 = vmatpush1.msra.mxu0 %v1944
        %1946 = vmatprep.subr.mxu0 0.0
        %v1947 = vand.u32 %v325, 4294901760
        %v1948 = vsub.f32 %v325, %v1947
        %v1949 = vand.u32 %v1948, 4294901760
        %1950 = vmatpush1.msra.mxu0 %v1949
        %1951 = vmatprep.subr.mxu0 0.0
        %v1952 = vand.u32 %v324, 4294901760
        %v1953 = vsub.f32 %v324, %v1952
        %v1954 = vand.u32 %v1953, 4294901760
        %1955 = vmatpush1.msra.mxu0 %v1954
        %1956 = vmatprep.subr.mxu0 0.0
        %v1957 = vand.u32 %v323, 4294901760
        %v1958 = vsub.f32 %v323, %v1957
        %v1959 = vand.u32 %v1958, 4294901760
        %1960 = vmatpush1.msra.mxu0 %v1959
        %1961 = vmatprep.subr.mxu0 0.0
        %v1962 = vand.u32 %v322, 4294901760
        %v1963 = vsub.f32 %v322, %v1962
        %v1964 = vand.u32 %v1963, 4294901760
        %1965 = vmatpush1.msra.mxu0 %v1964
        %1966 = vmatprep.subr.mxu0 0.0
        %v1967 = vand.u32 %v321, 4294901760
        %v1968 = vsub.f32 %v321, %v1967
        %v1969 = vand.u32 %v1968, 4294901760
        %1970 = vmatpush1.msra.mxu0 %v1969
        %1971 = vmatprep.subr.mxu0 0.0
        %1972 = vmatpush2.msra.mxu0 0.0
        %1973 = vmatprep.subr.mxu0 0.0
        %1974 = vmatpush2.msra.mxu0 0.0
        %1975 = vmatprep.subr.mxu0 0.0
        %1976 = vmatpush2.msra.mxu0 0.0
        %1977 = vmatprep.subr.mxu0 0.0
        %1978 = vmatpush2.msra.mxu0 0.0
        %1979 = vmatprep.subr.mxu0 0.0
        %1980 = vmatpush2.msra.mxu0 0.0
        %1981 = vmatprep.subr.mxu0 0.0
        %1982 = vmatpush2.msra.mxu0 0.0
        %1983 = vmatprep.subr.mxu0 0.0
        %1984 = vmatpush2.msra.mxu0 0.0
        %1985 = vmatprep.subr.mxu0 0.0
        %1986 = vmatpush2.msra.mxu0 0.0
        %1987 = vmatprep.subr.mxu0 0.0
        %1988 = vmatpush2.msra.mxu0 0.0
        %1989 = vmatprep.subr.mxu0 0.0
        %1990 = vmatpush2.msra.mxu0 0.0
        %1991 = vmatprep.subr.mxu0 0.0
        %1992 = vmatpush2.msra.mxu0 0.0
        %1993 = vmatprep.subr.mxu0 0.0
        %1994 = vmatpush2.msra.mxu0 0.0
        %1995 = vmatprep.subr.mxu0 0.0
        %1996 = vmatpush2.msra.mxu0 0.0
        %1997 = vmatprep.subr.mxu0 0.0
        %1998 = vmatpush2.msra.mxu0 0.0
        %1999 = vmatprep.subr.mxu0 0.0
        %2000 = vmatpush2.msra.mxu0 0.0
        %2001 = vmatprep.subr.mxu0 0.0
        %2002 = vmatpush2.msra.mxu0 0.0
        %2003 = vmatprep.mubr.f32.mxu0 0.0
        %v2004 = vand.u32 %v1449, 4294901760
        %2005 = vmatmul.mubr.f32.gmra.mxu0 %v2004
        %v2006 = vpop.f32.mrf.mxu0
        %v2007 = vadd.f32 %v1888, %v2006
        %v2008 = vpop.f32.mrf.mxu0
        %2009 = vdwg.mxu0
        %2010 = vmatprep.subr.mxu0 0.0
        %v2011 = vand.u32 %v336, 4294901760
        %2012 = vmatpush1.msra.mxu0 %v2011
        %2013 = vmatprep.subr.mxu0 0.0
        %v2014 = vand.u32 %v335, 4294901760
        %2015 = vmatpush1.msra.mxu0 %v2014
        %2016 = vmatprep.subr.mxu0 0.0
        %v2017 = vand.u32 %v334, 4294901760
        %2018 = vmatpush1.msra.mxu0 %v2017
        %2019 = vmatprep.subr.mxu0 0.0
        %v2020 = vand.u32 %v333, 4294901760
        %2021 = vmatpush1.msra.mxu0 %v2020
        %2022 = vmatprep.subr.mxu0 0.0
        %v2023 = vand.u32 %v332, 4294901760
        %2024 = vmatpush1.msra.mxu0 %v2023
        %2025 = vmatprep.subr.mxu0 0.0
        %v2026 = vand.u32 %v331, 4294901760
        %2027 = vmatpush1.msra.mxu0 %v2026
        %2028 = vmatprep.subr.mxu0 0.0
        %v2029 = vand.u32 %v330, 4294901760
        %2030 = vmatpush1.msra.mxu0 %v2029
        %2031 = vmatprep.subr.mxu0 0.0
        %v2032 = vand.u32 %v329, 4294901760
        %2033 = vmatpush1.msra.mxu0 %v2032
        %2034 = vmatprep.subr.mxu0 0.0
        %v2035 = vand.u32 %v328, 4294901760
        %2036 = vmatpush1.msra.mxu0 %v2035
        %2037 = vmatprep.subr.mxu0 0.0
        %v2038 = vand.u32 %v327, 4294901760
        %2039 = vmatpush1.msra.mxu0 %v2038
        %2040 = vmatprep.subr.mxu0 0.0
        %v2041 = vand.u32 %v326, 4294901760
        %2042 = vmatpush1.msra.mxu0 %v2041
        %2043 = vmatprep.subr.mxu0 0.0
        %v2044 = vand.u32 %v325, 4294901760
        %2045 = vmatpush1.msra.mxu0 %v2044
        %2046 = vmatprep.subr.mxu0 0.0
        %v2047 = vand.u32 %v324, 4294901760
        %2048 = vmatpush1.msra.mxu0 %v2047
        %2049 = vmatprep.subr.mxu0 0.0
        %v2050 = vand.u32 %v323, 4294901760
        %2051 = vmatpush1.msra.mxu0 %v2050
        %2052 = vmatprep.subr.mxu0 0.0
        %v2053 = vand.u32 %v322, 4294901760
        %2054 = vmatpush1.msra.mxu0 %v2053
        %2055 = vmatprep.subr.mxu0 0.0
        %v2056 = vand.u32 %v321, 4294901760
        %2057 = vmatpush1.msra.mxu0 %v2056
        %2058 = vmatprep.subr.mxu0 0.0
        %2059 = vmatpush2.msra.mxu0 0.0
        %2060 = vmatprep.subr.mxu0 0.0
        %2061 = vmatpush2.msra.mxu0 0.0
        %2062 = vmatprep.subr.mxu0 0.0
        %2063 = vmatpush2.msra.mxu0 0.0
        %2064 = vmatprep.subr.mxu0 0.0
        %2065 = vmatpush2.msra.mxu0 0.0
        %2066 = vmatprep.subr.mxu0 0.0
        %2067 = vmatpush2.msra.mxu0 0.0
        %2068 = vmatprep.subr.mxu0 0.0
        %2069 = vmatpush2.msra.mxu0 0.0
        %2070 = vmatprep.subr.mxu0 0.0
        %2071 = vmatpush2.msra.mxu0 0.0
        %2072 = vmatprep.subr.mxu0 0.0
        %2073 = vmatpush2.msra.mxu0 0.0
        %2074 = vmatprep.subr.mxu0 0.0
        %2075 = vmatpush2.msra.mxu0 0.0
        %2076 = vmatprep.subr.mxu0 0.0
        %2077 = vmatpush2.msra.mxu0 0.0
        %2078 = vmatprep.subr.mxu0 0.0
        %2079 = vmatpush2.msra.mxu0 0.0
        %2080 = vmatprep.subr.mxu0 0.0
        %2081 = vmatpush2.msra.mxu0 0.0
        %2082 = vmatprep.subr.mxu0 0.0
        %2083 = vmatpush2.msra.mxu0 0.0
        %2084 = vmatprep.subr.mxu0 0.0
        %2085 = vmatpush2.msra.mxu0 0.0
        %2086 = vmatprep.subr.mxu0 0.0
        %2087 = vmatpush2.msra.mxu0 0.0
        %2088 = vmatprep.subr.mxu0 0.0
        %2089 = vmatpush2.msra.mxu0 0.0
        %2090 = vmatprep.mubr.f32.mxu0 0.0
        %v2091 = vand.u32 %v1449, 4294901760
        %2092 = vmatmul.mubr.f32.gmra.mxu0 %v2091
        %v2093 = vpop.f32.mrf.mxu0
        %v2094 = vadd.f32 %v2007, %v2093
        %v2095 = vpop.f32.mrf.mxu0
        %2096 = vdwg.mxu0
        %2097 = vst [vmem:[%s299] sm:$0xff] %v2094
        %s2098 = sand.u32 %s183, 1
        %s2099 = scalar_lea.sflag [#allocation4], %s2098
        %s2100 = sand.u32 %s183, 1
        %s2101 = smul.addr %s2100, 8
        %s2102 = scalar_lea.vmem [#allocation7], %s2101
        // Predicated region
        $region57: #{tpu_custom_call.1} parent=47 // pred_check
          %p2103 = pneg %p193
        $region58: #{tpu_custom_call.1} parent=47 // pred_check_branch
          %2105 = sbr.rel (%p2103) target = $region60
        $region59: #{tpu_custom_call.1} parent=47 // pred_region
          %s2107 = ssub.s32 128, 128
          %2108 = vsyncadd %s2099, %s2107
          %s2109 = smul.addr %s23, 128
          %s2110 = scalar_lea.hbm %s7, %s2109
          %s2112 = sshll.u32 %s2102, 4
          %s2113 = int_to_ptr.vmem [resolvable:$true] %s2112
          %2115 = dma.vmem_to_hbm [thread:$0]  %s2113, 128, %s2110, %s2099
        $region60: #{tpu_custom_call.1} parent=47 // pred_fallthru
          _
      $region48: #{tpu_custom_call.1} parent=5 // pred_fallthru
        _
      %p2116 = scmp.le.s32.totalorder 2, %s18
      // Predicated region
      $region61: #{tpu_custom_call.1} parent=5 // pred_check
        %p2117 = pneg %p2116
      $region62: #{tpu_custom_call.1} parent=5 // pred_check_branch
        %2119 = sbr.rel (%p2117) target = $region64
      $region63: #{tpu_custom_call.1} parent=5 // pred_region
        %s2120 = ssub.s32 %s18, 2
        // Predicated region
        $region65: #{tpu_custom_call.1} parent=63 // pred_check
          %p2121 = pneg %p199
        $region66: #{tpu_custom_call.1} parent=63 // pred_check_branch
          %2123 = sbr.rel (%p2121) target = $region68
        $region67: #{tpu_custom_call.1} parent=63 // pred_region
          %s2124 = sand.u32 %s184, 1
          %s2125 = scalar_lea.sflag [#allocation4], %s2124
          %s2126 = sand.u32 %s184, 1
          %s2127 = smul.addr %s2126, 8
          %s2128 = scalar_lea.vmem [#allocation7], %s2127
          %2129 = dma.done %s2125, 128
        $region68: #{tpu_custom_call.1} parent=63 // pred_fallthru
          _
      $region64: #{tpu_custom_call.1} parent=5 // pred_fallthru
        _
    $region6: #{tpu_custom_call.1} parent=1 // loop_footer
      %s22 = sadd.s32 1, %s18
    $region7: #{tpu_custom_call.1} parent=1 // loop_footer_branch
      %17 = sbr.rel target = $region3
    $region8: #{tpu_custom_call.1} parent=1 // loop_exit
      _
    %2130 = vsyncpa [#allocation3], 1
    %s2131 = scalar_lea.sflag [#allocation3], 1
    %2132 = vsyncpa %s2131, 1
    %2133 = vsyncpa [#allocation6], 1
    %2134 = vsyncpa [#allocation4], 1
    %s2135 = scalar_lea.sflag [#allocation4], 1
    %2136 = vsyncpa %s2135, 1

</llo_original>
